<compile_context>
chip_gen: v6e
topology: v6e:2x2x1
jax: 0.10.0
libtpu: 0.0.40
codegen_flags: <defaults>
</compile_context>

<pallas_src>
import numpy as np

import jax
import jax.numpy as jnp
from jax.experimental import pallas as pl
from jax.experimental.pallas import tpu as pltpu

IN_FEATURES = 180 * 6          # 1080
K_PADDED = 1152                # next multiple of 128 >= 1080
HIDDEN = 512


def encoder_kernel(x_ref, w1_ref, b1_ref, w2_ref, b2_ref, out_ref):
    # linear1 + ReLU: bf16 x bf16 on the MXU, f32 accumulate, f32 bias.
    h = jnp.dot(x_ref[...], w1_ref[...], preferred_element_type=jnp.float32)
    h = jnp.maximum(h + b1_ref[...], 0.0)
    # linear2 (no activation).
    o = jnp.dot(h.astype(jnp.bfloat16), w2_ref[...],
                preferred_element_type=jnp.float32)
    out_ref[...] = (o + b2_ref[...]).astype(out_ref.dtype)


def _round_up(n, m):
    return ((n + m - 1) // m) * m


def _batch_tiling(B):
    """Pick batch tile TB and padded batch Bp (a multiple of TB).

    Never uses an arbitrarily large whole batch as one tile: per-step VMEM is
    bounded and batches >= 256 get >= 2 grid steps so the 'parallel' axis can
    shard across v7x's two TensorCores."""
    if B <= 128:
        TB = _round_up(max(B, 1), 8)       # one small tile, grid=(1,)
    else:
        TB = 128
        for tb in (512, 256, 128):
            if B >= 2 * tb:                # prefer >= 2 grid steps
                TB = tb
                break
    return TB, _round_up(B, TB)


def _make_encoder_call(TB, Bp, K, H, LP, out_dtype, single_buffer_weights):
    grid = (Bp // TB,)
    const_kw = (dict(pipeline_mode=pl.Buffered(1))
                if single_buffer_weights else {})

    flops = 2 * Bp * (K * H + H * LP)
    bytes_accessed = (Bp * K * 2 + K * H * 2 + H * 4 + H * LP * 2 + LP * 4
                      + Bp * LP * np.dtype(out_dtype).itemsize)

    return pl.pallas_call(
        encoder_kernel,
        out_shape=jax.ShapeDtypeStruct((Bp, LP), out_dtype),
        grid_spec=pltpu.PrefetchScalarGridSpec(
            num_scalar_prefetch=0,
            grid=grid,
            in_specs=[
                pl.BlockSpec((TB, K), lambda i: (i, 0)),
                pl.BlockSpec((K, H), lambda i: (0, 0), **const_kw),
                pl.BlockSpec((1, H), lambda i: (0, 0), **const_kw),
                pl.BlockSpec((H, LP), lambda i: (0, 0), **const_kw),
                pl.BlockSpec((1, LP), lambda i: (0, 0), **const_kw),
            ],
            out_specs=pl.BlockSpec((TB, LP), lambda i: (i, 0)),
        ),
        compiler_params=pltpu.CompilerParams(
            dimension_semantics=("parallel",),
            vmem_limit_bytes=32 * 1024 * 1024,
        ),
        cost_estimate=pl.CostEstimate(
            flops=flops, transcendentals=0, bytes_accessed=bytes_accessed),
    )


def encoder_forward(x, params, latent_dims, out_dtype=jnp.float32):
    """Encoder forward pass.

    x: (B, 180, 6) (or already-flat (B, 1080)), any float dtype.
    params: (w1, b1, w2, b2) from init_encoder_params:
       w1 (K_PADDED, 512) bf16, b1 (1, 512) f32,
       w2 (512, LP) bf16,       b2 (1, LP) f32   (LP = latent padded to 128).
    Returns (B, latent_dims) in out_dtype (padding sliced off here, no API
    footgun for callers)."""
    w1, b1, w2, b2 = params
    B = x.shape[0]

    # torch.flatten(start_dim=1); x is cast to bf16 at the producer side so
    # the kernel's dominant DMA carries half the bytes (intentional
    # quantization of activations - acknowledged accuracy tradeoff).
    x_flat = x.reshape(B, -1).astype(jnp.bfloat16)
    assert x_flat.shape[1] == IN_FEATURES

    K = w1.shape[0]            # 1152 (lane-aligned contraction dim)
    H = w1.shape[1]            # 512
    LP = w2.shape[1]           # latent padded to a multiple of 128

    TB, Bp = _batch_tiling(B)
    # Zero-pad K (lane alignment) and batch (tile alignment). Padded rows /
    # columns are zeros and do not change the result.
    x_flat = jnp.pad(x_flat, ((0, Bp - B), (0, K - IN_FEATURES)))

    try:
        out_padded = _make_encoder_call(
            TB, Bp, K, H, LP, out_dtype, True)(x_flat, w1, b1, w2, b2)
    except Exception:
        # Compat guard: if this jax build rejects pl.Buffered(1) on the
        # top-level pipeline, fall back to default double-buffered weights
        # (identical results, ~1.2 MB extra VMEM).
        out_padded = _make_encoder_call(
            TB, Bp, K, H, LP, out_dtype, False)(x_flat, w1, b1, w2, b2)

    return out_padded[:B, :latent_dims]


def init_encoder_params(key, latent_dims):
    """Deterministic init mimicking PyTorch nn.Linear defaults
    (uniform(-1/sqrt(fan_in), 1/sqrt(fan_in))). Weights stored as (in, out)
    and cast to bf16; the contraction dim is zero-padded to K_PADDED and the
    latent dim is zero-padded to a multiple of 128 for lane-dense stores."""
    LP = _round_up(latent_dims, 128)
    k1, k2, k3, k4 = jax.random.split(key, 4)
    bound1 = 1.0 / jnp.sqrt(float(IN_FEATURES))
    bound2 = 1.0 / jnp.sqrt(float(HIDDEN))

    w1_real = jax.random.uniform(k1, (IN_FEATURES, HIDDEN), jnp.float32,
                                 -bound1, bound1)
    b1 = jax.random.uniform(k2, (1, HIDDEN), jnp.float32, -bound1, bound1)
    w2_real = jax.random.uniform(k3, (HIDDEN, latent_dims), jnp.float32,
                                 -bound2, bound2)
    b2_real = jax.random.uniform(k4, (1, latent_dims), jnp.float32,
                                 -bound2, bound2)

    w1 = jnp.zeros((K_PADDED, HIDDEN), jnp.float32).at[:IN_FEATURES, :].set(
        w1_real).astype(jnp.bfloat16)
    w2 = jnp.zeros((HIDDEN, LP), jnp.float32).at[:, :latent_dims].set(
        w2_real).astype(jnp.bfloat16)
    b2 = jnp.zeros((1, LP), jnp.float32).at[:, :latent_dims].set(b2_real)
    return w1, b1, w2, b2


if __name__ == "__main__":
    latent_dims = 32
    batch = 8

    key = jax.random.PRNGKey(0)
    kx, kp = jax.random.split(key)
    x = jax.random.normal(kx, (batch, 180, 6), jnp.float32)
    params = init_encoder_params(kp, latent_dims)

    out = encoder_forward(x, params, latent_dims)
    out = jax.block_until_ready(out)

    # Plain-JAX reference (weights de-quantized to f32). Remaining error comes
    # from the intentional bf16 activation quantization + MXU rounding, hence
    # the loose tolerance.
    w1, b1, w2, b2 = params
    x_flat = x.reshape(batch, -1)
    w1f = w1.astype(jnp.float32)[:IN_FEATURES, :]
    w2f = w2.astype(jnp.float32)[:, :latent_dims]
    h_ref = jnp.maximum(x_flat @ w1f + b1, 0.0)
    ref = h_ref @ w2f + b2[:, :latent_dims]

    assert out.shape == (batch, latent_dims)
    assert jnp.allclose(out, ref, atol=3e-2, rtol=3e-2), (
        float(jnp.max(jnp.abs(out - ref))))

    print("KERNEL_OK")
</pallas_src>

<mosaic_0001>
module attributes {stable_mosaic.version = 11 : i64} {
  func.func @encoder_kernel(%arg0: i32, %arg1: memref<8x1152xbf16, #tpu.memory_space<vmem>>, %arg2: memref<1152x512xbf16, #tpu.memory_space<vmem>>, %arg3: memref<1x512xf32, #tpu.memory_space<vmem>>, %arg4: memref<512x128xbf16, #tpu.memory_space<vmem>>, %arg5: memref<1x128xf32, #tpu.memory_space<vmem>>, %arg6: memref<8x128xf32, #tpu.memory_space<vmem>>) attributes {dimension_semantics = [#tpu.dimension_semantics<parallel>], iteration_bounds = array<i64: 1>, scalar_prefetch = 0 : i64, scratch_operands = 0 : i64, tpu.core_type = #tpu.core_type<tc>, window_params = [{transform_indices = @transform_0, window_bounds = array<i64: 8, 1152>}, {pipeline_mode = #tpu.pipeline_mode<synchronous>, transform_indices = @transform_1, window_bounds = array<i64: 1152, 512>}, {pipeline_mode = #tpu.pipeline_mode<synchronous>, transform_indices = @transform_2, window_bounds = array<i64: 1, 512>}, {pipeline_mode = #tpu.pipeline_mode<synchronous>, transform_indices = @transform_3, window_bounds = array<i64: 512, 128>}, {pipeline_mode = #tpu.pipeline_mode<synchronous>, transform_indices = @transform_4, window_bounds = array<i64: 1, 128>}, {transform_indices = @transform_5, window_bounds = array<i64: 8, 128>}]} {
    %c0 = arith.constant 0 : index
    %c0_0 = arith.constant 0 : index
    %0 = vector.load %arg1[%c0, %c0_0] : memref<8x1152xbf16, #tpu.memory_space<vmem>>, vector<8x1152xbf16>
    %c0_1 = arith.constant 0 : index
    %c0_2 = arith.constant 0 : index
    %1 = vector.load %arg2[%c0_1, %c0_2] : memref<1152x512xbf16, #tpu.memory_space<vmem>>, vector<1152x512xbf16>
    %cst = arith.constant dense<0.000000e+00> : vector<8x512xf32>
    %2 = tpu.matmul %0, %1, %cst {dimension_numbers = #tpu.dot_dimension_numbers<[1], [0], [0], [1], [0, 0, 1, 1], [], []>} : vector<8x1152xbf16>, vector<1152x512xbf16>, vector<8x512xf32> -> vector<8x512xf32>
    %c0_3 = arith.constant 0 : index
    %c0_4 = arith.constant 0 : index
    %3 = vector.load %arg3[%c0_3, %c0_4] : memref<1x512xf32, #tpu.memory_space<vmem>>, vector<1x512xf32>
    %4 = vector.broadcast %3 : vector<1x512xf32> to vector<8x512xf32>
    %5 = arith.addf %2, %4 : vector<8x512xf32>
    %cst_5 = arith.constant 0.000000e+00 : f32
    %6 = vector.broadcast %cst_5 : f32 to vector<8x512xf32>
    %7 = arith.maximumf %5, %6 : vector<8x512xf32>
    %8 = arith.truncf %7 : vector<8x512xf32> to vector<8x512xbf16>
    %c0_6 = arith.constant 0 : index
    %c0_7 = arith.constant 0 : index
    %9 = vector.load %arg4[%c0_6, %c0_7] : memref<512x128xbf16, #tpu.memory_space<vmem>>, vector<512x128xbf16>
    %cst_8 = arith.constant dense<0.000000e+00> : vector<8x128xf32>
    %10 = tpu.matmul %8, %9, %cst_8 {dimension_numbers = #tpu.dot_dimension_numbers<[1], [0], [0], [1], [0, 0, 1, 1], [], []>} : vector<8x512xbf16>, vector<512x128xbf16>, vector<8x128xf32> -> vector<8x128xf32>
    %c0_9 = arith.constant 0 : index
    %c0_10 = arith.constant 0 : index
    %11 = vector.load %arg5[%c0_9, %c0_10] : memref<1x128xf32, #tpu.memory_space<vmem>>, vector<1x128xf32>
    %12 = vector.broadcast %11 : vector<1x128xf32> to vector<8x128xf32>
    %13 = arith.addf %10, %12 : vector<8x128xf32>
    %c0_11 = arith.constant 0 : index
    %c0_12 = arith.constant 0 : index
    %14 = vector.load %arg6[%c0_11, %c0_12] : memref<8x128xf32, #tpu.memory_space<vmem>>, vector<8x128xf32>
    tpu.vector_store %arg6[%c0_11, %c0_12], %13 {strides = array<i32>} : memref<8x128xf32, #tpu.memory_space<vmem>>, vector<8x128xf32>,
    return
  }
  func.func @transform_0(%arg0: i32) -> (i32, i32) {
    %c0_i32 = arith.constant 0 : i32
    %c0_i32_0 = arith.constant 0 : i32
    return %arg0, %c0_i32 : i32, i32
  }
  func.func @transform_1(%arg0: i32) -> (i32, i32) {
    %c0_i32 = arith.constant 0 : i32
    %c0_i32_0 = arith.constant 0 : i32
    %c0_i32_1 = arith.constant 0 : i32
    return %c0_i32, %c0_i32_0 : i32, i32
  }
  func.func @transform_2(%arg0: i32) -> (i32, i32) {
    %c0_i32 = arith.constant 0 : i32
    %c0_i32_0 = arith.constant 0 : i32
    %c0_i32_1 = arith.constant 0 : i32
    return %c0_i32, %c0_i32_0 : i32, i32
  }
  func.func @transform_3(%arg0: i32) -> (i32, i32) {
    %c0_i32 = arith.constant 0 : i32
    %c0_i32_0 = arith.constant 0 : i32
    %c0_i32_1 = arith.constant 0 : i32
    return %c0_i32, %c0_i32_0 : i32, i32
  }
  func.func @transform_4(%arg0: i32) -> (i32, i32) {
    %c0_i32 = arith.constant 0 : i32
    %c0_i32_0 = arith.constant 0 : i32
    %c0_i32_1 = arith.constant 0 : i32
    return %c0_i32, %c0_i32_0 : i32, i32
  }
  func.func @transform_5(%arg0: i32) -> (i32, i32) {
    %c0_i32 = arith.constant 0 : i32
    %c0_i32_0 = arith.constant 0 : i32
    return %arg0, %c0_i32 : i32, i32
  }
}

module attributes {stable_mosaic.version = 11 : i64} {
  func.func @encoder_kernel(%arg0: i32, %arg1: memref<8x1152xbf16, #tpu.memory_space<vmem>>, %arg2: memref<1152x512xbf16, #tpu.memory_space<vmem>>, %arg3: memref<1x512xf32, #tpu.memory_space<vmem>>, %arg4: memref<512x128xbf16, #tpu.memory_space<vmem>>, %arg5: memref<1x128xf32, #tpu.memory_space<vmem>>, %arg6: memref<8x128xf32, #tpu.memory_space<vmem>>) attributes {dimension_semantics = [#tpu.dimension_semantics<parallel>], iteration_bounds = array<i64: 1>, scalar_prefetch = 0 : i64, scratch_operands = 0 : i64, tpu.core_type = #tpu.core_type<tc>, window_params = [{transform_indices = @transform_0, window_bounds = array<i64: 8, 1152>}, {pipeline_mode = #tpu.pipeline_mode<synchronous>, transform_indices = @transform_1, window_bounds = array<i64: 1152, 512>}, {pipeline_mode = #tpu.pipeline_mode<synchronous>, transform_indices = @transform_2, window_bounds = array<i64: 1, 512>}, {pipeline_mode = #tpu.pipeline_mode<synchronous>, transform_indices = @transform_3, window_bounds = array<i64: 512, 128>}, {pipeline_mode = #tpu.pipeline_mode<synchronous>, transform_indices = @transform_4, window_bounds = array<i64: 1, 128>}, {transform_indices = @transform_5, window_bounds = array<i64: 8, 128>}]} {
    %c0 = arith.constant 0 : index
    %c0_0 = arith.constant 0 : index
    %0 = vector.load %arg1[%c0, %c0_0] : memref<8x1152xbf16, #tpu.memory_space<vmem>>, vector<8x1152xbf16>
    %c0_1 = arith.constant 0 : index
    %c0_2 = arith.constant 0 : index
    %1 = vector.load %arg2[%c0_1, %c0_2] : memref<1152x512xbf16, #tpu.memory_space<vmem>>, vector<1152x512xbf16>
    %cst = arith.constant dense<0.000000e+00> : vector<8x512xf32>
    %2 = tpu.matmul %0, %1, %cst {dimension_numbers = #tpu.dot_dimension_numbers<[1], [0], [0], [1], [0, 0, 1, 1], [], []>} : vector<8x1152xbf16>, vector<1152x512xbf16>, vector<8x512xf32> -> vector<8x512xf32>
    %c0_3 = arith.constant 0 : index
    %c0_4 = arith.constant 0 : index
    %3 = vector.load %arg3[%c0_3, %c0_4] : memref<1x512xf32, #tpu.memory_space<vmem>>, vector<1x512xf32>
    %4 = vector.broadcast %3 : vector<1x512xf32> to vector<8x512xf32>
    %5 = arith.addf %2, %4 : vector<8x512xf32>
    %cst_5 = arith.constant 0.000000e+00 : f32
    %6 = vector.broadcast %cst_5 : f32 to vector<8x512xf32>
    %7 = arith.maximumf %5, %6 : vector<8x512xf32>
    %8 = arith.truncf %7 : vector<8x512xf32> to vector<8x512xbf16>
    %c0_6 = arith.constant 0 : index
    %c0_7 = arith.constant 0 : index
    %9 = vector.load %arg4[%c0_6, %c0_7] : memref<512x128xbf16, #tpu.memory_space<vmem>>, vector<512x128xbf16>
    %cst_8 = arith.constant dense<0.000000e+00> : vector<8x128xf32>
    %10 = tpu.matmul %8, %9, %cst_8 {dimension_numbers = #tpu.dot_dimension_numbers<[1], [0], [0], [1], [0, 0, 1, 1], [], []>} : vector<8x512xbf16>, vector<512x128xbf16>, vector<8x128xf32> -> vector<8x128xf32>
    %c0_9 = arith.constant 0 : index
    %c0_10 = arith.constant 0 : index
    %11 = vector.load %arg5[%c0_9, %c0_10] : memref<1x128xf32, #tpu.memory_space<vmem>>, vector<1x128xf32>
    %12 = vector.broadcast %11 : vector<1x128xf32> to vector<8x128xf32>
    %13 = arith.addf %10, %12 : vector<8x128xf32>
    %c0_11 = arith.constant 0 : index
    %c0_12 = arith.constant 0 : index
    %14 = vector.load %arg6[%c0_11, %c0_12] : memref<8x128xf32, #tpu.memory_space<vmem>>, vector<8x128xf32>
    tpu.vector_store %arg6[%c0_11, %c0_12], %13 {strides = array<i32>} : memref<8x128xf32, #tpu.memory_space<vmem>>, vector<8x128xf32>,
    return
  }
  func.func @transform_0(%arg0: i32) -> (i32, i32) {
    %c0_i32 = arith.constant 0 : i32
    %c0_i32_0 = arith.constant 0 : i32
    return %arg0, %c0_i32 : i32, i32
  }
  func.func @transform_1(%arg0: i32) -> (i32, i32) {
    %c0_i32 = arith.constant 0 : i32
    %c0_i32_0 = arith.constant 0 : i32
    %c0_i32_1 = arith.constant 0 : i32
    return %c0_i32, %c0_i32_0 : i32, i32
  }
  func.func @transform_2(%arg0: i32) -> (i32, i32) {
    %c0_i32 = arith.constant 0 : i32
    %c0_i32_0 = arith.constant 0 : i32
    %c0_i32_1 = arith.constant 0 : i32
    return %c0_i32, %c0_i32_0 : i32, i32
  }
  func.func @transform_3(%arg0: i32) -> (i32, i32) {
    %c0_i32 = arith.constant 0 : i32
    %c0_i32_0 = arith.constant 0 : i32
    %c0_i32_1 = arith.constant 0 : i32
    return %c0_i32, %c0_i32_0 : i32, i32
  }
  func.func @transform_4(%arg0: i32) -> (i32, i32) {
    %c0_i32 = arith.constant 0 : i32
    %c0_i32_0 = arith.constant 0 : i32
    %c0_i32_1 = arith.constant 0 : i32
    return %c0_i32, %c0_i32_0 : i32, i32
  }
  func.func @transform_5(%arg0: i32) -> (i32, i32) {
    %c0_i32 = arith.constant 0 : i32
    %c0_i32_0 = arith.constant 0 : i32
    return %arg0, %c0_i32 : i32, i32
  }
}

</mosaic_0001>

<llo_original>
// kernel: tpu_custom_call.1
$region0: #{tpu_custom_call.1}
  #allocation0 [shape = 'u32[]', space=smem, size = 0x4, offset = 0x4, fixed_abs, tag = 'smem constant byte address 0x4 - core index']
  #allocation1 [shape = 'u32[144,128]{1,0:T(1,128)}', space=vmem, size = 0x12000, scoped, tag = 'internal scratch']
  %s0 = inlined_call_operand.hbm [shape: bf16[8,1152], index: 0, kind: input, shape index: {}]
  %s1 = inlined_call_operand.hbm [shape: bf16[1152,512], index: 1, kind: input, shape index: {}]
  %s2 = inlined_call_operand.hbm [shape: f32[1,512], index: 2, kind: input, shape index: {}]
  %s3 = inlined_call_operand.hbm [shape: bf16[512,128], index: 3, kind: input, shape index: {}]
  %s4 = inlined_call_operand.hbm [shape: f32[1,128], index: 4, kind: input, shape index: {}]
  %s5 = inlined_call_operand.hbm [shape: f32[8,128], index: 5, kind: output, shape index: {}]
  %s6 = sld [smem:[#allocation0]]
  $region50: #{tpu_custom_call.1} parent=0
    _
  %s8 = ssub.s32 1, %s6
  %s9 = scalar_select 0, %s8, %s6
  $region1: #{tpu_custom_call.1} parent=0
    #allocation2 [shape = 'u8[18432]{0}', space=vmem, size = 0x4800, scoped, tag = 'input window, operand 0, single buffered']
    #allocation3 [shape = 's32[1]{0}', space=sflag, size = 0x4, scoped, tag = 'scoped memory for tpu_custom_call.1']
    #allocation4 [shape = 's32[1]{0}', space=sflag, size = 0x4, scoped, tag = 'scoped memory for tpu_custom_call.1']
    #allocation5 [shape = 'u8[1179648]{0}', space=vmem, size = 0x120000, scoped, tag = 'input window, operand 1, single buffered']
    #allocation6 [shape = 's32[1]{0}', space=sflag, size = 0x4, scoped, tag = 'scoped memory for tpu_custom_call.1']
    #allocation7 [shape = 'u8[2048]{0}', space=vmem, size = 0x800, scoped, tag = 'input window, operand 2, single buffered']
    #allocation8 [shape = 'u8[131072]{0}', space=vmem, size = 0x20000, scoped, tag = 'input window, operand 3, single buffered']
    #allocation9 [shape = 's32[1]{0}', space=sflag, size = 0x4, scoped, tag = 'scoped memory for tpu_custom_call.1']
    #allocation10 [shape = 'u8[512]{0}', space=vmem, size = 0x400, scoped, tag = 'input window, operand 4, single buffered']
    #allocation11 [shape = 'u8[4096]{0}', space=vmem, size = 0x1000, scoped, tag = 'output window, operand 0, single buffered']
    %10 = vsyncpa [#allocation3], 0
    %11 = vsyncpa [#allocation6], 0
    %12 = vsyncpa [#allocation9], 0
    %13 = vsyncpa [#allocation4], 0
    // Predicated region
    $region2: #{tpu_custom_call.1} parent=1 // pred_check
      _
    $region3: #{tpu_custom_call.1} parent=1 // pred_check_branch
      %15 = sbr.rel (0) target = $region5
    $region4: #{tpu_custom_call.1} parent=1 // pred_region
      %s17 = ssub.s32 576, 576
      %18 = vsyncadd [#allocation3], %s17
      %s20 = sshll.u32 [#allocation2], 4
      %s21 = int_to_ptr.vmem [resolvable:$true] %s20
      %23 = dma.hbm_to_vmem [thread:$0]  %s0, 576, %s21, [#allocation3]
    $region5: #{tpu_custom_call.1} parent=1 // pred_fallthru
      _
    // Predicated region
    $region6: #{tpu_custom_call.1} parent=1 // pred_check
      _
    $region7: #{tpu_custom_call.1} parent=1 // pred_check_branch
      %25 = sbr.rel (0) target = $region9
    $region8: #{tpu_custom_call.1} parent=1 // pred_region
      %s27 = ssub.s32 36864, 36864
      %28 = vsyncadd [#allocation6], %s27
      %s29 = sshll.u32 [#allocation5], 4
      %s30 = int_to_ptr.vmem [resolvable:$true] %s29
      %35 = dma.hbm_to_vmem [thread:$0]  %s1, 36864, %s30, [#allocation6], 256, 256, 16
    $region9: #{tpu_custom_call.1} parent=1 // pred_fallthru
      _
    // Predicated region
    $region10: #{tpu_custom_call.1} parent=1 // pred_check
      _
    $region11: #{tpu_custom_call.1} parent=1 // pred_check_branch
      %37 = sbr.rel (0) target = $region13
    $region12: #{tpu_custom_call.1} parent=1 // pred_region
      %s39 = ssub.s32 64, 64
      %40 = vsyncadd [#allocation6], %s39
      %s42 = sshll.u32 [#allocation7], 4
      %s43 = int_to_ptr.vmem [resolvable:$true] %s42
      %45 = dma.hbm_to_vmem [thread:$0]  %s2, 64, %s43, [#allocation6]
    $region13: #{tpu_custom_call.1} parent=1 // pred_fallthru
      _
    // Predicated region
    $region14: #{tpu_custom_call.1} parent=1 // pred_check
      _
    $region15: #{tpu_custom_call.1} parent=1 // pred_check_branch
      %47 = sbr.rel (0) target = $region17
    $region16: #{tpu_custom_call.1} parent=1 // pred_region
      %s49 = ssub.s32 4096, 4096
      %50 = vsyncadd [#allocation9], %s49
      %s51 = sshll.u32 [#allocation8], 4
      %s52 = int_to_ptr.vmem [resolvable:$true] %s51
      %57 = dma.hbm_to_vmem [thread:$0]  %s3, 4096, %s52, [#allocation9], 64, 64, 4
    $region17: #{tpu_custom_call.1} parent=1 // pred_fallthru
      _
    // Predicated region
    $region18: #{tpu_custom_call.1} parent=1 // pred_check
      _
    $region19: #{tpu_custom_call.1} parent=1 // pred_check_branch
      %59 = sbr.rel (0) target = $region21
    $region20: #{tpu_custom_call.1} parent=1 // pred_region
      %s61 = ssub.s32 16, 16
      %62 = vsyncadd [#allocation9], %s61
      %s64 = sshll.u32 [#allocation10], 4
      %s65 = int_to_ptr.vmem [resolvable:$true] %s64
      %67 = dma.hbm_to_vmem [thread:$0]  %s4, 16, %s65, [#allocation9]
    $region21: #{tpu_custom_call.1} parent=1 // pred_fallthru
      _
    // Predicated region
    $region22: #{tpu_custom_call.1} parent=1 // pred_check
      _
    $region23: #{tpu_custom_call.1} parent=1 // pred_check_branch
      %69 = sbr.rel (0) target = $region25
    $region24: #{tpu_custom_call.1} parent=1 // pred_region
      %70 = dma.done [#allocation3], 576
    $region25: #{tpu_custom_call.1} parent=1 // pred_fallthru
      _
    // Predicated region
    $region26: #{tpu_custom_call.1} parent=1 // pred_check
      _
    $region27: #{tpu_custom_call.1} parent=1 // pred_check_branch
      %72 = sbr.rel (0) target = $region29
    $region28: #{tpu_custom_call.1} parent=1 // pred_region
      %73 = dma.done [#allocation6], 36864
    $region29: #{tpu_custom_call.1} parent=1 // pred_fallthru
      _
    // Predicated region
    $region30: #{tpu_custom_call.1} parent=1 // pred_check
      _
    $region31: #{tpu_custom_call.1} parent=1 // pred_check_branch
      %75 = sbr.rel (0) target = $region33
    $region32: #{tpu_custom_call.1} parent=1 // pred_region
      %76 = dma.done [#allocation6], 64
    $region33: #{tpu_custom_call.1} parent=1 // pred_fallthru
      _
    // Predicated region
    $region34: #{tpu_custom_call.1} parent=1 // pred_check
      _
    $region35: #{tpu_custom_call.1} parent=1 // pred_check_branch
      %78 = sbr.rel (0) target = $region37
    $region36: #{tpu_custom_call.1} parent=1 // pred_region
      %79 = dma.done [#allocation9], 4096
    $region37: #{tpu_custom_call.1} parent=1 // pred_fallthru
      _
    // Predicated region
    $region38: #{tpu_custom_call.1} parent=1 // pred_check
      _
    $region39: #{tpu_custom_call.1} parent=1 // pred_check_branch
      %81 = sbr.rel (0) target = $region41
    $region40: #{tpu_custom_call.1} parent=1 // pred_region
      %82 = dma.done [#allocation9], 16
    $region41: #{tpu_custom_call.1} parent=1 // pred_fallthru
      _
    %v84 = vld [vmem:[#allocation2] sm:$0xff]
    %v85 = vld [vmem:[#allocation2 + $0x8] sm:$0xff]
    %v86 = vld [vmem:[#allocation2 + $0x10] sm:$0xff]
    %v87 = vld [vmem:[#allocation2 + $0x18] sm:$0xff]
    %v88 = vld [vmem:[#allocation2 + $0x20] sm:$0xf]
    %v89 = vld [vmem:[#allocation5] sm:$0xff]
    %v90 = vld [vmem:[#allocation5 + $0x8] sm:$0xff]
    %v91 = vld [vmem:[#allocation5 + $0x10] sm:$0xff]
    %v92 = vld [vmem:[#allocation5 + $0x18] sm:$0xff]
    %v93 = vld [vmem:[#allocation5 + $0x20] sm:$0xff]
    %v94 = vld [vmem:[#allocation5 + $0x28] sm:$0xff]
    %v95 = vld [vmem:[#allocation5 + $0x30] sm:$0xff]
    %v96 = vld [vmem:[#allocation5 + $0x38] sm:$0xff]
    %v97 = vld [vmem:[#allocation5 + $0x40] sm:$0xff]
    %v98 = vld [vmem:[#allocation5 + $0x48] sm:$0xff]
    %v99 = vld [vmem:[#allocation5 + $0x50] sm:$0xff]
    %v100 = vld [vmem:[#allocation5 + $0x58] sm:$0xff]
    %v101 = vld [vmem:[#allocation5 + $0x60] sm:$0xff]
    %v102 = vld [vmem:[#allocation5 + $0x68] sm:$0xff]
    %v103 = vld [vmem:[#allocation5 + $0x70] sm:$0xff]
    %v104 = vld [vmem:[#allocation5 + $0x78] sm:$0xff]
    %v105 = vld [vmem:[#allocation5 + $0x80] sm:$0xff]
    %v106 = vld [vmem:[#allocation5 + $0x88] sm:$0xff]
    %v107 = vld [vmem:[#allocation5 + $0x90] sm:$0xff]
    %v108 = vld [vmem:[#allocation5 + $0x98] sm:$0xff]
    %v109 = vld [vmem:[#allocation5 + $0xa0] sm:$0xff]
    %v110 = vld [vmem:[#allocation5 + $0xa8] sm:$0xff]
    %v111 = vld [vmem:[#allocation5 + $0xb0] sm:$0xff]
    %v112 = vld [vmem:[#allocation5 + $0xb8] sm:$0xff]
    %v113 = vld [vmem:[#allocation5 + $0xc0] sm:$0xff]
    %v114 = vld [vmem:[#allocation5 + $0xc8] sm:$0xff]
    %v115 = vld [vmem:[#allocation5 + $0xd0] sm:$0xff]
    %v116 = vld [vmem:[#allocation5 + $0xd8] sm:$0xff]
    %v117 = vld [vmem:[#allocation5 + $0xe0] sm:$0xff]
    %v118 = vld [vmem:[#allocation5 + $0xe8] sm:$0xff]
    %v119 = vld [vmem:[#allocation5 + $0xf0] sm:$0xff]
    %v120 = vld [vmem:[#allocation5 + $0xf8] sm:$0xff]
    %v121 = vld [vmem:[#allocation5 + $0x100] sm:$0xff]
    %v122 = vld [vmem:[#allocation5 + $0x108] sm:$0xff]
    %v123 = vld [vmem:[#allocation5 + $0x110] sm:$0xff]
    %v124 = vld [vmem:[#allocation5 + $0x118] sm:$0xff]
    %v125 = vld [vmem:[#allocation5 + $0x120] sm:$0xff]
    %v126 = vld [vmem:[#allocation5 + $0x128] sm:$0xff]
    %v127 = vld [vmem:[#allocation5 + $0x130] sm:$0xff]
    %v128 = vld [vmem:[#allocation5 + $0x138] sm:$0xff]
    %v129 = vld [vmem:[#allocation5 + $0x140] sm:$0xff]
    %v130 = vld [vmem:[#allocation5 + $0x148] sm:$0xff]
    %v131 = vld [vmem:[#allocation5 + $0x150] sm:$0xff]
    %v132 = vld [vmem:[#allocation5 + $0x158] sm:$0xff]
    %v133 = vld [vmem:[#allocation5 + $0x160] sm:$0xff]
    %v134 = vld [vmem:[#allocation5 + $0x168] sm:$0xff]
    %v135 = vld [vmem:[#allocation5 + $0x170] sm:$0xff]
    %v136 = vld [vmem:[#allocation5 + $0x178] sm:$0xff]
    %v137 = vld [vmem:[#allocation5 + $0x180] sm:$0xff]
    %v138 = vld [vmem:[#allocation5 + $0x188] sm:$0xff]
    %v139 = vld [vmem:[#allocation5 + $0x190] sm:$0xff]
    %v140 = vld [vmem:[#allocation5 + $0x198] sm:$0xff]
    %v141 = vld [vmem:[#allocation5 + $0x1a0] sm:$0xff]
    %v142 = vld [vmem:[#allocation5 + $0x1a8] sm:$0xff]
    %v143 = vld [vmem:[#allocation5 + $0x1b0] sm:$0xff]
    %v144 = vld [vmem:[#allocation5 + $0x1b8] sm:$0xff]
    %v145 = vld [vmem:[#allocation5 + $0x1c0] sm:$0xff]
    %v146 = vld [vmem:[#allocation5 + $0x1c8] sm:$0xff]
    %v147 = vld [vmem:[#allocation5 + $0x1d0] sm:$0xff]
    %v148 = vld [vmem:[#allocation5 + $0x1d8] sm:$0xff]
    %v149 = vld [vmem:[#allocation5 + $0x1e0] sm:$0xff]
    %v150 = vld [vmem:[#allocation5 + $0x1e8] sm:$0xff]
    %v151 = vld [vmem:[#allocation5 + $0x1f0] sm:$0xff]
    %v152 = vld [vmem:[#allocation5 + $0x1f8] sm:$0xff]
    %v153 = vld [vmem:[#allocation5 + $0x200] sm:$0xff]
    %v154 = vld [vmem:[#allocation5 + $0x208] sm:$0xff]
    %v155 = vld [vmem:[#allocation5 + $0x210] sm:$0xff]
    %v156 = vld [vmem:[#allocation5 + $0x218] sm:$0xff]
    %v157 = vld [vmem:[#allocation5 + $0x220] sm:$0xff]
    %v158 = vld [vmem:[#allocation5 + $0x228] sm:$0xff]
    %v159 = vld [vmem:[#allocation5 + $0x230] sm:$0xff]
    %v160 = vld [vmem:[#allocation5 + $0x238] sm:$0xff]
    %v161 = vld [vmem:[#allocation5 + $0x240] sm:$0xff]
    %v162 = vld [vmem:[#allocation5 + $0x248] sm:$0xff]
    %v163 = vld [vmem:[#allocation5 + $0x250] sm:$0xff]
    %v164 = vld [vmem:[#allocation5 + $0x258] sm:$0xff]
    %v165 = vld [vmem:[#allocation5 + $0x260] sm:$0xff]
    %v166 = vld [vmem:[#allocation5 + $0x268] sm:$0xff]
    %v167 = vld [vmem:[#allocation5 + $0x270] sm:$0xff]
    %v168 = vld [vmem:[#allocation5 + $0x278] sm:$0xff]
    %v169 = vld [vmem:[#allocation5 + $0x280] sm:$0xff]
    %v170 = vld [vmem:[#allocation5 + $0x288] sm:$0xff]
    %v171 = vld [vmem:[#allocation5 + $0x290] sm:$0xff]
    %v172 = vld [vmem:[#allocation5 + $0x298] sm:$0xff]
    %v173 = vld [vmem:[#allocation5 + $0x2a0] sm:$0xff]
    %v174 = vld [vmem:[#allocation5 + $0x2a8] sm:$0xff]
    %v175 = vld [vmem:[#allocation5 + $0x2b0] sm:$0xff]
    %v176 = vld [vmem:[#allocation5 + $0x2b8] sm:$0xff]
    %v177 = vld [vmem:[#allocation5 + $0x2c0] sm:$0xff]
    %v178 = vld [vmem:[#allocation5 + $0x2c8] sm:$0xff]
    %v179 = vld [vmem:[#allocation5 + $0x2d0] sm:$0xff]
    %v180 = vld [vmem:[#allocation5 + $0x2d8] sm:$0xff]
    %v181 = vld [vmem:[#allocation5 + $0x2e0] sm:$0xff]
    %v182 = vld [vmem:[#allocation5 + $0x2e8] sm:$0xff]
    %v183 = vld [vmem:[#allocation5 + $0x2f0] sm:$0xff]
    %v184 = vld [vmem:[#allocation5 + $0x2f8] sm:$0xff]
    %v185 = vld [vmem:[#allocation5 + $0x300] sm:$0xff]
    %v186 = vld [vmem:[#allocation5 + $0x308] sm:$0xff]
    %v187 = vld [vmem:[#allocation5 + $0x310] sm:$0xff]
    %v188 = vld [vmem:[#allocation5 + $0x318] sm:$0xff]
    %v189 = vld [vmem:[#allocation5 + $0x320] sm:$0xff]
    %v190 = vld [vmem:[#allocation5 + $0x328] sm:$0xff]
    %v191 = vld [vmem:[#allocation5 + $0x330] sm:$0xff]
    %v192 = vld [vmem:[#allocation5 + $0x338] sm:$0xff]
    %v193 = vld [vmem:[#allocation5 + $0x340] sm:$0xff]
    %v194 = vld [vmem:[#allocation5 + $0x348] sm:$0xff]
    %v195 = vld [vmem:[#allocation5 + $0x350] sm:$0xff]
    %v196 = vld [vmem:[#allocation5 + $0x358] sm:$0xff]
    %v197 = vld [vmem:[#allocation5 + $0x360] sm:$0xff]
    %v198 = vld [vmem:[#allocation5 + $0x368] sm:$0xff]
    %v199 = vld [vmem:[#allocation5 + $0x370] sm:$0xff]
    %v200 = vld [vmem:[#allocation5 + $0x378] sm:$0xff]
    %v201 = vld [vmem:[#allocation5 + $0x380] sm:$0xff]
    %v202 = vld [vmem:[#allocation5 + $0x388] sm:$0xff]
    %v203 = vld [vmem:[#allocation5 + $0x390] sm:$0xff]
    %v204 = vld [vmem:[#allocation5 + $0x398] sm:$0xff]
    %v205 = vld [vmem:[#allocation5 + $0x3a0] sm:$0xff]
    %v206 = vld [vmem:[#allocation5 + $0x3a8] sm:$0xff]
    %v207 = vld [vmem:[#allocation5 + $0x3b0] sm:$0xff]
    %v208 = vld [vmem:[#allocation5 + $0x3b8] sm:$0xff]
    %v209 = vld [vmem:[#allocation5 + $0x3c0] sm:$0xff]
    %v210 = vld [vmem:[#allocation5 + $0x3c8] sm:$0xff]
    %v211 = vld [vmem:[#allocation5 + $0x3d0] sm:$0xff]
    %v212 = vld [vmem:[#allocation5 + $0x3d8] sm:$0xff]
    %v213 = vld [vmem:[#allocation5 + $0x3e0] sm:$0xff]
    %v214 = vld [vmem:[#allocation5 + $0x3e8] sm:$0xff]
    %v215 = vld [vmem:[#allocation5 + $0x3f0] sm:$0xff]
    %v216 = vld [vmem:[#allocation5 + $0x3f8] sm:$0xff]
    %v217 = vld [vmem:[#allocation5 + $0x400] sm:$0xff]
    %v218 = vld [vmem:[#allocation5 + $0x408] sm:$0xff]
    %v219 = vld [vmem:[#allocation5 + $0x410] sm:$0xff]
    %v220 = vld [vmem:[#allocation5 + $0x418] sm:$0xff]
    %v221 = vld [vmem:[#allocation5 + $0x420] sm:$0xff]
    %v222 = vld [vmem:[#allocation5 + $0x428] sm:$0xff]
    %v223 = vld [vmem:[#allocation5 + $0x430] sm:$0xff]
    %v224 = vld [vmem:[#allocation5 + $0x438] sm:$0xff]
    %v225 = vld [vmem:[#allocation5 + $0x440] sm:$0xff]
    %v226 = vld [vmem:[#allocation5 + $0x448] sm:$0xff]
    %v227 = vld [vmem:[#allocation5 + $0x450] sm:$0xff]
    %v228 = vld [vmem:[#allocation5 + $0x458] sm:$0xff]
    %v229 = vld [vmem:[#allocation5 + $0x460] sm:$0xff]
    %v230 = vld [vmem:[#allocation5 + $0x468] sm:$0xff]
    %v231 = vld [vmem:[#allocation5 + $0x470] sm:$0xff]
    %v232 = vld [vmem:[#allocation5 + $0x478] sm:$0xff]
    %v233 = vld [vmem:[#allocation5 + $0x480] sm:$0xff]
    %v234 = vld [vmem:[#allocation5 + $0x488] sm:$0xff]
    %v235 = vld [vmem:[#allocation5 + $0x490] sm:$0xff]
    %v236 = vld [vmem:[#allocation5 + $0x498] sm:$0xff]
    %v237 = vld [vmem:[#allocation5 + $0x4a0] sm:$0xff]
    %v238 = vld [vmem:[#allocation5 + $0x4a8] sm:$0xff]
    %v239 = vld [vmem:[#allocation5 + $0x4b0] sm:$0xff]
    %v240 = vld [vmem:[#allocation5 + $0x4b8] sm:$0xff]
    %v241 = vld [vmem:[#allocation5 + $0x4c0] sm:$0xff]
    %v242 = vld [vmem:[#allocation5 + $0x4c8] sm:$0xff]
    %v243 = vld [vmem:[#allocation5 + $0x4d0] sm:$0xff]
    %v244 = vld [vmem:[#allocation5 + $0x4d8] sm:$0xff]
    %v245 = vld [vmem:[#allocation5 + $0x4e0] sm:$0xff]
    %v246 = vld [vmem:[#allocation5 + $0x4e8] sm:$0xff]
    %v247 = vld [vmem:[#allocation5 + $0x4f0] sm:$0xff]
    %v248 = vld [vmem:[#allocation5 + $0x4f8] sm:$0xff]
    %v249 = vld [vmem:[#allocation5 + $0x500] sm:$0xff]
    %v250 = vld [vmem:[#allocation5 + $0x508] sm:$0xff]
    %v251 = vld [vmem:[#allocation5 + $0x510] sm:$0xff]
    %v252 = vld [vmem:[#allocation5 + $0x518] sm:$0xff]
    %v253 = vld [vmem:[#allocation5 + $0x520] sm:$0xff]
    %v254 = vld [vmem:[#allocation5 + $0x528] sm:$0xff]
    %v255 = vld [vmem:[#allocation5 + $0x530] sm:$0xff]
    %v256 = vld [vmem:[#allocation5 + $0x538] sm:$0xff]
    %v257 = vld [vmem:[#allocation5 + $0x540] sm:$0xff]
    %v258 = vld [vmem:[#allocation5 + $0x548] sm:$0xff]
    %v259 = vld [vmem:[#allocation5 + $0x550] sm:$0xff]
    %v260 = vld [vmem:[#allocation5 + $0x558] sm:$0xff]
    %v261 = vld [vmem:[#allocation5 + $0x560] sm:$0xff]
    %v262 = vld [vmem:[#allocation5 + $0x568] sm:$0xff]
    %v263 = vld [vmem:[#allocation5 + $0x570] sm:$0xff]
    %v264 = vld [vmem:[#allocation5 + $0x578] sm:$0xff]
    %v265 = vld [vmem:[#allocation5 + $0x580] sm:$0xff]
    %v266 = vld [vmem:[#allocation5 + $0x588] sm:$0xff]
    %v267 = vld [vmem:[#allocation5 + $0x590] sm:$0xff]
    %v268 = vld [vmem:[#allocation5 + $0x598] sm:$0xff]
    %v269 = vld [vmem:[#allocation5 + $0x5a0] sm:$0xff]
    %v270 = vld [vmem:[#allocation5 + $0x5a8] sm:$0xff]
    %v271 = vld [vmem:[#allocation5 + $0x5b0] sm:$0xff]
    %v272 = vld [vmem:[#allocation5 + $0x5b8] sm:$0xff]
    %v273 = vld [vmem:[#allocation5 + $0x5c0] sm:$0xff]
    %v274 = vld [vmem:[#allocation5 + $0x5c8] sm:$0xff]
    %v275 = vld [vmem:[#allocation5 + $0x5d0] sm:$0xff]
    %v276 = vld [vmem:[#allocation5 + $0x5d8] sm:$0xff]
    %v277 = vld [vmem:[#allocation5 + $0x5e0] sm:$0xff]
    %v278 = vld [vmem:[#allocation5 + $0x5e8] sm:$0xff]
    %v279 = vld [vmem:[#allocation5 + $0x5f0] sm:$0xff]
    %v280 = vld [vmem:[#allocation5 + $0x5f8] sm:$0xff]
    %v281 = vld [vmem:[#allocation5 + $0x600] sm:$0xff]
    %v282 = vld [vmem:[#allocation5 + $0x608] sm:$0xff]
    %v283 = vld [vmem:[#allocation5 + $0x610] sm:$0xff]
    %v284 = vld [vmem:[#allocation5 + $0x618] sm:$0xff]
    %v285 = vld [vmem:[#allocation5 + $0x620] sm:$0xff]
    %v286 = vld [vmem:[#allocation5 + $0x628] sm:$0xff]
    %v287 = vld [vmem:[#allocation5 + $0x630] sm:$0xff]
    %v288 = vld [vmem:[#allocation5 + $0x638] sm:$0xff]
    %v289 = vld [vmem:[#allocation5 + $0x640] sm:$0xff]
    %v290 = vld [vmem:[#allocation5 + $0x648] sm:$0xff]
    %v291 = vld [vmem:[#allocation5 + $0x650] sm:$0xff]
    %v292 = vld [vmem:[#allocation5 + $0x658] sm:$0xff]
    %v293 = vld [vmem:[#allocation5 + $0x660] sm:$0xff]
    %v294 = vld [vmem:[#allocation5 + $0x668] sm:$0xff]
    %v295 = vld [vmem:[#allocation5 + $0x670] sm:$0xff]
    %v296 = vld [vmem:[#allocation5 + $0x678] sm:$0xff]
    %v297 = vld [vmem:[#allocation5 + $0x680] sm:$0xff]
    %v298 = vld [vmem:[#allocation5 + $0x688] sm:$0xff]
    %v299 = vld [vmem:[#allocation5 + $0x690] sm:$0xff]
    %v300 = vld [vmem:[#allocation5 + $0x698] sm:$0xff]
    %v301 = vld [vmem:[#allocation5 + $0x6a0] sm:$0xff]
    %v302 = vld [vmem:[#allocation5 + $0x6a8] sm:$0xff]
    %v303 = vld [vmem:[#allocation5 + $0x6b0] sm:$0xff]
    %v304 = vld [vmem:[#allocation5 + $0x6b8] sm:$0xff]
    %v305 = vld [vmem:[#allocation5 + $0x6c0] sm:$0xff]
    %v306 = vld [vmem:[#allocation5 + $0x6c8] sm:$0xff]
    %v307 = vld [vmem:[#allocation5 + $0x6d0] sm:$0xff]
    %v308 = vld [vmem:[#allocation5 + $0x6d8] sm:$0xff]
    %v309 = vld [vmem:[#allocation5 + $0x6e0] sm:$0xff]
    %v310 = vld [vmem:[#allocation5 + $0x6e8] sm:$0xff]
    %v311 = vld [vmem:[#allocation5 + $0x6f0] sm:$0xff]
    %v312 = vld [vmem:[#allocation5 + $0x6f8] sm:$0xff]
    %v313 = vld [vmem:[#allocation5 + $0x700] sm:$0xff]
    %v314 = vld [vmem:[#allocation5 + $0x708] sm:$0xff]
    %v315 = vld [vmem:[#allocation5 + $0x710] sm:$0xff]
    %v316 = vld [vmem:[#allocation5 + $0x718] sm:$0xff]
    %v317 = vld [vmem:[#allocation5 + $0x720] sm:$0xff]
    %v318 = vld [vmem:[#allocation5 + $0x728] sm:$0xff]
    %v319 = vld [vmem:[#allocation5 + $0x730] sm:$0xff]
    %v320 = vld [vmem:[#allocation5 + $0x738] sm:$0xff]
    %v321 = vld [vmem:[#allocation5 + $0x740] sm:$0xff]
    %v322 = vld [vmem:[#allocation5 + $0x748] sm:$0xff]
    %v323 = vld [vmem:[#allocation5 + $0x750] sm:$0xff]
    %v324 = vld [vmem:[#allocation5 + $0x758] sm:$0xff]
    %v325 = vld [vmem:[#allocation5 + $0x760] sm:$0xff]
    %v326 = vld [vmem:[#allocation5 + $0x768] sm:$0xff]
    %v327 = vld [vmem:[#allocation5 + $0x770] sm:$0xff]
    %v328 = vld [vmem:[#allocation5 + $0x778] sm:$0xff]
    %v329 = vld [vmem:[#allocation5 + $0x780] sm:$0xff]
    %v330 = vld [vmem:[#allocation5 + $0x788] sm:$0xff]
    %v331 = vld [vmem:[#allocation5 + $0x790] sm:$0xff]
    %v332 = vld [vmem:[#allocation5 + $0x798] sm:$0xff]
    %v333 = vld [vmem:[#allocation5 + $0x7a0] sm:$0xff]
    %v334 = vld [vmem:[#allocation5 + $0x7a8] sm:$0xff]
    %v335 = vld [vmem:[#allocation5 + $0x7b0] sm:$0xff]
    %v336 = vld [vmem:[#allocation5 + $0x7b8] sm:$0xff]
    %v337 = vld [vmem:[#allocation5 + $0x7c0] sm:$0xff]
    %v338 = vld [vmem:[#allocation5 + $0x7c8] sm:$0xff]
    %v339 = vld [vmem:[#allocation5 + $0x7d0] sm:$0xff]
    %v340 = vld [vmem:[#allocation5 + $0x7d8] sm:$0xff]
    %v341 = vld [vmem:[#allocation5 + $0x7e0] sm:$0xff]
    %v342 = vld [vmem:[#allocation5 + $0x7e8] sm:$0xff]
    %v343 = vld [vmem:[#allocation5 + $0x7f0] sm:$0xff]
    %v344 = vld [vmem:[#allocation5 + $0x7f8] sm:$0xff]
    %v345 = vld [vmem:[#allocation5 + $0x800] sm:$0xff]
    %v346 = vld [vmem:[#allocation5 + $0x808] sm:$0xff]
    %v347 = vld [vmem:[#allocation5 + $0x810] sm:$0xff]
    %v348 = vld [vmem:[#allocation5 + $0x818] sm:$0xff]
    %v349 = vld [vmem:[#allocation5 + $0x820] sm:$0xff]
    %v350 = vld [vmem:[#allocation5 + $0x828] sm:$0xff]
    %v351 = vld [vmem:[#allocation5 + $0x830] sm:$0xff]
    %v352 = vld [vmem:[#allocation5 + $0x838] sm:$0xff]
    %v353 = vld [vmem:[#allocation5 + $0x840] sm:$0xff]
    %v354 = vld [vmem:[#allocation5 + $0x848] sm:$0xff]
    %v355 = vld [vmem:[#allocation5 + $0x850] sm:$0xff]
    %v356 = vld [vmem:[#allocation5 + $0x858] sm:$0xff]
    %v357 = vld [vmem:[#allocation5 + $0x860] sm:$0xff]
    %v358 = vld [vmem:[#allocation5 + $0x868] sm:$0xff]
    %v359 = vld [vmem:[#allocation5 + $0x870] sm:$0xff]
    %v360 = vld [vmem:[#allocation5 + $0x878] sm:$0xff]
    %v361 = vld [vmem:[#allocation5 + $0x880] sm:$0xff]
    %v362 = vld [vmem:[#allocation5 + $0x888] sm:$0xff]
    %v363 = vld [vmem:[#allocation5 + $0x890] sm:$0xff]
    %v364 = vld [vmem:[#allocation5 + $0x898] sm:$0xff]
    %v365 = vld [vmem:[#allocation5 + $0x8a0] sm:$0xff]
    %v366 = vld [vmem:[#allocation5 + $0x8a8] sm:$0xff]
    %v367 = vld [vmem:[#allocation5 + $0x8b0] sm:$0xff]
    %v368 = vld [vmem:[#allocation5 + $0x8b8] sm:$0xff]
    %v369 = vld [vmem:[#allocation5 + $0x8c0] sm:$0xff]
    %v370 = vld [vmem:[#allocation5 + $0x8c8] sm:$0xff]
    %v371 = vld [vmem:[#allocation5 + $0x8d0] sm:$0xff]
    %v372 = vld [vmem:[#allocation5 + $0x8d8] sm:$0xff]
    %v373 = vld [vmem:[#allocation5 + $0x8e0] sm:$0xff]
    %v374 = vld [vmem:[#allocation5 + $0x8e8] sm:$0xff]
    %v375 = vld [vmem:[#allocation5 + $0x8f0] sm:$0xff]
    %v376 = vld [vmem:[#allocation5 + $0x8f8] sm:$0xff]
    %v377 = vld [vmem:[#allocation7] sm:$0xf]
    %v379 = vlaneseq
    %v380 = vshrl.u32 %v379, 7
    %v381 = vsub.s32 0, %v380
    %v382 = vrot.slane %v377, %v381
    %v383 = vlaneseq
    %v384 = vshrl.u32 %v383, 7
    %v385 = vsub.s32 1, %v384
    %v386 = vrot.slane %v377, %v385
    %v387 = vlaneseq
    %v388 = vshrl.u32 %v387, 7
    %v389 = vsub.s32 2, %v388
    %v390 = vrot.slane %v377, %v389
    %v391 = vlaneseq
    %v392 = vshrl.u32 %v391, 7
    %v393 = vsub.s32 3, %v392
    %v394 = vrot.slane %v377, %v393
    %v404 = vunpack.c.l.b16 %v84
    %v405 = vunpack.c.h.b16 %v84
    %v406 = vunpack.c.l.b16 %v85
    %v407 = vunpack.c.h.b16 %v85
    %v408 = vunpack.c.l.b16 %v86
    %v409 = vunpack.c.h.b16 %v86
    %v410 = vunpack.c.l.b16 %v87
    %v411 = vunpack.c.h.b16 %v87
    %v412 = vunpack.c.l.b16 %v88
    %v413 = vpack.c.b16 %v404, %v404
    %v414 = vpack.c.b16 %v405, %v405
    %v415 = vpack.c.b16 %v406, %v406
    %v416 = vpack.c.b16 %v407, %v407
    %v417 = vpack.c.b16 %v408, %v408
    %v418 = vpack.c.b16 %v409, %v409
    %v419 = vpack.c.b16 %v410, %v410
    %v420 = vpack.c.b16 %v411, %v411
    %v421 = vpack.c.b16 %v412, %v412
    %v719 = vunpack.c.l.b16 %v89
    %v720 = vunpack.c.h.b16 %v89
    %v721 = vunpack.c.l.b16 %v90
    %v722 = vunpack.c.h.b16 %v90
    %v723 = vunpack.c.l.b16 %v91
    %v724 = vunpack.c.h.b16 %v91
    %v725 = vunpack.c.l.b16 %v92
    %v726 = vunpack.c.h.b16 %v92
    %v727 = vunpack.c.l.b16 %v93
    %v728 = vunpack.c.h.b16 %v93
    %v729 = vunpack.c.l.b16 %v94
    %v730 = vunpack.c.h.b16 %v94
    %v731 = vunpack.c.l.b16 %v95
    %v732 = vunpack.c.h.b16 %v95
    %v733 = vunpack.c.l.b16 %v96
    %v734 = vunpack.c.h.b16 %v96
    %v735 = vunpack.c.l.b16 %v97
    %v736 = vunpack.c.h.b16 %v97
    %v737 = vunpack.c.l.b16 %v98
    %v738 = vunpack.c.h.b16 %v98
    %v739 = vunpack.c.l.b16 %v99
    %v740 = vunpack.c.h.b16 %v99
    %v741 = vunpack.c.l.b16 %v100
    %v742 = vunpack.c.h.b16 %v100
    %v743 = vunpack.c.l.b16 %v101
    %v744 = vunpack.c.h.b16 %v101
    %v745 = vunpack.c.l.b16 %v102
    %v746 = vunpack.c.h.b16 %v102
    %v747 = vunpack.c.l.b16 %v103
    %v748 = vunpack.c.h.b16 %v103
    %v749 = vunpack.c.l.b16 %v104
    %v750 = vunpack.c.h.b16 %v104
    %v751 = vunpack.c.l.b16 %v105
    %v752 = vunpack.c.h.b16 %v105
    %v753 = vunpack.c.l.b16 %v106
    %v754 = vunpack.c.h.b16 %v106
    %v755 = vunpack.c.l.b16 %v107
    %v756 = vunpack.c.h.b16 %v107
    %v757 = vunpack.c.l.b16 %v108
    %v758 = vunpack.c.h.b16 %v108
    %v759 = vunpack.c.l.b16 %v109
    %v760 = vunpack.c.h.b16 %v109
    %v761 = vunpack.c.l.b16 %v110
    %v762 = vunpack.c.h.b16 %v110
    %v763 = vunpack.c.l.b16 %v111
    %v764 = vunpack.c.h.b16 %v111
    %v765 = vunpack.c.l.b16 %v112
    %v766 = vunpack.c.h.b16 %v112
    %v767 = vunpack.c.l.b16 %v113
    %v768 = vunpack.c.h.b16 %v113
    %v769 = vunpack.c.l.b16 %v114
    %v770 = vunpack.c.h.b16 %v114
    %v771 = vunpack.c.l.b16 %v115
    %v772 = vunpack.c.h.b16 %v115
    %v773 = vunpack.c.l.b16 %v116
    %v774 = vunpack.c.h.b16 %v116
    %v775 = vunpack.c.l.b16 %v117
    %v776 = vunpack.c.h.b16 %v117
    %v777 = vunpack.c.l.b16 %v118
    %v778 = vunpack.c.h.b16 %v118
    %v779 = vunpack.c.l.b16 %v119
    %v780 = vunpack.c.h.b16 %v119
    %v781 = vunpack.c.l.b16 %v120
    %v782 = vunpack.c.h.b16 %v120
    %v783 = vunpack.c.l.b16 %v121
    %v784 = vunpack.c.h.b16 %v121
    %v785 = vunpack.c.l.b16 %v122
    %v786 = vunpack.c.h.b16 %v122
    %v787 = vunpack.c.l.b16 %v123
    %v788 = vunpack.c.h.b16 %v123
    %v789 = vunpack.c.l.b16 %v124
    %v790 = vunpack.c.h.b16 %v124
    %v791 = vunpack.c.l.b16 %v125
    %v792 = vunpack.c.h.b16 %v125
    %v793 = vunpack.c.l.b16 %v126
    %v794 = vunpack.c.h.b16 %v126
    %v795 = vunpack.c.l.b16 %v127
    %v796 = vunpack.c.h.b16 %v127
    %v797 = vunpack.c.l.b16 %v128
    %v798 = vunpack.c.h.b16 %v128
    %v799 = vunpack.c.l.b16 %v129
    %v800 = vunpack.c.h.b16 %v129
    %v801 = vunpack.c.l.b16 %v130
    %v802 = vunpack.c.h.b16 %v130
    %v803 = vunpack.c.l.b16 %v131
    %v804 = vunpack.c.h.b16 %v131
    %v805 = vunpack.c.l.b16 %v132
    %v806 = vunpack.c.h.b16 %v132
    %v807 = vunpack.c.l.b16 %v133
    %v808 = vunpack.c.h.b16 %v133
    %v809 = vunpack.c.l.b16 %v134
    %v810 = vunpack.c.h.b16 %v134
    %v811 = vunpack.c.l.b16 %v135
    %v812 = vunpack.c.h.b16 %v135
    %v813 = vunpack.c.l.b16 %v136
    %v814 = vunpack.c.h.b16 %v136
    %v815 = vunpack.c.l.b16 %v137
    %v816 = vunpack.c.h.b16 %v137
    %v817 = vunpack.c.l.b16 %v138
    %v818 = vunpack.c.h.b16 %v138
    %v819 = vunpack.c.l.b16 %v139
    %v820 = vunpack.c.h.b16 %v139
    %v821 = vunpack.c.l.b16 %v140
    %v822 = vunpack.c.h.b16 %v140
    %v823 = vunpack.c.l.b16 %v141
    %v824 = vunpack.c.h.b16 %v141
    %v825 = vunpack.c.l.b16 %v142
    %v826 = vunpack.c.h.b16 %v142
    %v827 = vunpack.c.l.b16 %v143
    %v828 = vunpack.c.h.b16 %v143
    %v829 = vunpack.c.l.b16 %v144
    %v830 = vunpack.c.h.b16 %v144
    %v831 = vunpack.c.l.b16 %v145
    %v832 = vunpack.c.h.b16 %v145
    %v833 = vunpack.c.l.b16 %v146
    %v834 = vunpack.c.h.b16 %v146
    %v835 = vunpack.c.l.b16 %v147
    %v836 = vunpack.c.h.b16 %v147
    %v837 = vunpack.c.l.b16 %v148
    %v838 = vunpack.c.h.b16 %v148
    %v839 = vunpack.c.l.b16 %v149
    %v840 = vunpack.c.h.b16 %v149
    %v841 = vunpack.c.l.b16 %v150
    %v842 = vunpack.c.h.b16 %v150
    %v843 = vunpack.c.l.b16 %v151
    %v844 = vunpack.c.h.b16 %v151
    %v845 = vunpack.c.l.b16 %v152
    %v846 = vunpack.c.h.b16 %v152
    %v847 = vunpack.c.l.b16 %v153
    %v848 = vunpack.c.h.b16 %v153
    %v849 = vunpack.c.l.b16 %v154
    %v850 = vunpack.c.h.b16 %v154
    %v851 = vunpack.c.l.b16 %v155
    %v852 = vunpack.c.h.b16 %v155
    %v853 = vunpack.c.l.b16 %v156
    %v854 = vunpack.c.h.b16 %v156
    %v855 = vunpack.c.l.b16 %v157
    %v856 = vunpack.c.h.b16 %v157
    %v857 = vunpack.c.l.b16 %v158
    %v858 = vunpack.c.h.b16 %v158
    %v859 = vunpack.c.l.b16 %v159
    %v860 = vunpack.c.h.b16 %v159
    %v861 = vunpack.c.l.b16 %v160
    %v862 = vunpack.c.h.b16 %v160
    %v863 = vunpack.c.l.b16 %v161
    %v864 = vunpack.c.h.b16 %v161
    %v865 = vunpack.c.l.b16 %v162
    %v866 = vunpack.c.h.b16 %v162
    %v867 = vunpack.c.l.b16 %v163
    %v868 = vunpack.c.h.b16 %v163
    %v869 = vunpack.c.l.b16 %v164
    %v870 = vunpack.c.h.b16 %v164
    %v871 = vunpack.c.l.b16 %v165
    %v872 = vunpack.c.h.b16 %v165
    %v873 = vunpack.c.l.b16 %v166
    %v874 = vunpack.c.h.b16 %v166
    %v875 = vunpack.c.l.b16 %v167
    %v876 = vunpack.c.h.b16 %v167
    %v877 = vunpack.c.l.b16 %v168
    %v878 = vunpack.c.h.b16 %v168
    %v879 = vunpack.c.l.b16 %v169
    %v880 = vunpack.c.h.b16 %v169
    %v881 = vunpack.c.l.b16 %v170
    %v882 = vunpack.c.h.b16 %v170
    %v883 = vunpack.c.l.b16 %v171
    %v884 = vunpack.c.h.b16 %v171
    %v885 = vunpack.c.l.b16 %v172
    %v886 = vunpack.c.h.b16 %v172
    %v887 = vunpack.c.l.b16 %v173
    %v888 = vunpack.c.h.b16 %v173
    %v889 = vunpack.c.l.b16 %v174
    %v890 = vunpack.c.h.b16 %v174
    %v891 = vunpack.c.l.b16 %v175
    %v892 = vunpack.c.h.b16 %v175
    %v893 = vunpack.c.l.b16 %v176
    %v894 = vunpack.c.h.b16 %v176
    %v895 = vunpack.c.l.b16 %v177
    %v896 = vunpack.c.h.b16 %v177
    %v897 = vunpack.c.l.b16 %v178
    %v898 = vunpack.c.h.b16 %v178
    %v899 = vunpack.c.l.b16 %v179
    %v900 = vunpack.c.h.b16 %v179
    %v901 = vunpack.c.l.b16 %v180
    %v902 = vunpack.c.h.b16 %v180
    %v903 = vunpack.c.l.b16 %v181
    %v904 = vunpack.c.h.b16 %v181
    %v905 = vunpack.c.l.b16 %v182
    %v906 = vunpack.c.h.b16 %v182
    %v907 = vunpack.c.l.b16 %v183
    %v908 = vunpack.c.h.b16 %v183
    %v909 = vunpack.c.l.b16 %v184
    %v910 = vunpack.c.h.b16 %v184
    %v911 = vunpack.c.l.b16 %v185
    %v912 = vunpack.c.h.b16 %v185
    %v913 = vunpack.c.l.b16 %v186
    %v914 = vunpack.c.h.b16 %v186
    %v915 = vunpack.c.l.b16 %v187
    %v916 = vunpack.c.h.b16 %v187
    %v917 = vunpack.c.l.b16 %v188
    %v918 = vunpack.c.h.b16 %v188
    %v919 = vunpack.c.l.b16 %v189
    %v920 = vunpack.c.h.b16 %v189
    %v921 = vunpack.c.l.b16 %v190
    %v922 = vunpack.c.h.b16 %v190
    %v923 = vunpack.c.l.b16 %v191
    %v924 = vunpack.c.h.b16 %v191
    %v925 = vunpack.c.l.b16 %v192
    %v926 = vunpack.c.h.b16 %v192
    %v927 = vunpack.c.l.b16 %v193
    %v928 = vunpack.c.h.b16 %v193
    %v929 = vunpack.c.l.b16 %v194
    %v930 = vunpack.c.h.b16 %v194
    %v931 = vunpack.c.l.b16 %v195
    %v932 = vunpack.c.h.b16 %v195
    %v933 = vunpack.c.l.b16 %v196
    %v934 = vunpack.c.h.b16 %v196
    %v935 = vunpack.c.l.b16 %v197
    %v936 = vunpack.c.h.b16 %v197
    %v937 = vunpack.c.l.b16 %v198
    %v938 = vunpack.c.h.b16 %v198
    %v939 = vunpack.c.l.b16 %v199
    %v940 = vunpack.c.h.b16 %v199
    %v941 = vunpack.c.l.b16 %v200
    %v942 = vunpack.c.h.b16 %v200
    %v943 = vunpack.c.l.b16 %v201
    %v944 = vunpack.c.h.b16 %v201
    %v945 = vunpack.c.l.b16 %v202
    %v946 = vunpack.c.h.b16 %v202
    %v947 = vunpack.c.l.b16 %v203
    %v948 = vunpack.c.h.b16 %v203
    %v949 = vunpack.c.l.b16 %v204
    %v950 = vunpack.c.h.b16 %v204
    %v951 = vunpack.c.l.b16 %v205
    %v952 = vunpack.c.h.b16 %v205
    %v953 = vunpack.c.l.b16 %v206
    %v954 = vunpack.c.h.b16 %v206
    %v955 = vunpack.c.l.b16 %v207
    %v956 = vunpack.c.h.b16 %v207
    %v957 = vunpack.c.l.b16 %v208
    %v958 = vunpack.c.h.b16 %v208
    %v959 = vunpack.c.l.b16 %v209
    %v960 = vunpack.c.h.b16 %v209
    %v961 = vunpack.c.l.b16 %v210
    %v962 = vunpack.c.h.b16 %v210
    %v963 = vunpack.c.l.b16 %v211
    %v964 = vunpack.c.h.b16 %v211
    %v965 = vunpack.c.l.b16 %v212
    %v966 = vunpack.c.h.b16 %v212
    %v967 = vunpack.c.l.b16 %v213
    %v968 = vunpack.c.h.b16 %v213
    %v969 = vunpack.c.l.b16 %v214
    %v970 = vunpack.c.h.b16 %v214
    %v971 = vunpack.c.l.b16 %v215
    %v972 = vunpack.c.h.b16 %v215
    %v973 = vunpack.c.l.b16 %v216
    %v974 = vunpack.c.h.b16 %v216
    %v975 = vunpack.c.l.b16 %v217
    %v976 = vunpack.c.h.b16 %v217
    %v977 = vunpack.c.l.b16 %v218
    %v978 = vunpack.c.h.b16 %v218
    %v979 = vunpack.c.l.b16 %v219
    %v980 = vunpack.c.h.b16 %v219
    %v981 = vunpack.c.l.b16 %v220
    %v982 = vunpack.c.h.b16 %v220
    %v983 = vunpack.c.l.b16 %v221
    %v984 = vunpack.c.h.b16 %v221
    %v985 = vunpack.c.l.b16 %v222
    %v986 = vunpack.c.h.b16 %v222
    %v987 = vunpack.c.l.b16 %v223
    %v988 = vunpack.c.h.b16 %v223
    %v989 = vunpack.c.l.b16 %v224
    %v990 = vunpack.c.h.b16 %v224
    %v991 = vunpack.c.l.b16 %v225
    %v992 = vunpack.c.h.b16 %v225
    %v993 = vunpack.c.l.b16 %v226
    %v994 = vunpack.c.h.b16 %v226
    %v995 = vunpack.c.l.b16 %v227
    %v996 = vunpack.c.h.b16 %v227
    %v997 = vunpack.c.l.b16 %v228
    %v998 = vunpack.c.h.b16 %v228
    %v999 = vunpack.c.l.b16 %v229
    %v1000 = vunpack.c.h.b16 %v229
    %v1001 = vunpack.c.l.b16 %v230
    %v1002 = vunpack.c.h.b16 %v230
    %v1003 = vunpack.c.l.b16 %v231
    %v1004 = vunpack.c.h.b16 %v231
    %v1005 = vunpack.c.l.b16 %v232
    %v1006 = vunpack.c.h.b16 %v232
    %v1007 = vunpack.c.l.b16 %v233
    %v1008 = vunpack.c.h.b16 %v233
    %v1009 = vunpack.c.l.b16 %v234
    %v1010 = vunpack.c.h.b16 %v234
    %v1011 = vunpack.c.l.b16 %v235
    %v1012 = vunpack.c.h.b16 %v235
    %v1013 = vunpack.c.l.b16 %v236
    %v1014 = vunpack.c.h.b16 %v236
    %v1015 = vunpack.c.l.b16 %v237
    %v1016 = vunpack.c.h.b16 %v237
    %v1017 = vunpack.c.l.b16 %v238
    %v1018 = vunpack.c.h.b16 %v238
    %v1019 = vunpack.c.l.b16 %v239
    %v1020 = vunpack.c.h.b16 %v239
    %v1021 = vunpack.c.l.b16 %v240
    %v1022 = vunpack.c.h.b16 %v240
    %v1023 = vunpack.c.l.b16 %v241
    %v1024 = vunpack.c.h.b16 %v241
    %v1025 = vunpack.c.l.b16 %v242
    %v1026 = vunpack.c.h.b16 %v242
    %v1027 = vunpack.c.l.b16 %v243
    %v1028 = vunpack.c.h.b16 %v243
    %v1029 = vunpack.c.l.b16 %v244
    %v1030 = vunpack.c.h.b16 %v244
    %v1031 = vunpack.c.l.b16 %v245
    %v1032 = vunpack.c.h.b16 %v245
    %v1033 = vunpack.c.l.b16 %v246
    %v1034 = vunpack.c.h.b16 %v246
    %v1035 = vunpack.c.l.b16 %v247
    %v1036 = vunpack.c.h.b16 %v247
    %v1037 = vunpack.c.l.b16 %v248
    %v1038 = vunpack.c.h.b16 %v248
    %v1039 = vunpack.c.l.b16 %v249
    %v1040 = vunpack.c.h.b16 %v249
    %v1041 = vunpack.c.l.b16 %v250
    %v1042 = vunpack.c.h.b16 %v250
    %v1043 = vunpack.c.l.b16 %v251
    %v1044 = vunpack.c.h.b16 %v251
    %v1045 = vunpack.c.l.b16 %v252
    %v1046 = vunpack.c.h.b16 %v252
    %v1047 = vunpack.c.l.b16 %v253
    %v1048 = vunpack.c.h.b16 %v253
    %v1049 = vunpack.c.l.b16 %v254
    %v1050 = vunpack.c.h.b16 %v254
    %v1051 = vunpack.c.l.b16 %v255
    %v1052 = vunpack.c.h.b16 %v255
    %v1053 = vunpack.c.l.b16 %v256
    %v1054 = vunpack.c.h.b16 %v256
    %v1055 = vunpack.c.l.b16 %v257
    %v1056 = vunpack.c.h.b16 %v257
    %v1057 = vunpack.c.l.b16 %v258
    %v1058 = vunpack.c.h.b16 %v258
    %v1059 = vunpack.c.l.b16 %v259
    %v1060 = vunpack.c.h.b16 %v259
    %v1061 = vunpack.c.l.b16 %v260
    %v1062 = vunpack.c.h.b16 %v260
    %v1063 = vunpack.c.l.b16 %v261
    %v1064 = vunpack.c.h.b16 %v261
    %v1065 = vunpack.c.l.b16 %v262
    %v1066 = vunpack.c.h.b16 %v262
    %v1067 = vunpack.c.l.b16 %v263
    %v1068 = vunpack.c.h.b16 %v263
    %v1069 = vunpack.c.l.b16 %v264
    %v1070 = vunpack.c.h.b16 %v264
    %v1071 = vunpack.c.l.b16 %v265
    %v1072 = vunpack.c.h.b16 %v265
    %v1073 = vunpack.c.l.b16 %v266
    %v1074 = vunpack.c.h.b16 %v266
    %v1075 = vunpack.c.l.b16 %v267
    %v1076 = vunpack.c.h.b16 %v267
    %v1077 = vunpack.c.l.b16 %v268
    %v1078 = vunpack.c.h.b16 %v268
    %v1079 = vunpack.c.l.b16 %v269
    %v1080 = vunpack.c.h.b16 %v269
    %v1081 = vunpack.c.l.b16 %v270
    %v1082 = vunpack.c.h.b16 %v270
    %v1083 = vunpack.c.l.b16 %v271
    %v1084 = vunpack.c.h.b16 %v271
    %v1085 = vunpack.c.l.b16 %v272
    %v1086 = vunpack.c.h.b16 %v272
    %v1087 = vunpack.c.l.b16 %v273
    %v1088 = vunpack.c.h.b16 %v273
    %v1089 = vunpack.c.l.b16 %v274
    %v1090 = vunpack.c.h.b16 %v274
    %v1091 = vunpack.c.l.b16 %v275
    %v1092 = vunpack.c.h.b16 %v275
    %v1093 = vunpack.c.l.b16 %v276
    %v1094 = vunpack.c.h.b16 %v276
    %v1095 = vunpack.c.l.b16 %v277
    %v1096 = vunpack.c.h.b16 %v277
    %v1097 = vunpack.c.l.b16 %v278
    %v1098 = vunpack.c.h.b16 %v278
    %v1099 = vunpack.c.l.b16 %v279
    %v1100 = vunpack.c.h.b16 %v279
    %v1101 = vunpack.c.l.b16 %v280
    %v1102 = vunpack.c.h.b16 %v280
    %v1103 = vunpack.c.l.b16 %v281
    %v1104 = vunpack.c.h.b16 %v281
    %v1105 = vunpack.c.l.b16 %v282
    %v1106 = vunpack.c.h.b16 %v282
    %v1107 = vunpack.c.l.b16 %v283
    %v1108 = vunpack.c.h.b16 %v283
    %v1109 = vunpack.c.l.b16 %v284
    %v1110 = vunpack.c.h.b16 %v284
    %v1111 = vunpack.c.l.b16 %v285
    %v1112 = vunpack.c.h.b16 %v285
    %v1113 = vunpack.c.l.b16 %v286
    %v1114 = vunpack.c.h.b16 %v286
    %v1115 = vunpack.c.l.b16 %v287
    %v1116 = vunpack.c.h.b16 %v287
    %v1117 = vunpack.c.l.b16 %v288
    %v1118 = vunpack.c.h.b16 %v288
    %v1119 = vunpack.c.l.b16 %v289
    %v1120 = vunpack.c.h.b16 %v289
    %v1121 = vunpack.c.l.b16 %v290
    %v1122 = vunpack.c.h.b16 %v290
    %v1123 = vunpack.c.l.b16 %v291
    %v1124 = vunpack.c.h.b16 %v291
    %v1125 = vunpack.c.l.b16 %v292
    %v1126 = vunpack.c.h.b16 %v292
    %v1127 = vunpack.c.l.b16 %v293
    %v1128 = vunpack.c.h.b16 %v293
    %v1129 = vunpack.c.l.b16 %v294
    %v1130 = vunpack.c.h.b16 %v294
    %v1131 = vunpack.c.l.b16 %v295
    %v1132 = vunpack.c.h.b16 %v295
    %v1133 = vunpack.c.l.b16 %v296
    %v1134 = vunpack.c.h.b16 %v296
    %v1135 = vunpack.c.l.b16 %v297
    %v1136 = vunpack.c.h.b16 %v297
    %v1137 = vunpack.c.l.b16 %v298
    %v1138 = vunpack.c.h.b16 %v298
    %v1139 = vunpack.c.l.b16 %v299
    %v1140 = vunpack.c.h.b16 %v299
    %v1141 = vunpack.c.l.b16 %v300
    %v1142 = vunpack.c.h.b16 %v300
    %v1143 = vunpack.c.l.b16 %v301
    %v1144 = vunpack.c.h.b16 %v301
    %v1145 = vunpack.c.l.b16 %v302
    %v1146 = vunpack.c.h.b16 %v302
    %v1147 = vunpack.c.l.b16 %v303
    %v1148 = vunpack.c.h.b16 %v303
    %v1149 = vunpack.c.l.b16 %v304
    %v1150 = vunpack.c.h.b16 %v304
    %v1151 = vunpack.c.l.b16 %v305
    %v1152 = vunpack.c.h.b16 %v305
    %v1153 = vunpack.c.l.b16 %v306
    %v1154 = vunpack.c.h.b16 %v306
    %v1155 = vunpack.c.l.b16 %v307
    %v1156 = vunpack.c.h.b16 %v307
    %v1157 = vunpack.c.l.b16 %v308
    %v1158 = vunpack.c.h.b16 %v308
    %v1159 = vunpack.c.l.b16 %v309
    %v1160 = vunpack.c.h.b16 %v309
    %v1161 = vunpack.c.l.b16 %v310
    %v1162 = vunpack.c.h.b16 %v310
    %v1163 = vunpack.c.l.b16 %v311
    %v1164 = vunpack.c.h.b16 %v311
    %v1165 = vunpack.c.l.b16 %v312
    %v1166 = vunpack.c.h.b16 %v312
    %v1167 = vunpack.c.l.b16 %v313
    %v1168 = vunpack.c.h.b16 %v313
    %v1169 = vunpack.c.l.b16 %v314
    %v1170 = vunpack.c.h.b16 %v314
    %v1171 = vunpack.c.l.b16 %v315
    %v1172 = vunpack.c.h.b16 %v315
    %v1173 = vunpack.c.l.b16 %v316
    %v1174 = vunpack.c.h.b16 %v316
    %v1175 = vunpack.c.l.b16 %v317
    %v1176 = vunpack.c.h.b16 %v317
    %v1177 = vunpack.c.l.b16 %v318
    %v1178 = vunpack.c.h.b16 %v318
    %v1179 = vunpack.c.l.b16 %v319
    %v1180 = vunpack.c.h.b16 %v319
    %v1181 = vunpack.c.l.b16 %v320
    %v1182 = vunpack.c.h.b16 %v320
    %v1183 = vunpack.c.l.b16 %v321
    %v1184 = vunpack.c.h.b16 %v321
    %v1185 = vunpack.c.l.b16 %v322
    %v1186 = vunpack.c.h.b16 %v322
    %v1187 = vunpack.c.l.b16 %v323
    %v1188 = vunpack.c.h.b16 %v323
    %v1189 = vunpack.c.l.b16 %v324
    %v1190 = vunpack.c.h.b16 %v324
    %v1191 = vunpack.c.l.b16 %v325
    %v1192 = vunpack.c.h.b16 %v325
    %v1193 = vunpack.c.l.b16 %v326
    %v1194 = vunpack.c.h.b16 %v326
    %v1195 = vunpack.c.l.b16 %v327
    %v1196 = vunpack.c.h.b16 %v327
    %v1197 = vunpack.c.l.b16 %v328
    %v1198 = vunpack.c.h.b16 %v328
    %v1199 = vunpack.c.l.b16 %v329
    %v1200 = vunpack.c.h.b16 %v329
    %v1201 = vunpack.c.l.b16 %v330
    %v1202 = vunpack.c.h.b16 %v330
    %v1203 = vunpack.c.l.b16 %v331
    %v1204 = vunpack.c.h.b16 %v331
    %v1205 = vunpack.c.l.b16 %v332
    %v1206 = vunpack.c.h.b16 %v332
    %v1207 = vunpack.c.l.b16 %v333
    %v1208 = vunpack.c.h.b16 %v333
    %v1209 = vunpack.c.l.b16 %v334
    %v1210 = vunpack.c.h.b16 %v334
    %v1211 = vunpack.c.l.b16 %v335
    %v1212 = vunpack.c.h.b16 %v335
    %v1213 = vunpack.c.l.b16 %v336
    %v1214 = vunpack.c.h.b16 %v336
    %v1215 = vunpack.c.l.b16 %v337
    %v1216 = vunpack.c.h.b16 %v337
    %v1217 = vunpack.c.l.b16 %v338
    %v1218 = vunpack.c.h.b16 %v338
    %v1219 = vunpack.c.l.b16 %v339
    %v1220 = vunpack.c.h.b16 %v339
    %v1221 = vunpack.c.l.b16 %v340
    %v1222 = vunpack.c.h.b16 %v340
    %v1223 = vunpack.c.l.b16 %v341
    %v1224 = vunpack.c.h.b16 %v341
    %v1225 = vunpack.c.l.b16 %v342
    %v1226 = vunpack.c.h.b16 %v342
    %v1227 = vunpack.c.l.b16 %v343
    %v1228 = vunpack.c.h.b16 %v343
    %v1229 = vunpack.c.l.b16 %v344
    %v1230 = vunpack.c.h.b16 %v344
    %v1231 = vunpack.c.l.b16 %v345
    %v1232 = vunpack.c.h.b16 %v345
    %v1233 = vunpack.c.l.b16 %v346
    %v1234 = vunpack.c.h.b16 %v346
    %v1235 = vunpack.c.l.b16 %v347
    %v1236 = vunpack.c.h.b16 %v347
    %v1237 = vunpack.c.l.b16 %v348
    %v1238 = vunpack.c.h.b16 %v348
    %v1239 = vunpack.c.l.b16 %v349
    %v1240 = vunpack.c.h.b16 %v349
    %v1241 = vunpack.c.l.b16 %v350
    %v1242 = vunpack.c.h.b16 %v350
    %v1243 = vunpack.c.l.b16 %v351
    %v1244 = vunpack.c.h.b16 %v351
    %v1245 = vunpack.c.l.b16 %v352
    %v1246 = vunpack.c.h.b16 %v352
    %v1247 = vunpack.c.l.b16 %v353
    %v1248 = vunpack.c.h.b16 %v353
    %v1249 = vunpack.c.l.b16 %v354
    %v1250 = vunpack.c.h.b16 %v354
    %v1251 = vunpack.c.l.b16 %v355
    %v1252 = vunpack.c.h.b16 %v355
    %v1253 = vunpack.c.l.b16 %v356
    %v1254 = vunpack.c.h.b16 %v356
    %v1255 = vunpack.c.l.b16 %v357
    %v1256 = vunpack.c.h.b16 %v357
    %v1257 = vunpack.c.l.b16 %v358
    %v1258 = vunpack.c.h.b16 %v358
    %v1259 = vunpack.c.l.b16 %v359
    %v1260 = vunpack.c.h.b16 %v359
    %v1261 = vunpack.c.l.b16 %v360
    %v1262 = vunpack.c.h.b16 %v360
    %v1263 = vunpack.c.l.b16 %v361
    %v1264 = vunpack.c.h.b16 %v361
    %v1265 = vunpack.c.l.b16 %v362
    %v1266 = vunpack.c.h.b16 %v362
    %v1267 = vunpack.c.l.b16 %v363
    %v1268 = vunpack.c.h.b16 %v363
    %v1269 = vunpack.c.l.b16 %v364
    %v1270 = vunpack.c.h.b16 %v364
    %v1271 = vunpack.c.l.b16 %v365
    %v1272 = vunpack.c.h.b16 %v365
    %v1273 = vunpack.c.l.b16 %v366
    %v1274 = vunpack.c.h.b16 %v366
    %v1275 = vunpack.c.l.b16 %v367
    %v1276 = vunpack.c.h.b16 %v367
    %v1277 = vunpack.c.l.b16 %v368
    %v1278 = vunpack.c.h.b16 %v368
    %v1279 = vunpack.c.l.b16 %v369
    %v1280 = vunpack.c.h.b16 %v369
    %v1281 = vunpack.c.l.b16 %v370
    %v1282 = vunpack.c.h.b16 %v370
    %v1283 = vunpack.c.l.b16 %v371
    %v1284 = vunpack.c.h.b16 %v371
    %v1285 = vunpack.c.l.b16 %v372
    %v1286 = vunpack.c.h.b16 %v372
    %v1287 = vunpack.c.l.b16 %v373
    %v1288 = vunpack.c.h.b16 %v373
    %v1289 = vunpack.c.l.b16 %v374
    %v1290 = vunpack.c.h.b16 %v374
    %v1291 = vunpack.c.l.b16 %v375
    %v1292 = vunpack.c.h.b16 %v375
    %v1293 = vunpack.c.l.b16 %v376
    %v1294 = vunpack.c.h.b16 %v376
    %v1295 = vpack.c.b16 %v723, %v719
    %v1296 = vpack.c.b16 %v724, %v720
    %v1297 = vpack.c.b16 %v725, %v721
    %v1298 = vpack.c.b16 %v726, %v722
    %v1299 = vpack.c.b16 %v731, %v727
    %v1300 = vpack.c.b16 %v732, %v728
    %v1301 = vpack.c.b16 %v733, %v729
    %v1302 = vpack.c.b16 %v734, %v730
    %v1303 = vpack.c.b16 %v739, %v735
    %v1304 = vpack.c.b16 %v740, %v736
    %v1305 = vpack.c.b16 %v741, %v737
    %v1306 = vpack.c.b16 %v742, %v738
    %v1307 = vpack.c.b16 %v747, %v743
    %v1308 = vpack.c.b16 %v748, %v744
    %v1309 = vpack.c.b16 %v749, %v745
    %v1310 = vpack.c.b16 %v750, %v746
    %v1311 = vpack.c.b16 %v755, %v751
    %v1312 = vpack.c.b16 %v756, %v752
    %v1313 = vpack.c.b16 %v757, %v753
    %v1314 = vpack.c.b16 %v758, %v754
    %v1315 = vpack.c.b16 %v763, %v759
    %v1316 = vpack.c.b16 %v764, %v760
    %v1317 = vpack.c.b16 %v765, %v761
    %v1318 = vpack.c.b16 %v766, %v762
    %v1319 = vpack.c.b16 %v771, %v767
    %v1320 = vpack.c.b16 %v772, %v768
    %v1321 = vpack.c.b16 %v773, %v769
    %v1322 = vpack.c.b16 %v774, %v770
    %v1323 = vpack.c.b16 %v779, %v775
    %v1324 = vpack.c.b16 %v780, %v776
    %v1325 = vpack.c.b16 %v781, %v777
    %v1326 = vpack.c.b16 %v782, %v778
    %v1327 = vpack.c.b16 %v787, %v783
    %v1328 = vpack.c.b16 %v788, %v784
    %v1329 = vpack.c.b16 %v789, %v785
    %v1330 = vpack.c.b16 %v790, %v786
    %v1331 = vpack.c.b16 %v795, %v791
    %v1332 = vpack.c.b16 %v796, %v792
    %v1333 = vpack.c.b16 %v797, %v793
    %v1334 = vpack.c.b16 %v798, %v794
    %v1335 = vpack.c.b16 %v803, %v799
    %v1336 = vpack.c.b16 %v804, %v800
    %v1337 = vpack.c.b16 %v805, %v801
    %v1338 = vpack.c.b16 %v806, %v802
    %v1339 = vpack.c.b16 %v811, %v807
    %v1340 = vpack.c.b16 %v812, %v808
    %v1341 = vpack.c.b16 %v813, %v809
    %v1342 = vpack.c.b16 %v814, %v810
    %v1343 = vpack.c.b16 %v819, %v815
    %v1344 = vpack.c.b16 %v820, %v816
    %v1345 = vpack.c.b16 %v821, %v817
    %v1346 = vpack.c.b16 %v822, %v818
    %v1347 = vpack.c.b16 %v827, %v823
    %v1348 = vpack.c.b16 %v828, %v824
    %v1349 = vpack.c.b16 %v829, %v825
    %v1350 = vpack.c.b16 %v830, %v826
    %v1351 = vpack.c.b16 %v835, %v831
    %v1352 = vpack.c.b16 %v836, %v832
    %v1353 = vpack.c.b16 %v837, %v833
    %v1354 = vpack.c.b16 %v838, %v834
    %v1355 = vpack.c.b16 %v843, %v839
    %v1356 = vpack.c.b16 %v844, %v840
    %v1357 = vpack.c.b16 %v845, %v841
    %v1358 = vpack.c.b16 %v846, %v842
    %v1359 = vpack.c.b16 %v851, %v847
    %v1360 = vpack.c.b16 %v852, %v848
    %v1361 = vpack.c.b16 %v853, %v849
    %v1362 = vpack.c.b16 %v854, %v850
    %v1363 = vpack.c.b16 %v859, %v855
    %v1364 = vpack.c.b16 %v860, %v856
    %v1365 = vpack.c.b16 %v861, %v857
    %v1366 = vpack.c.b16 %v862, %v858
    %v1367 = vpack.c.b16 %v867, %v863
    %v1368 = vpack.c.b16 %v868, %v864
    %v1369 = vpack.c.b16 %v869, %v865
    %v1370 = vpack.c.b16 %v870, %v866
    %v1371 = vpack.c.b16 %v875, %v871
    %v1372 = vpack.c.b16 %v876, %v872
    %v1373 = vpack.c.b16 %v877, %v873
    %v1374 = vpack.c.b16 %v878, %v874
    %v1375 = vpack.c.b16 %v883, %v879
    %v1376 = vpack.c.b16 %v884, %v880
    %v1377 = vpack.c.b16 %v885, %v881
    %v1378 = vpack.c.b16 %v886, %v882
    %v1379 = vpack.c.b16 %v891, %v887
    %v1380 = vpack.c.b16 %v892, %v888
    %v1381 = vpack.c.b16 %v893, %v889
    %v1382 = vpack.c.b16 %v894, %v890
    %v1383 = vpack.c.b16 %v899, %v895
    %v1384 = vpack.c.b16 %v900, %v896
    %v1385 = vpack.c.b16 %v901, %v897
    %v1386 = vpack.c.b16 %v902, %v898
    %v1387 = vpack.c.b16 %v907, %v903
    %v1388 = vpack.c.b16 %v908, %v904
    %v1389 = vpack.c.b16 %v909, %v905
    %v1390 = vpack.c.b16 %v910, %v906
    %v1391 = vpack.c.b16 %v915, %v911
    %v1392 = vpack.c.b16 %v916, %v912
    %v1393 = vpack.c.b16 %v917, %v913
    %v1394 = vpack.c.b16 %v918, %v914
    %v1395 = vpack.c.b16 %v923, %v919
    %v1396 = vpack.c.b16 %v924, %v920
    %v1397 = vpack.c.b16 %v925, %v921
    %v1398 = vpack.c.b16 %v926, %v922
    %v1399 = vpack.c.b16 %v931, %v927
    %v1400 = vpack.c.b16 %v932, %v928
    %v1401 = vpack.c.b16 %v933, %v929
    %v1402 = vpack.c.b16 %v934, %v930
    %v1403 = vpack.c.b16 %v939, %v935
    %v1404 = vpack.c.b16 %v940, %v936
    %v1405 = vpack.c.b16 %v941, %v937
    %v1406 = vpack.c.b16 %v942, %v938
    %v1407 = vpack.c.b16 %v947, %v943
    %v1408 = vpack.c.b16 %v948, %v944
    %v1409 = vpack.c.b16 %v949, %v945
    %v1410 = vpack.c.b16 %v950, %v946
    %v1411 = vpack.c.b16 %v955, %v951
    %v1412 = vpack.c.b16 %v956, %v952
    %v1413 = vpack.c.b16 %v957, %v953
    %v1414 = vpack.c.b16 %v958, %v954
    %v1415 = vpack.c.b16 %v963, %v959
    %v1416 = vpack.c.b16 %v964, %v960
    %v1417 = vpack.c.b16 %v965, %v961
    %v1418 = vpack.c.b16 %v966, %v962
    %v1419 = vpack.c.b16 %v971, %v967
    %v1420 = vpack.c.b16 %v972, %v968
    %v1421 = vpack.c.b16 %v973, %v969
    %v1422 = vpack.c.b16 %v974, %v970
    %v1423 = vpack.c.b16 %v979, %v975
    %v1424 = vpack.c.b16 %v980, %v976
    %v1425 = vpack.c.b16 %v981, %v977
    %v1426 = vpack.c.b16 %v982, %v978
    %v1427 = vpack.c.b16 %v987, %v983
    %v1428 = vpack.c.b16 %v988, %v984
    %v1429 = vpack.c.b16 %v989, %v985
    %v1430 = vpack.c.b16 %v990, %v986
    %v1431 = vpack.c.b16 %v995, %v991
    %v1432 = vpack.c.b16 %v996, %v992
    %v1433 = vpack.c.b16 %v997, %v993
    %v1434 = vpack.c.b16 %v998, %v994
    %v1435 = vpack.c.b16 %v1003, %v999
    %v1436 = vpack.c.b16 %v1004, %v1000
    %v1437 = vpack.c.b16 %v1005, %v1001
    %v1438 = vpack.c.b16 %v1006, %v1002
    %v1439 = vpack.c.b16 %v1011, %v1007
    %v1440 = vpack.c.b16 %v1012, %v1008
    %v1441 = vpack.c.b16 %v1013, %v1009
    %v1442 = vpack.c.b16 %v1014, %v1010
    %v1443 = vpack.c.b16 %v1019, %v1015
    %v1444 = vpack.c.b16 %v1020, %v1016
    %v1445 = vpack.c.b16 %v1021, %v1017
    %v1446 = vpack.c.b16 %v1022, %v1018
    %v1447 = vpack.c.b16 %v1027, %v1023
    %v1448 = vpack.c.b16 %v1028, %v1024
    %v1449 = vpack.c.b16 %v1029, %v1025
    %v1450 = vpack.c.b16 %v1030, %v1026
    %v1451 = vpack.c.b16 %v1035, %v1031
    %v1452 = vpack.c.b16 %v1036, %v1032
    %v1453 = vpack.c.b16 %v1037, %v1033
    %v1454 = vpack.c.b16 %v1038, %v1034
    %v1455 = vpack.c.b16 %v1043, %v1039
    %v1456 = vpack.c.b16 %v1044, %v1040
    %v1457 = vpack.c.b16 %v1045, %v1041
    %v1458 = vpack.c.b16 %v1046, %v1042
    %v1459 = vpack.c.b16 %v1051, %v1047
    %v1460 = vpack.c.b16 %v1052, %v1048
    %v1461 = vpack.c.b16 %v1053, %v1049
    %v1462 = vpack.c.b16 %v1054, %v1050
    %v1463 = vpack.c.b16 %v1059, %v1055
    %v1464 = vpack.c.b16 %v1060, %v1056
    %v1465 = vpack.c.b16 %v1061, %v1057
    %v1466 = vpack.c.b16 %v1062, %v1058
    %v1467 = vpack.c.b16 %v1067, %v1063
    %v1468 = vpack.c.b16 %v1068, %v1064
    %v1469 = vpack.c.b16 %v1069, %v1065
    %v1470 = vpack.c.b16 %v1070, %v1066
    %v1471 = vpack.c.b16 %v1075, %v1071
    %v1472 = vpack.c.b16 %v1076, %v1072
    %v1473 = vpack.c.b16 %v1077, %v1073
    %v1474 = vpack.c.b16 %v1078, %v1074
    %v1475 = vpack.c.b16 %v1083, %v1079
    %v1476 = vpack.c.b16 %v1084, %v1080
    %v1477 = vpack.c.b16 %v1085, %v1081
    %v1478 = vpack.c.b16 %v1086, %v1082
    %v1479 = vpack.c.b16 %v1091, %v1087
    %v1480 = vpack.c.b16 %v1092, %v1088
    %v1481 = vpack.c.b16 %v1093, %v1089
    %v1482 = vpack.c.b16 %v1094, %v1090
    %v1483 = vpack.c.b16 %v1099, %v1095
    %v1484 = vpack.c.b16 %v1100, %v1096
    %v1485 = vpack.c.b16 %v1101, %v1097
    %v1486 = vpack.c.b16 %v1102, %v1098
    %v1487 = vpack.c.b16 %v1107, %v1103
    %v1488 = vpack.c.b16 %v1108, %v1104
    %v1489 = vpack.c.b16 %v1109, %v1105
    %v1490 = vpack.c.b16 %v1110, %v1106
    %v1491 = vpack.c.b16 %v1115, %v1111
    %v1492 = vpack.c.b16 %v1116, %v1112
    %v1493 = vpack.c.b16 %v1117, %v1113
    %v1494 = vpack.c.b16 %v1118, %v1114
    %v1495 = vpack.c.b16 %v1123, %v1119
    %v1496 = vpack.c.b16 %v1124, %v1120
    %v1497 = vpack.c.b16 %v1125, %v1121
    %v1498 = vpack.c.b16 %v1126, %v1122
    %v1499 = vpack.c.b16 %v1131, %v1127
    %v1500 = vpack.c.b16 %v1132, %v1128
    %v1501 = vpack.c.b16 %v1133, %v1129
    %v1502 = vpack.c.b16 %v1134, %v1130
    %v1503 = vpack.c.b16 %v1139, %v1135
    %v1504 = vpack.c.b16 %v1140, %v1136
    %v1505 = vpack.c.b16 %v1141, %v1137
    %v1506 = vpack.c.b16 %v1142, %v1138
    %v1507 = vpack.c.b16 %v1147, %v1143
    %v1508 = vpack.c.b16 %v1148, %v1144
    %v1509 = vpack.c.b16 %v1149, %v1145
    %v1510 = vpack.c.b16 %v1150, %v1146
    %v1511 = vpack.c.b16 %v1155, %v1151
    %v1512 = vpack.c.b16 %v1156, %v1152
    %v1513 = vpack.c.b16 %v1157, %v1153
    %v1514 = vpack.c.b16 %v1158, %v1154
    %v1515 = vpack.c.b16 %v1163, %v1159
    %v1516 = vpack.c.b16 %v1164, %v1160
    %v1517 = vpack.c.b16 %v1165, %v1161
    %v1518 = vpack.c.b16 %v1166, %v1162
    %v1519 = vpack.c.b16 %v1171, %v1167
    %v1520 = vpack.c.b16 %v1172, %v1168
    %v1521 = vpack.c.b16 %v1173, %v1169
    %v1522 = vpack.c.b16 %v1174, %v1170
    %v1523 = vpack.c.b16 %v1179, %v1175
    %v1524 = vpack.c.b16 %v1180, %v1176
    %v1525 = vpack.c.b16 %v1181, %v1177
    %v1526 = vpack.c.b16 %v1182, %v1178
    %v1527 = vpack.c.b16 %v1187, %v1183
    %v1528 = vpack.c.b16 %v1188, %v1184
    %v1529 = vpack.c.b16 %v1189, %v1185
    %v1530 = vpack.c.b16 %v1190, %v1186
    %v1531 = vpack.c.b16 %v1195, %v1191
    %v1532 = vpack.c.b16 %v1196, %v1192
    %v1533 = vpack.c.b16 %v1197, %v1193
    %v1534 = vpack.c.b16 %v1198, %v1194
    %v1535 = vpack.c.b16 %v1203, %v1199
    %v1536 = vpack.c.b16 %v1204, %v1200
    %v1537 = vpack.c.b16 %v1205, %v1201
    %v1538 = vpack.c.b16 %v1206, %v1202
    %v1539 = vpack.c.b16 %v1211, %v1207
    %v1540 = vpack.c.b16 %v1212, %v1208
    %v1541 = vpack.c.b16 %v1213, %v1209
    %v1542 = vpack.c.b16 %v1214, %v1210
    %v1543 = vpack.c.b16 %v1219, %v1215
    %v1544 = vpack.c.b16 %v1220, %v1216
    %v1545 = vpack.c.b16 %v1221, %v1217
    %v1546 = vpack.c.b16 %v1222, %v1218
    %v1547 = vpack.c.b16 %v1227, %v1223
    %v1548 = vpack.c.b16 %v1228, %v1224
    %v1549 = vpack.c.b16 %v1229, %v1225
    %v1550 = vpack.c.b16 %v1230, %v1226
    %v1551 = vpack.c.b16 %v1235, %v1231
    %v1552 = vpack.c.b16 %v1236, %v1232
    %v1553 = vpack.c.b16 %v1237, %v1233
    %v1554 = vpack.c.b16 %v1238, %v1234
    %v1555 = vpack.c.b16 %v1243, %v1239
    %v1556 = vpack.c.b16 %v1244, %v1240
    %v1557 = vpack.c.b16 %v1245, %v1241
    %v1558 = vpack.c.b16 %v1246, %v1242
    %v1559 = vpack.c.b16 %v1251, %v1247
    %v1560 = vpack.c.b16 %v1252, %v1248
    %v1561 = vpack.c.b16 %v1253, %v1249
    %v1562 = vpack.c.b16 %v1254, %v1250
    %v1563 = vpack.c.b16 %v1259, %v1255
    %v1564 = vpack.c.b16 %v1260, %v1256
    %v1565 = vpack.c.b16 %v1261, %v1257
    %v1566 = vpack.c.b16 %v1262, %v1258
    %v1567 = vpack.c.b16 %v1267, %v1263
    %v1568 = vpack.c.b16 %v1268, %v1264
    %v1569 = vpack.c.b16 %v1269, %v1265
    %v1570 = vpack.c.b16 %v1270, %v1266
    %v1571 = vpack.c.b16 %v1275, %v1271
    %v1572 = vpack.c.b16 %v1276, %v1272
    %v1573 = vpack.c.b16 %v1277, %v1273
    %v1574 = vpack.c.b16 %v1278, %v1274
    %v1575 = vpack.c.b16 %v1283, %v1279
    %v1576 = vpack.c.b16 %v1284, %v1280
    %v1577 = vpack.c.b16 %v1285, %v1281
    %v1578 = vpack.c.b16 %v1286, %v1282
    %v1579 = vpack.c.b16 %v1291, %v1287
    %v1580 = vpack.c.b16 %v1292, %v1288
    %v1581 = vpack.c.b16 %v1293, %v1289
    %v1582 = vpack.c.b16 %v1294, %v1290
    %1871 = vmatprep.subr.bf16.mxu0 %v1324
    %1872 = vmatpush1.bf16.msra.mxu0 %v1323
    %1873 = vmatprep.subr.bf16.mxu0 %v1320
    %1874 = vmatpush1.bf16.msra.mxu0 %v1319
    %1875 = vmatprep.subr.bf16.mxu0 %v1316
    %1876 = vmatpush1.bf16.msra.mxu0 %v1315
    %1877 = vmatprep.subr.bf16.mxu0 %v1312
    %1878 = vmatpush1.bf16.msra.mxu0 %v1311
    %1879 = vmatprep.subr.bf16.mxu0 %v1308
    %1880 = vmatpush1.bf16.msra.mxu0 %v1307
    %1881 = vmatprep.subr.bf16.mxu0 %v1304
    %1882 = vmatpush1.bf16.msra.mxu0 %v1303
    %1883 = vmatprep.subr.bf16.mxu0 %v1300
    %1884 = vmatpush1.bf16.msra.mxu0 %v1299
    %1885 = vmatprep.subr.bf16.mxu0 %v1296
    %1886 = vmatpush1.bf16.msra.mxu0 %v1295
    %1887 = vmatprep.subr.bf16.mxu0 %v1356
    %1888 = vmatpush2.bf16.msra.mxu0 %v1355
    %1889 = vmatprep.subr.bf16.mxu0 %v1352
    %1890 = vmatpush2.bf16.msra.mxu0 %v1351
    %1891 = vmatprep.subr.bf16.mxu0 %v1348
    %1892 = vmatpush2.bf16.msra.mxu0 %v1347
    %1893 = vmatprep.subr.bf16.mxu0 %v1344
    %1894 = vmatpush2.bf16.msra.mxu0 %v1343
    %1895 = vmatprep.subr.bf16.mxu0 %v1340
    %1896 = vmatpush2.bf16.msra.mxu0 %v1339
    %1897 = vmatprep.subr.bf16.mxu0 %v1336
    %1898 = vmatpush2.bf16.msra.mxu0 %v1335
    %1899 = vmatprep.subr.bf16.mxu0 %v1332
    %1900 = vmatpush2.bf16.msra.mxu0 %v1331
    %1901 = vmatprep.subr.bf16.mxu0 %v1328
    %1902 = vmatpush2.bf16.msra.mxu0 %v1327
    %1903 = vmatprep.mubr.bf16.mxu0 %v414
    %1904 = vmatmul.mubr.bf16.gmra.mxu0 %v413
    %v1905 = vpop.f32.mrf.mxu0
    %v1906 = vadd.f32 %v382, %v1905
    %v1907 = vpop.f32.mrf.mxu0
    %v1908 = vadd.f32 %v386, %v1907
    %v1909 = vpop.f32.mrf.mxu0
    %v1910 = vpop.f32.mrf.mxu0
    %1911 = vdwg.mxu0
    %1912 = vmatprep.subr.bf16.mxu0 %v1388
    %1913 = vmatpush1.bf16.msra.mxu0 %v1387
    %1914 = vmatprep.subr.bf16.mxu0 %v1384
    %1915 = vmatpush1.bf16.msra.mxu0 %v1383
    %1916 = vmatprep.subr.bf16.mxu0 %v1380
    %1917 = vmatpush1.bf16.msra.mxu0 %v1379
    %1918 = vmatprep.subr.bf16.mxu0 %v1376
    %1919 = vmatpush1.bf16.msra.mxu0 %v1375
    %1920 = vmatprep.subr.bf16.mxu0 %v1372
    %1921 = vmatpush1.bf16.msra.mxu0 %v1371
    %1922 = vmatprep.subr.bf16.mxu0 %v1368
    %1923 = vmatpush1.bf16.msra.mxu0 %v1367
    %1924 = vmatprep.subr.bf16.mxu0 %v1364
    %1925 = vmatpush1.bf16.msra.mxu0 %v1363
    %1926 = vmatprep.subr.bf16.mxu0 %v1360
    %1927 = vmatpush1.bf16.msra.mxu0 %v1359
    %1928 = vmatprep.subr.bf16.mxu0 %v1420
    %1929 = vmatpush2.bf16.msra.mxu0 %v1419
    %1930 = vmatprep.subr.bf16.mxu0 %v1416
    %1931 = vmatpush2.bf16.msra.mxu0 %v1415
    %1932 = vmatprep.subr.bf16.mxu0 %v1412
    %1933 = vmatpush2.bf16.msra.mxu0 %v1411
    %1934 = vmatprep.subr.bf16.mxu0 %v1408
    %1935 = vmatpush2.bf16.msra.mxu0 %v1407
    %1936 = vmatprep.subr.bf16.mxu0 %v1404
    %1937 = vmatpush2.bf16.msra.mxu0 %v1403
    %1938 = vmatprep.subr.bf16.mxu0 %v1400
    %1939 = vmatpush2.bf16.msra.mxu0 %v1399
    %1940 = vmatprep.subr.bf16.mxu0 %v1396
    %1941 = vmatpush2.bf16.msra.mxu0 %v1395
    %1942 = vmatprep.subr.bf16.mxu0 %v1392
    %1943 = vmatpush2.bf16.msra.mxu0 %v1391
    %1944 = vmatprep.mubr.bf16.mxu0 %v416
    %1945 = vmatmul.mubr.bf16.gmra.mxu0 %v415
    %v1946 = vpop.f32.mrf.mxu0
    %v1947 = vadd.f32 %v1906, %v1946
    %v1948 = vpop.f32.mrf.mxu0
    %v1949 = vadd.f32 %v1908, %v1948
    %v1950 = vpop.f32.mrf.mxu0
    %v1951 = vpop.f32.mrf.mxu0
    %1952 = vdwg.mxu0
    %1953 = vmatprep.subr.bf16.mxu0 %v1452
    %1954 = vmatpush1.bf16.msra.mxu0 %v1451
    %1955 = vmatprep.subr.bf16.mxu0 %v1448
    %1956 = vmatpush1.bf16.msra.mxu0 %v1447
    %1957 = vmatprep.subr.bf16.mxu0 %v1444
    %1958 = vmatpush1.bf16.msra.mxu0 %v1443
    %1959 = vmatprep.subr.bf16.mxu0 %v1440
    %1960 = vmatpush1.bf16.msra.mxu0 %v1439
    %1961 = vmatprep.subr.bf16.mxu0 %v1436
    %1962 = vmatpush1.bf16.msra.mxu0 %v1435
    %1963 = vmatprep.subr.bf16.mxu0 %v1432
    %1964 = vmatpush1.bf16.msra.mxu0 %v1431
    %1965 = vmatprep.subr.bf16.mxu0 %v1428
    %1966 = vmatpush1.bf16.msra.mxu0 %v1427
    %1967 = vmatprep.subr.bf16.mxu0 %v1424
    %1968 = vmatpush1.bf16.msra.mxu0 %v1423
    %1969 = vmatprep.subr.bf16.mxu0 %v1484
    %1970 = vmatpush2.bf16.msra.mxu0 %v1483
    %1971 = vmatprep.subr.bf16.mxu0 %v1480
    %1972 = vmatpush2.bf16.msra.mxu0 %v1479
    %1973 = vmatprep.subr.bf16.mxu0 %v1476
    %1974 = vmatpush2.bf16.msra.mxu0 %v1475
    %1975 = vmatprep.subr.bf16.mxu0 %v1472
    %1976 = vmatpush2.bf16.msra.mxu0 %v1471
    %1977 = vmatprep.subr.bf16.mxu0 %v1468
    %1978 = vmatpush2.bf16.msra.mxu0 %v1467
    %1979 = vmatprep.subr.bf16.mxu0 %v1464
    %1980 = vmatpush2.bf16.msra.mxu0 %v1463
    %1981 = vmatprep.subr.bf16.mxu0 %v1460
    %1982 = vmatpush2.bf16.msra.mxu0 %v1459
    %1983 = vmatprep.subr.bf16.mxu0 %v1456
    %1984 = vmatpush2.bf16.msra.mxu0 %v1455
    %1985 = vmatprep.mubr.bf16.mxu0 %v418
    %1986 = vmatmul.mubr.bf16.gmra.mxu0 %v417
    %v1987 = vpop.f32.mrf.mxu0
    %v1988 = vadd.f32 %v1947, %v1987
    %v1989 = vpop.f32.mrf.mxu0
    %v1990 = vadd.f32 %v1949, %v1989
    %v1991 = vpop.f32.mrf.mxu0
    %v1992 = vpop.f32.mrf.mxu0
    %1993 = vdwg.mxu0
    %1994 = vmatprep.subr.bf16.mxu0 %v1516
    %1995 = vmatpush1.bf16.msra.mxu0 %v1515
    %1996 = vmatprep.subr.bf16.mxu0 %v1512
    %1997 = vmatpush1.bf16.msra.mxu0 %v1511
    %1998 = vmatprep.subr.bf16.mxu0 %v1508
    %1999 = vmatpush1.bf16.msra.mxu0 %v1507
    %2000 = vmatprep.subr.bf16.mxu0 %v1504
    %2001 = vmatpush1.bf16.msra.mxu0 %v1503
    %2002 = vmatprep.subr.bf16.mxu0 %v1500
    %2003 = vmatpush1.bf16.msra.mxu0 %v1499
    %2004 = vmatprep.subr.bf16.mxu0 %v1496
    %2005 = vmatpush1.bf16.msra.mxu0 %v1495
    %2006 = vmatprep.subr.bf16.mxu0 %v1492
    %2007 = vmatpush1.bf16.msra.mxu0 %v1491
    %2008 = vmatprep.subr.bf16.mxu0 %v1488
    %2009 = vmatpush1.bf16.msra.mxu0 %v1487
    %2010 = vmatprep.subr.bf16.mxu0 %v1548
    %2011 = vmatpush2.bf16.msra.mxu0 %v1547
    %2012 = vmatprep.subr.bf16.mxu0 %v1544
    %2013 = vmatpush2.bf16.msra.mxu0 %v1543
    %2014 = vmatprep.subr.bf16.mxu0 %v1540
    %2015 = vmatpush2.bf16.msra.mxu0 %v1539
    %2016 = vmatprep.subr.bf16.mxu0 %v1536
    %2017 = vmatpush2.bf16.msra.mxu0 %v1535
    %2018 = vmatprep.subr.bf16.mxu0 %v1532
    %2019 = vmatpush2.bf16.msra.mxu0 %v1531
    %2020 = vmatprep.subr.bf16.mxu0 %v1528
    %2021 = vmatpush2.bf16.msra.mxu0 %v1527
    %2022 = vmatprep.subr.bf16.mxu0 %v1524
    %2023 = vmatpush2.bf16.msra.mxu0 %v1523
    %2024 = vmatprep.subr.bf16.mxu0 %v1520
    %2025 = vmatpush2.bf16.msra.mxu0 %v1519
    %2026 = vmatprep.mubr.bf16.mxu0 %v420
    %2027 = vmatmul.mubr.bf16.gmra.mxu0 %v419
    %v2028 = vpop.f32.mrf.mxu0
    %v2029 = vadd.f32 %v1988, %v2028
    %v2030 = vpop.f32.mrf.mxu0
    %v2031 = vadd.f32 %v1990, %v2030
    %v2032 = vpop.f32.mrf.mxu0
    %v2033 = vpop.f32.mrf.mxu0
    %2034 = vdwg.mxu0
    %2035 = vmatprep.subr.bf16.mxu0 %v1580
    %2036 = vmatpush1.bf16.msra.mxu0 %v1579
    %2037 = vmatprep.subr.bf16.mxu0 %v1576
    %2038 = vmatpush1.bf16.msra.mxu0 %v1575
    %2039 = vmatprep.subr.bf16.mxu0 %v1572
    %2040 = vmatpush1.bf16.msra.mxu0 %v1571
    %2041 = vmatprep.subr.bf16.mxu0 %v1568
    %2042 = vmatpush1.bf16.msra.mxu0 %v1567
    %2043 = vmatprep.subr.bf16.mxu0 %v1564
    %2044 = vmatpush1.bf16.msra.mxu0 %v1563
    %2045 = vmatprep.subr.bf16.mxu0 %v1560
    %2046 = vmatpush1.bf16.msra.mxu0 %v1559
    %2047 = vmatprep.subr.bf16.mxu0 %v1556
    %2048 = vmatpush1.bf16.msra.mxu0 %v1555
    %2049 = vmatprep.subr.bf16.mxu0 %v1552
    %2050 = vmatpush1.bf16.msra.mxu0 %v1551
    %2051 = vmatprep.subr.bf16.mxu0 0
    %2052 = vmatpush2.bf16.msra.mxu0 0
    %2053 = vmatprep.subr.bf16.mxu0 0
    %2054 = vmatpush2.bf16.msra.mxu0 0
    %2055 = vmatprep.subr.bf16.mxu0 0
    %2056 = vmatpush2.bf16.msra.mxu0 0
    %2057 = vmatprep.subr.bf16.mxu0 0
    %2058 = vmatpush2.bf16.msra.mxu0 0
    %2059 = vmatprep.subr.bf16.mxu0 0
    %2060 = vmatpush2.bf16.msra.mxu0 0
    %2061 = vmatprep.subr.bf16.mxu0 0
    %2062 = vmatpush2.bf16.msra.mxu0 0
    %2063 = vmatprep.subr.bf16.mxu0 0
    %2064 = vmatpush2.bf16.msra.mxu0 0
    %2065 = vmatprep.subr.bf16.mxu0 0
    %2066 = vmatpush2.bf16.msra.mxu0 0
    %2067 = vmatprep.mubr.bf16.mxu0 0
    %2068 = vmatmul.mubr.bf16.gmra.mxu0 %v421
    %v2069 = vpop.f32.mrf.mxu0
    %v2070 = vadd.f32 %v2029, %v2069
    %v2071 = vpop.f32.mrf.mxu0
    %v2072 = vadd.f32 %v2031, %v2071
    %v2073 = vpop.f32.mrf.mxu0
    %v2074 = vpop.f32.mrf.mxu0
    %2075 = vdwg.mxu0
    %2076 = vmatprep.subr.bf16.mxu0 %v1326
    %2077 = vmatpush1.bf16.msra.mxu0 %v1325
    %2078 = vmatprep.subr.bf16.mxu0 %v1322
    %2079 = vmatpush1.bf16.msra.mxu0 %v1321
    %2080 = vmatprep.subr.bf16.mxu0 %v1318
    %2081 = vmatpush1.bf16.msra.mxu0 %v1317
    %2082 = vmatprep.subr.bf16.mxu0 %v1314
    %2083 = vmatpush1.bf16.msra.mxu0 %v1313
    %2084 = vmatprep.subr.bf16.mxu0 %v1310
    %2085 = vmatpush1.bf16.msra.mxu0 %v1309
    %2086 = vmatprep.subr.bf16.mxu0 %v1306
    %2087 = vmatpush1.bf16.msra.mxu0 %v1305
    %2088 = vmatprep.subr.bf16.mxu0 %v1302
    %2089 = vmatpush1.bf16.msra.mxu0 %v1301
    %2090 = vmatprep.subr.bf16.mxu0 %v1298
    %2091 = vmatpush1.bf16.msra.mxu0 %v1297
    %2092 = vmatprep.subr.bf16.mxu0 %v1358
    %2093 = vmatpush2.bf16.msra.mxu0 %v1357
    %2094 = vmatprep.subr.bf16.mxu0 %v1354
    %2095 = vmatpush2.bf16.msra.mxu0 %v1353
    %2096 = vmatprep.subr.bf16.mxu0 %v1350
    %2097 = vmatpush2.bf16.msra.mxu0 %v1349
    %2098 = vmatprep.subr.bf16.mxu0 %v1346
    %2099 = vmatpush2.bf16.msra.mxu0 %v1345
    %2100 = vmatprep.subr.bf16.mxu0 %v1342
    %2101 = vmatpush2.bf16.msra.mxu0 %v1341
    %2102 = vmatprep.subr.bf16.mxu0 %v1338
    %2103 = vmatpush2.bf16.msra.mxu0 %v1337
    %2104 = vmatprep.subr.bf16.mxu0 %v1334
    %2105 = vmatpush2.bf16.msra.mxu0 %v1333
    %2106 = vmatprep.subr.bf16.mxu0 %v1330
    %2107 = vmatpush2.bf16.msra.mxu0 %v1329
    %2108 = vmatprep.mubr.bf16.mxu0 %v414
    %2109 = vmatmul.mubr.bf16.gmra.mxu0 %v413
    %v2110 = vpop.f32.mrf.mxu0
    %v2111 = vadd.f32 %v390, %v2110
    %v2112 = vpop.f32.mrf.mxu0
    %v2113 = vadd.f32 %v394, %v2112
    %v2114 = vpop.f32.mrf.mxu0
    %v2115 = vpop.f32.mrf.mxu0
    %2116 = vdwg.mxu0
    %2117 = vmatprep.subr.bf16.mxu0 %v1390
    %2118 = vmatpush1.bf16.msra.mxu0 %v1389
    %2119 = vmatprep.subr.bf16.mxu0 %v1386
    %2120 = vmatpush1.bf16.msra.mxu0 %v1385
    %2121 = vmatprep.subr.bf16.mxu0 %v1382
    %2122 = vmatpush1.bf16.msra.mxu0 %v1381
    %2123 = vmatprep.subr.bf16.mxu0 %v1378
    %2124 = vmatpush1.bf16.msra.mxu0 %v1377
    %2125 = vmatprep.subr.bf16.mxu0 %v1374
    %2126 = vmatpush1.bf16.msra.mxu0 %v1373
    %2127 = vmatprep.subr.bf16.mxu0 %v1370
    %2128 = vmatpush1.bf16.msra.mxu0 %v1369
    %2129 = vmatprep.subr.bf16.mxu0 %v1366
    %2130 = vmatpush1.bf16.msra.mxu0 %v1365
    %2131 = vmatprep.subr.bf16.mxu0 %v1362
    %2132 = vmatpush1.bf16.msra.mxu0 %v1361
    %2133 = vmatprep.subr.bf16.mxu0 %v1422
    %2134 = vmatpush2.bf16.msra.mxu0 %v1421
    %2135 = vmatprep.subr.bf16.mxu0 %v1418
    %2136 = vmatpush2.bf16.msra.mxu0 %v1417
    %2137 = vmatprep.subr.bf16.mxu0 %v1414
    %2138 = vmatpush2.bf16.msra.mxu0 %v1413
    %2139 = vmatprep.subr.bf16.mxu0 %v1410
    %2140 = vmatpush2.bf16.msra.mxu0 %v1409
    %2141 = vmatprep.subr.bf16.mxu0 %v1406
    %2142 = vmatpush2.bf16.msra.mxu0 %v1405
    %2143 = vmatprep.subr.bf16.mxu0 %v1402
    %2144 = vmatpush2.bf16.msra.mxu0 %v1401
    %2145 = vmatprep.subr.bf16.mxu0 %v1398
    %2146 = vmatpush2.bf16.msra.mxu0 %v1397
    %2147 = vmatprep.subr.bf16.mxu0 %v1394
    %2148 = vmatpush2.bf16.msra.mxu0 %v1393
    %2149 = vmatprep.mubr.bf16.mxu0 %v416
    %2150 = vmatmul.mubr.bf16.gmra.mxu0 %v415
    %v2151 = vpop.f32.mrf.mxu0
    %v2152 = vadd.f32 %v2111, %v2151
    %v2153 = vpop.f32.mrf.mxu0
    %v2154 = vadd.f32 %v2113, %v2153
    %v2155 = vpop.f32.mrf.mxu0
    %v2156 = vpop.f32.mrf.mxu0
    %2157 = vdwg.mxu0
    %2158 = vmatprep.subr.bf16.mxu0 %v1454
    %2159 = vmatpush1.bf16.msra.mxu0 %v1453
    %2160 = vmatprep.subr.bf16.mxu0 %v1450
    %2161 = vmatpush1.bf16.msra.mxu0 %v1449
    %2162 = vmatprep.subr.bf16.mxu0 %v1446
    %2163 = vmatpush1.bf16.msra.mxu0 %v1445
    %2164 = vmatprep.subr.bf16.mxu0 %v1442
    %2165 = vmatpush1.bf16.msra.mxu0 %v1441
    %2166 = vmatprep.subr.bf16.mxu0 %v1438
    %2167 = vmatpush1.bf16.msra.mxu0 %v1437
    %2168 = vmatprep.subr.bf16.mxu0 %v1434
    %2169 = vmatpush1.bf16.msra.mxu0 %v1433
    %2170 = vmatprep.subr.bf16.mxu0 %v1430
    %2171 = vmatpush1.bf16.msra.mxu0 %v1429
    %2172 = vmatprep.subr.bf16.mxu0 %v1426
    %2173 = vmatpush1.bf16.msra.mxu0 %v1425
    %2174 = vmatprep.subr.bf16.mxu0 %v1486
    %2175 = vmatpush2.bf16.msra.mxu0 %v1485
    %2176 = vmatprep.subr.bf16.mxu0 %v1482
    %2177 = vmatpush2.bf16.msra.mxu0 %v1481
    %2178 = vmatprep.subr.bf16.mxu0 %v1478
    %2179 = vmatpush2.bf16.msra.mxu0 %v1477
    %2180 = vmatprep.subr.bf16.mxu0 %v1474
    %2181 = vmatpush2.bf16.msra.mxu0 %v1473
    %2182 = vmatprep.subr.bf16.mxu0 %v1470
    %2183 = vmatpush2.bf16.msra.mxu0 %v1469
    %2184 = vmatprep.subr.bf16.mxu0 %v1466
    %2185 = vmatpush2.bf16.msra.mxu0 %v1465
    %2186 = vmatprep.subr.bf16.mxu0 %v1462
    %2187 = vmatpush2.bf16.msra.mxu0 %v1461
    %2188 = vmatprep.subr.bf16.mxu0 %v1458
    %2189 = vmatpush2.bf16.msra.mxu0 %v1457
    %2190 = vmatprep.mubr.bf16.mxu0 %v418
    %2191 = vmatmul.mubr.bf16.gmra.mxu0 %v417
    %v2192 = vpop.f32.mrf.mxu0
    %v2193 = vadd.f32 %v2152, %v2192
    %v2194 = vpop.f32.mrf.mxu0
    %v2195 = vadd.f32 %v2154, %v2194
    %v2196 = vpop.f32.mrf.mxu0
    %v2197 = vpop.f32.mrf.mxu0
    %2198 = vdwg.mxu0
    %2199 = vmatprep.subr.bf16.mxu0 %v1518
    %2200 = vmatpush1.bf16.msra.mxu0 %v1517
    %2201 = vmatprep.subr.bf16.mxu0 %v1514
    %2202 = vmatpush1.bf16.msra.mxu0 %v1513
    %2203 = vmatprep.subr.bf16.mxu0 %v1510
    %2204 = vmatpush1.bf16.msra.mxu0 %v1509
    %2205 = vmatprep.subr.bf16.mxu0 %v1506
    %2206 = vmatpush1.bf16.msra.mxu0 %v1505
    %2207 = vmatprep.subr.bf16.mxu0 %v1502
    %2208 = vmatpush1.bf16.msra.mxu0 %v1501
    %2209 = vmatprep.subr.bf16.mxu0 %v1498
    %2210 = vmatpush1.bf16.msra.mxu0 %v1497
    %2211 = vmatprep.subr.bf16.mxu0 %v1494
    %2212 = vmatpush1.bf16.msra.mxu0 %v1493
    %2213 = vmatprep.subr.bf16.mxu0 %v1490
    %2214 = vmatpush1.bf16.msra.mxu0 %v1489
    %2215 = vmatprep.subr.bf16.mxu0 %v1550
    %2216 = vmatpush2.bf16.msra.mxu0 %v1549
    %2217 = vmatprep.subr.bf16.mxu0 %v1546
    %2218 = vmatpush2.bf16.msra.mxu0 %v1545
    %2219 = vmatprep.subr.bf16.mxu0 %v1542
    %2220 = vmatpush2.bf16.msra.mxu0 %v1541
    %2221 = vmatprep.subr.bf16.mxu0 %v1538
    %2222 = vmatpush2.bf16.msra.mxu0 %v1537
    %2223 = vmatprep.subr.bf16.mxu0 %v1534
    %2224 = vmatpush2.bf16.msra.mxu0 %v1533
    %2225 = vmatprep.subr.bf16.mxu0 %v1530
    %2226 = vmatpush2.bf16.msra.mxu0 %v1529
    %2227 = vmatprep.subr.bf16.mxu0 %v1526
    %2228 = vmatpush2.bf16.msra.mxu0 %v1525
    %2229 = vmatprep.subr.bf16.mxu0 %v1522
    %2230 = vmatpush2.bf16.msra.mxu0 %v1521
    %2231 = vmatprep.mubr.bf16.mxu0 %v420
    %2232 = vmatmul.mubr.bf16.gmra.mxu0 %v419
    %v2233 = vpop.f32.mrf.mxu0
    %v2234 = vadd.f32 %v2193, %v2233
    %v2235 = vpop.f32.mrf.mxu0
    %v2236 = vadd.f32 %v2195, %v2235
    %v2237 = vpop.f32.mrf.mxu0
    %v2238 = vpop.f32.mrf.mxu0
    %2239 = vdwg.mxu0
    %2240 = vmatprep.subr.bf16.mxu0 %v1582
    %2241 = vmatpush1.bf16.msra.mxu0 %v1581
    %2242 = vmatprep.subr.bf16.mxu0 %v1578
    %2243 = vmatpush1.bf16.msra.mxu0 %v1577
    %2244 = vmatprep.subr.bf16.mxu0 %v1574
    %2245 = vmatpush1.bf16.msra.mxu0 %v1573
    %2246 = vmatprep.subr.bf16.mxu0 %v1570
    %2247 = vmatpush1.bf16.msra.mxu0 %v1569
    %2248 = vmatprep.subr.bf16.mxu0 %v1566
    %2249 = vmatpush1.bf16.msra.mxu0 %v1565
    %2250 = vmatprep.subr.bf16.mxu0 %v1562
    %2251 = vmatpush1.bf16.msra.mxu0 %v1561
    %2252 = vmatprep.subr.bf16.mxu0 %v1558
    %2253 = vmatpush1.bf16.msra.mxu0 %v1557
    %2254 = vmatprep.subr.bf16.mxu0 %v1554
    %2255 = vmatpush1.bf16.msra.mxu0 %v1553
    %2256 = vmatprep.subr.bf16.mxu0 0
    %2257 = vmatpush2.bf16.msra.mxu0 0
    %2258 = vmatprep.subr.bf16.mxu0 0
    %2259 = vmatpush2.bf16.msra.mxu0 0
    %2260 = vmatprep.subr.bf16.mxu0 0
    %2261 = vmatpush2.bf16.msra.mxu0 0
    %2262 = vmatprep.subr.bf16.mxu0 0
    %2263 = vmatpush2.bf16.msra.mxu0 0
    %2264 = vmatprep.subr.bf16.mxu0 0
    %2265 = vmatpush2.bf16.msra.mxu0 0
    %2266 = vmatprep.subr.bf16.mxu0 0
    %2267 = vmatpush2.bf16.msra.mxu0 0
    %2268 = vmatprep.subr.bf16.mxu0 0
    %2269 = vmatpush2.bf16.msra.mxu0 0
    %2270 = vmatprep.subr.bf16.mxu0 0
    %2271 = vmatpush2.bf16.msra.mxu0 0
    %2272 = vmatprep.mubr.bf16.mxu0 0
    %2273 = vmatmul.mubr.bf16.gmra.mxu0 %v421
    %v2274 = vpop.f32.mrf.mxu0
    %v2275 = vadd.f32 %v2234, %v2274
    %v2276 = vpop.f32.mrf.mxu0
    %v2277 = vadd.f32 %v2236, %v2276
    %v2278 = vpop.f32.mrf.mxu0
    %v2279 = vpop.f32.mrf.mxu0
    %2280 = vdwg.mxu0
    %v2281 = vmax.f32 %v2070, 0.0
    %v2282 = vmax.f32 %v2072, 0.0
    %v2283 = vmax.f32 %v2275, 0.0
    %v2284 = vmax.f32 %v2277, 0.0
    %v2285 = vpack.c.bf16 %v2281, %v2281
    %v2286 = vpack.c.bf16 %v2282, %v2282
    %v2287 = vpack.c.bf16 %v2283, %v2283
    %v2288 = vpack.c.bf16 %v2284, %v2284
    %v2289 = vld [vmem:[#allocation8] sm:$0xf]
    %v2290 = vld [vmem:[#allocation8 + $0x4] sm:$0xf]
    %v2291 = vld [vmem:[#allocation8 + $0x8] sm:$0xf]
    %v2292 = vld [vmem:[#allocation8 + $0xc] sm:$0xf]
    %v2293 = vld [vmem:[#allocation8 + $0x10] sm:$0xf]
    %v2294 = vld [vmem:[#allocation8 + $0x14] sm:$0xf]
    %v2295 = vld [vmem:[#allocation8 + $0x18] sm:$0xf]
    %v2296 = vld [vmem:[#allocation8 + $0x1c] sm:$0xf]
    %v2297 = vld [vmem:[#allocation8 + $0x20] sm:$0xf]
    %v2298 = vld [vmem:[#allocation8 + $0x24] sm:$0xf]
    %v2299 = vld [vmem:[#allocation8 + $0x28] sm:$0xf]
    %v2300 = vld [vmem:[#allocation8 + $0x2c] sm:$0xf]
    %v2301 = vld [vmem:[#allocation8 + $0x30] sm:$0xf]
    %v2302 = vld [vmem:[#allocation8 + $0x34] sm:$0xf]
    %v2303 = vld [vmem:[#allocation8 + $0x38] sm:$0xf]
    %v2304 = vld [vmem:[#allocation8 + $0x3c] sm:$0xf]
    %v2305 = vld [vmem:[#allocation8 + $0x40] sm:$0xf]
    %v2306 = vld [vmem:[#allocation8 + $0x44] sm:$0xf]
    %v2307 = vld [vmem:[#allocation8 + $0x48] sm:$0xf]
    %v2308 = vld [vmem:[#allocation8 + $0x4c] sm:$0xf]
    %v2309 = vld [vmem:[#allocation8 + $0x50] sm:$0xf]
    %v2310 = vld [vmem:[#allocation8 + $0x54] sm:$0xf]
    %v2311 = vld [vmem:[#allocation8 + $0x58] sm:$0xf]
    %v2312 = vld [vmem:[#allocation8 + $0x5c] sm:$0xf]
    %v2313 = vld [vmem:[#allocation8 + $0x60] sm:$0xf]
    %v2314 = vld [vmem:[#allocation8 + $0x64] sm:$0xf]
    %v2315 = vld [vmem:[#allocation8 + $0x68] sm:$0xf]
    %v2316 = vld [vmem:[#allocation8 + $0x6c] sm:$0xf]
    %v2317 = vld [vmem:[#allocation8 + $0x70] sm:$0xf]
    %v2318 = vld [vmem:[#allocation8 + $0x74] sm:$0xf]
    %v2319 = vld [vmem:[#allocation8 + $0x78] sm:$0xf]
    %v2320 = vld [vmem:[#allocation8 + $0x7c] sm:$0xf]
    %v2321 = vld [vmem:[#allocation8 + $0x80] sm:$0xf]
    %v2322 = vld [vmem:[#allocation8 + $0x84] sm:$0xf]
    %v2323 = vld [vmem:[#allocation8 + $0x88] sm:$0xf]
    %v2324 = vld [vmem:[#allocation8 + $0x8c] sm:$0xf]
    %v2325 = vld [vmem:[#allocation8 + $0x90] sm:$0xf]
    %v2326 = vld [vmem:[#allocation8 + $0x94] sm:$0xf]
    %v2327 = vld [vmem:[#allocation8 + $0x98] sm:$0xf]
    %v2328 = vld [vmem:[#allocation8 + $0x9c] sm:$0xf]
    %v2329 = vld [vmem:[#allocation8 + $0xa0] sm:$0xf]
    %v2330 = vld [vmem:[#allocation8 + $0xa4] sm:$0xf]
    %v2331 = vld [vmem:[#allocation8 + $0xa8] sm:$0xf]
    %v2332 = vld [vmem:[#allocation8 + $0xac] sm:$0xf]
    %v2333 = vld [vmem:[#allocation8 + $0xb0] sm:$0xf]
    %v2334 = vld [vmem:[#allocation8 + $0xb4] sm:$0xf]
    %v2335 = vld [vmem:[#allocation8 + $0xb8] sm:$0xf]
    %v2336 = vld [vmem:[#allocation8 + $0xbc] sm:$0xf]
    %v2337 = vld [vmem:[#allocation8 + $0xc0] sm:$0xf]
    %v2338 = vld [vmem:[#allocation8 + $0xc4] sm:$0xf]
    %v2339 = vld [vmem:[#allocation8 + $0xc8] sm:$0xf]
    %v2340 = vld [vmem:[#allocation8 + $0xcc] sm:$0xf]
    %v2341 = vld [vmem:[#allocation8 + $0xd0] sm:$0xf]
    %v2342 = vld [vmem:[#allocation8 + $0xd4] sm:$0xf]
    %v2343 = vld [vmem:[#allocation8 + $0xd8] sm:$0xf]
    %v2344 = vld [vmem:[#allocation8 + $0xdc] sm:$0xf]
    %v2345 = vld [vmem:[#allocation8 + $0xe0] sm:$0xf]
    %v2346 = vld [vmem:[#allocation8 + $0xe4] sm:$0xf]
    %v2347 = vld [vmem:[#allocation8 + $0xe8] sm:$0xf]
    %v2348 = vld [vmem:[#allocation8 + $0xec] sm:$0xf]
    %v2349 = vld [vmem:[#allocation8 + $0xf0] sm:$0xf]
    %v2350 = vld [vmem:[#allocation8 + $0xf4] sm:$0xf]
    %v2351 = vld [vmem:[#allocation8 + $0xf8] sm:$0xf]
    %v2352 = vld [vmem:[#allocation8 + $0xfc] sm:$0xf]
    %v2353 = vld [vmem:[#allocation10] sm:$0x1]
    %v2355 = vlaneseq
    %v2356 = vshrl.u32 %v2355, 7
    %v2357 = vsub.s32 0, %v2356
    %v2358 = vrot.slane %v2353, %v2357
    %v2424 = vunpack.c.l.b16 %v2289
    %v2425 = vunpack.c.l.b16 %v2290
    %v2426 = vunpack.c.l.b16 %v2291
    %v2427 = vunpack.c.l.b16 %v2292
    %v2428 = vunpack.c.l.b16 %v2293
    %v2429 = vunpack.c.l.b16 %v2294
    %v2430 = vunpack.c.l.b16 %v2295
    %v2431 = vunpack.c.l.b16 %v2296
    %v2432 = vunpack.c.l.b16 %v2297
    %v2433 = vunpack.c.l.b16 %v2298
    %v2434 = vunpack.c.l.b16 %v2299
    %v2435 = vunpack.c.l.b16 %v2300
    %v2436 = vunpack.c.l.b16 %v2301
    %v2437 = vunpack.c.l.b16 %v2302
    %v2438 = vunpack.c.l.b16 %v2303
    %v2439 = vunpack.c.l.b16 %v2304
    %v2440 = vunpack.c.l.b16 %v2305
    %v2441 = vunpack.c.l.b16 %v2306
    %v2442 = vunpack.c.l.b16 %v2307
    %v2443 = vunpack.c.l.b16 %v2308
    %v2444 = vunpack.c.l.b16 %v2309
    %v2445 = vunpack.c.l.b16 %v2310
    %v2446 = vunpack.c.l.b16 %v2311
    %v2447 = vunpack.c.l.b16 %v2312
    %v2448 = vunpack.c.l.b16 %v2313
    %v2449 = vunpack.c.l.b16 %v2314
    %v2450 = vunpack.c.l.b16 %v2315
    %v2451 = vunpack.c.l.b16 %v2316
    %v2452 = vunpack.c.l.b16 %v2317
    %v2453 = vunpack.c.l.b16 %v2318
    %v2454 = vunpack.c.l.b16 %v2319
    %v2455 = vunpack.c.l.b16 %v2320
    %v2456 = vunpack.c.l.b16 %v2321
    %v2457 = vunpack.c.l.b16 %v2322
    %v2458 = vunpack.c.l.b16 %v2323
    %v2459 = vunpack.c.l.b16 %v2324
    %v2460 = vunpack.c.l.b16 %v2325
    %v2461 = vunpack.c.l.b16 %v2326
    %v2462 = vunpack.c.l.b16 %v2327
    %v2463 = vunpack.c.l.b16 %v2328
    %v2464 = vunpack.c.l.b16 %v2329
    %v2465 = vunpack.c.l.b16 %v2330
    %v2466 = vunpack.c.l.b16 %v2331
    %v2467 = vunpack.c.l.b16 %v2332
    %v2468 = vunpack.c.l.b16 %v2333
    %v2469 = vunpack.c.l.b16 %v2334
    %v2470 = vunpack.c.l.b16 %v2335
    %v2471 = vunpack.c.l.b16 %v2336
    %v2472 = vunpack.c.l.b16 %v2337
    %v2473 = vunpack.c.l.b16 %v2338
    %v2474 = vunpack.c.l.b16 %v2339
    %v2475 = vunpack.c.l.b16 %v2340
    %v2476 = vunpack.c.l.b16 %v2341
    %v2477 = vunpack.c.l.b16 %v2342
    %v2478 = vunpack.c.l.b16 %v2343
    %v2479 = vunpack.c.l.b16 %v2344
    %v2480 = vunpack.c.l.b16 %v2345
    %v2481 = vunpack.c.l.b16 %v2346
    %v2482 = vunpack.c.l.b16 %v2347
    %v2483 = vunpack.c.l.b16 %v2348
    %v2484 = vunpack.c.l.b16 %v2349
    %v2485 = vunpack.c.l.b16 %v2350
    %v2486 = vunpack.c.l.b16 %v2351
    %v2487 = vunpack.c.l.b16 %v2352
    %v2488 = vpack.c.b16 %v2425, %v2424
    %v2489 = vpack.c.b16 %v2427, %v2426
    %v2490 = vpack.c.b16 %v2429, %v2428
    %v2491 = vpack.c.b16 %v2431, %v2430
    %v2492 = vpack.c.b16 %v2433, %v2432
    %v2493 = vpack.c.b16 %v2435, %v2434
    %v2494 = vpack.c.b16 %v2437, %v2436
    %v2495 = vpack.c.b16 %v2439, %v2438
    %v2496 = vpack.c.b16 %v2441, %v2440
    %v2497 = vpack.c.b16 %v2443, %v2442
    %v2498 = vpack.c.b16 %v2445, %v2444
    %v2499 = vpack.c.b16 %v2447, %v2446
    %v2500 = vpack.c.b16 %v2449, %v2448
    %v2501 = vpack.c.b16 %v2451, %v2450
    %v2502 = vpack.c.b16 %v2453, %v2452
    %v2503 = vpack.c.b16 %v2455, %v2454
    %v2504 = vpack.c.b16 %v2457, %v2456
    %v2505 = vpack.c.b16 %v2459, %v2458
    %v2506 = vpack.c.b16 %v2461, %v2460
    %v2507 = vpack.c.b16 %v2463, %v2462
    %v2508 = vpack.c.b16 %v2465, %v2464
    %v2509 = vpack.c.b16 %v2467, %v2466
    %v2510 = vpack.c.b16 %v2469, %v2468
    %v2511 = vpack.c.b16 %v2471, %v2470
    %v2512 = vpack.c.b16 %v2473, %v2472
    %v2513 = vpack.c.b16 %v2475, %v2474
    %v2514 = vpack.c.b16 %v2477, %v2476
    %v2515 = vpack.c.b16 %v2479, %v2478
    %v2516 = vpack.c.b16 %v2481, %v2480
    %v2517 = vpack.c.b16 %v2483, %v2482
    %v2518 = vpack.c.b16 %v2485, %v2484
    %v2519 = vpack.c.b16 %v2487, %v2486
    %2552 = vmatprep.subr.bf16.mxu0 0
    %2553 = vmatpush1.bf16.msra.mxu0 %v2495
    %2554 = vmatprep.subr.bf16.mxu0 0
    %2555 = vmatpush1.bf16.msra.mxu0 %v2494
    %2556 = vmatprep.subr.bf16.mxu0 0
    %2557 = vmatpush1.bf16.msra.mxu0 %v2493
    %2558 = vmatprep.subr.bf16.mxu0 0
    %2559 = vmatpush1.bf16.msra.mxu0 %v2492
    %2560 = vmatprep.subr.bf16.mxu0 0
    %2561 = vmatpush1.bf16.msra.mxu0 %v2491
    %2562 = vmatprep.subr.bf16.mxu0 0
    %2563 = vmatpush1.bf16.msra.mxu0 %v2490
    %2564 = vmatprep.subr.bf16.mxu0 0
    %2565 = vmatpush1.bf16.msra.mxu0 %v2489
    %2566 = vmatprep.subr.bf16.mxu0 0
    %2567 = vmatpush1.bf16.msra.mxu0 %v2488
    %2568 = vmatprep.subr.bf16.mxu0 0
    %2569 = vmatpush2.bf16.msra.mxu0 %v2503
    %2570 = vmatprep.subr.bf16.mxu0 0
    %2571 = vmatpush2.bf16.msra.mxu0 %v2502
    %2572 = vmatprep.subr.bf16.mxu0 0
    %2573 = vmatpush2.bf16.msra.mxu0 %v2501
    %2574 = vmatprep.subr.bf16.mxu0 0
    %2575 = vmatpush2.bf16.msra.mxu0 %v2500
    %2576 = vmatprep.subr.bf16.mxu0 0
    %2577 = vmatpush2.bf16.msra.mxu0 %v2499
    %2578 = vmatprep.subr.bf16.mxu0 0
    %2579 = vmatpush2.bf16.msra.mxu0 %v2498
    %2580 = vmatprep.subr.bf16.mxu0 0
    %2581 = vmatpush2.bf16.msra.mxu0 %v2497
    %2582 = vmatprep.subr.bf16.mxu0 0
    %2583 = vmatpush2.bf16.msra.mxu0 %v2496
    %2584 = vmatprep.mubr.bf16.mxu0 %v2286
    %2585 = vmatmul.mubr.bf16.gmra.mxu0 %v2285
    %v2586 = vpop.f32.mrf.mxu0
    %v2587 = vadd.f32 %v2358, %v2586
    %v2588 = vpop.f32.mrf.mxu0
    %v2589 = vpop.f32.mrf.mxu0
    %v2590 = vpop.f32.mrf.mxu0
    %2591 = vdwg.mxu0
    %2592 = vmatprep.subr.bf16.mxu0 0
    %2593 = vmatpush1.bf16.msra.mxu0 %v2511
    %2594 = vmatprep.subr.bf16.mxu0 0
    %2595 = vmatpush1.bf16.msra.mxu0 %v2510
    %2596 = vmatprep.subr.bf16.mxu0 0
    %2597 = vmatpush1.bf16.msra.mxu0 %v2509
    %2598 = vmatprep.subr.bf16.mxu0 0
    %2599 = vmatpush1.bf16.msra.mxu0 %v2508
    %2600 = vmatprep.subr.bf16.mxu0 0
    %2601 = vmatpush1.bf16.msra.mxu0 %v2507
    %2602 = vmatprep.subr.bf16.mxu0 0
    %2603 = vmatpush1.bf16.msra.mxu0 %v2506
    %2604 = vmatprep.subr.bf16.mxu0 0
    %2605 = vmatpush1.bf16.msra.mxu0 %v2505
    %2606 = vmatprep.subr.bf16.mxu0 0
    %2607 = vmatpush1.bf16.msra.mxu0 %v2504
    %2608 = vmatprep.subr.bf16.mxu0 0
    %2609 = vmatpush2.bf16.msra.mxu0 %v2519
    %2610 = vmatprep.subr.bf16.mxu0 0
    %2611 = vmatpush2.bf16.msra.mxu0 %v2518
    %2612 = vmatprep.subr.bf16.mxu0 0
    %2613 = vmatpush2.bf16.msra.mxu0 %v2517
    %2614 = vmatprep.subr.bf16.mxu0 0
    %2615 = vmatpush2.bf16.msra.mxu0 %v2516
    %2616 = vmatprep.subr.bf16.mxu0 0
    %2617 = vmatpush2.bf16.msra.mxu0 %v2515
    %2618 = vmatprep.subr.bf16.mxu0 0
    %2619 = vmatpush2.bf16.msra.mxu0 %v2514
    %2620 = vmatprep.subr.bf16.mxu0 0
    %2621 = vmatpush2.bf16.msra.mxu0 %v2513
    %2622 = vmatprep.subr.bf16.mxu0 0
    %2623 = vmatpush2.bf16.msra.mxu0 %v2512
    %2624 = vmatprep.mubr.bf16.mxu0 %v2288
    %2625 = vmatmul.mubr.bf16.gmra.mxu0 %v2287
    %v2626 = vpop.f32.mrf.mxu0
    %v2627 = vadd.f32 %v2587, %v2626
    %v2628 = vpop.f32.mrf.mxu0
    %v2629 = vpop.f32.mrf.mxu0
    %v2630 = vpop.f32.mrf.mxu0
    %2631 = vdwg.mxu0
    %2632 = vst [vmem:[#allocation11] sm:$0xff] %v2627
    // Predicated region
    $region42: #{tpu_custom_call.1} parent=1 // pred_check
      _
    $region43: #{tpu_custom_call.1} parent=1 // pred_check_branch
      %2634 = sbr.rel (0) target = $region45
    $region44: #{tpu_custom_call.1} parent=1 // pred_region
      %s2636 = ssub.s32 128, 128
      %2637 = vsyncadd [#allocation4], %s2636
      %s2639 = sshll.u32 [#allocation11], 4
      %s2640 = int_to_ptr.vmem [resolvable:$true] %s2639
      %2642 = dma.vmem_to_hbm [thread:$0]  %s2640, 128, %s5, [#allocation4]
    $region45: #{tpu_custom_call.1} parent=1 // pred_fallthru
      _
    // Predicated region
    $region46: #{tpu_custom_call.1} parent=1 // pred_check
      _
    $region47: #{tpu_custom_call.1} parent=1 // pred_check_branch
      %2644 = sbr.rel (0) target = $region49
    $region48: #{tpu_custom_call.1} parent=1 // pred_region
      %2645 = dma.done [#allocation4], 128
    $region49: #{tpu_custom_call.1} parent=1 // pred_fallthru
      _
    %2646 = vsyncpa [#allocation3], 1
    %2647 = vsyncpa [#allocation6], 1
    %2648 = vsyncpa [#allocation9], 1
    %2649 = vsyncpa [#allocation4], 1

// kernel: tpu_custom_call.1
$region0: #{tpu_custom_call.1}
  #allocation0 [shape = 'u32[]', space=smem, size = 0x4, offset = 0x4, fixed_abs, tag = 'smem constant byte address 0x4 - core index']
  #allocation1 [shape = 'u32[144,128]{1,0:T(1,128)}', space=vmem, size = 0x12000, scoped, tag = 'internal scratch']
  %s0 = inlined_call_operand.hbm [shape: bf16[8,1152], index: 0, kind: input, shape index: {}]
  %s1 = inlined_call_operand.hbm [shape: bf16[1152,512], index: 1, kind: input, shape index: {}]
  %s2 = inlined_call_operand.hbm [shape: f32[1,512], index: 2, kind: input, shape index: {}]
  %s3 = inlined_call_operand.hbm [shape: bf16[512,128], index: 3, kind: input, shape index: {}]
  %s4 = inlined_call_operand.hbm [shape: f32[1,128], index: 4, kind: input, shape index: {}]
  %s5 = inlined_call_operand.hbm [shape: f32[8,128], index: 5, kind: output, shape index: {}]
  %s6 = sld [smem:[#allocation0]]
  $region50: #{tpu_custom_call.1} parent=0
    _
  %s8 = ssub.s32 1, %s6
  %s9 = scalar_select 0, %s8, %s6
  $region1: #{tpu_custom_call.1} parent=0
    #allocation2 [shape = 'u8[18432]{0}', space=vmem, size = 0x4800, scoped, tag = 'input window, operand 0, single buffered']
    #allocation3 [shape = 's32[1]{0}', space=sflag, size = 0x4, scoped, tag = 'scoped memory for tpu_custom_call.1']
    #allocation4 [shape = 's32[1]{0}', space=sflag, size = 0x4, scoped, tag = 'scoped memory for tpu_custom_call.1']
    #allocation5 [shape = 'u8[1179648]{0}', space=vmem, size = 0x120000, scoped, tag = 'input window, operand 1, single buffered']
    #allocation6 [shape = 's32[1]{0}', space=sflag, size = 0x4, scoped, tag = 'scoped memory for tpu_custom_call.1']
    #allocation7 [shape = 'u8[2048]{0}', space=vmem, size = 0x800, scoped, tag = 'input window, operand 2, single buffered']
    #allocation8 [shape = 'u8[131072]{0}', space=vmem, size = 0x20000, scoped, tag = 'input window, operand 3, single buffered']
    #allocation9 [shape = 's32[1]{0}', space=sflag, size = 0x4, scoped, tag = 'scoped memory for tpu_custom_call.1']
    #allocation10 [shape = 'u8[512]{0}', space=vmem, size = 0x400, scoped, tag = 'input window, operand 4, single buffered']
    #allocation11 [shape = 'u8[4096]{0}', space=vmem, size = 0x1000, scoped, tag = 'output window, operand 0, single buffered']
    %10 = vsyncpa [#allocation3], 0
    %11 = vsyncpa [#allocation6], 0
    %12 = vsyncpa [#allocation9], 0
    %13 = vsyncpa [#allocation4], 0
    // Predicated region
    $region2: #{tpu_custom_call.1} parent=1 // pred_check
      _
    $region3: #{tpu_custom_call.1} parent=1 // pred_check_branch
      %15 = sbr.rel (0) target = $region5
    $region4: #{tpu_custom_call.1} parent=1 // pred_region
      %s17 = ssub.s32 576, 576
      %18 = vsyncadd [#allocation3], %s17
      %s20 = sshll.u32 [#allocation2], 4
      %s21 = int_to_ptr.vmem [resolvable:$true] %s20
      %23 = dma.hbm_to_vmem [thread:$0]  %s0, 576, %s21, [#allocation3]
    $region5: #{tpu_custom_call.1} parent=1 // pred_fallthru
      _
    // Predicated region
    $region6: #{tpu_custom_call.1} parent=1 // pred_check
      _
    $region7: #{tpu_custom_call.1} parent=1 // pred_check_branch
      %25 = sbr.rel (0) target = $region9
    $region8: #{tpu_custom_call.1} parent=1 // pred_region
      %s27 = ssub.s32 36864, 36864
      %28 = vsyncadd [#allocation6], %s27
      %s29 = sshll.u32 [#allocation5], 4
      %s30 = int_to_ptr.vmem [resolvable:$true] %s29
      %35 = dma.hbm_to_vmem [thread:$0]  %s1, 36864, %s30, [#allocation6], 256, 256, 16
    $region9: #{tpu_custom_call.1} parent=1 // pred_fallthru
      _
    // Predicated region
    $region10: #{tpu_custom_call.1} parent=1 // pred_check
      _
    $region11: #{tpu_custom_call.1} parent=1 // pred_check_branch
      %37 = sbr.rel (0) target = $region13
    $region12: #{tpu_custom_call.1} parent=1 // pred_region
      %s39 = ssub.s32 64, 64
      %40 = vsyncadd [#allocation6], %s39
      %s42 = sshll.u32 [#allocation7], 4
      %s43 = int_to_ptr.vmem [resolvable:$true] %s42
      %45 = dma.hbm_to_vmem [thread:$0]  %s2, 64, %s43, [#allocation6]
    $region13: #{tpu_custom_call.1} parent=1 // pred_fallthru
      _
    // Predicated region
    $region14: #{tpu_custom_call.1} parent=1 // pred_check
      _
    $region15: #{tpu_custom_call.1} parent=1 // pred_check_branch
      %47 = sbr.rel (0) target = $region17
    $region16: #{tpu_custom_call.1} parent=1 // pred_region
      %s49 = ssub.s32 4096, 4096
      %50 = vsyncadd [#allocation9], %s49
      %s51 = sshll.u32 [#allocation8], 4
      %s52 = int_to_ptr.vmem [resolvable:$true] %s51
      %57 = dma.hbm_to_vmem [thread:$0]  %s3, 4096, %s52, [#allocation9], 64, 64, 4
    $region17: #{tpu_custom_call.1} parent=1 // pred_fallthru
      _
    // Predicated region
    $region18: #{tpu_custom_call.1} parent=1 // pred_check
      _
    $region19: #{tpu_custom_call.1} parent=1 // pred_check_branch
      %59 = sbr.rel (0) target = $region21
    $region20: #{tpu_custom_call.1} parent=1 // pred_region
      %s61 = ssub.s32 16, 16
      %62 = vsyncadd [#allocation9], %s61
      %s64 = sshll.u32 [#allocation10], 4
      %s65 = int_to_ptr.vmem [resolvable:$true] %s64
      %67 = dma.hbm_to_vmem [thread:$0]  %s4, 16, %s65, [#allocation9]
    $region21: #{tpu_custom_call.1} parent=1 // pred_fallthru
      _
    // Predicated region
    $region22: #{tpu_custom_call.1} parent=1 // pred_check
      _
    $region23: #{tpu_custom_call.1} parent=1 // pred_check_branch
      %69 = sbr.rel (0) target = $region25
    $region24: #{tpu_custom_call.1} parent=1 // pred_region
      %70 = dma.done [#allocation3], 576
    $region25: #{tpu_custom_call.1} parent=1 // pred_fallthru
      _
    // Predicated region
    $region26: #{tpu_custom_call.1} parent=1 // pred_check
      _
    $region27: #{tpu_custom_call.1} parent=1 // pred_check_branch
      %72 = sbr.rel (0) target = $region29
    $region28: #{tpu_custom_call.1} parent=1 // pred_region
      %73 = dma.done [#allocation6], 36864
    $region29: #{tpu_custom_call.1} parent=1 // pred_fallthru
      _
    // Predicated region
    $region30: #{tpu_custom_call.1} parent=1 // pred_check
      _
    $region31: #{tpu_custom_call.1} parent=1 // pred_check_branch
      %75 = sbr.rel (0) target = $region33
    $region32: #{tpu_custom_call.1} parent=1 // pred_region
      %76 = dma.done [#allocation6], 64
    $region33: #{tpu_custom_call.1} parent=1 // pred_fallthru
      _
    // Predicated region
    $region34: #{tpu_custom_call.1} parent=1 // pred_check
      _
    $region35: #{tpu_custom_call.1} parent=1 // pred_check_branch
      %78 = sbr.rel (0) target = $region37
    $region36: #{tpu_custom_call.1} parent=1 // pred_region
      %79 = dma.done [#allocation9], 4096
    $region37: #{tpu_custom_call.1} parent=1 // pred_fallthru
      _
    // Predicated region
    $region38: #{tpu_custom_call.1} parent=1 // pred_check
      _
    $region39: #{tpu_custom_call.1} parent=1 // pred_check_branch
      %81 = sbr.rel (0) target = $region41
    $region40: #{tpu_custom_call.1} parent=1 // pred_region
      %82 = dma.done [#allocation9], 16
    $region41: #{tpu_custom_call.1} parent=1 // pred_fallthru
      _
    %v84 = vld [vmem:[#allocation2] sm:$0xff]
    %v85 = vld [vmem:[#allocation2 + $0x8] sm:$0xff]
    %v86 = vld [vmem:[#allocation2 + $0x10] sm:$0xff]
    %v87 = vld [vmem:[#allocation2 + $0x18] sm:$0xff]
    %v88 = vld [vmem:[#allocation2 + $0x20] sm:$0xf]
    %v89 = vld [vmem:[#allocation5] sm:$0xff]
    %v90 = vld [vmem:[#allocation5 + $0x8] sm:$0xff]
    %v91 = vld [vmem:[#allocation5 + $0x10] sm:$0xff]
    %v92 = vld [vmem:[#allocation5 + $0x18] sm:$0xff]
    %v93 = vld [vmem:[#allocation5 + $0x20] sm:$0xff]
    %v94 = vld [vmem:[#allocation5 + $0x28] sm:$0xff]
    %v95 = vld [vmem:[#allocation5 + $0x30] sm:$0xff]
    %v96 = vld [vmem:[#allocation5 + $0x38] sm:$0xff]
    %v97 = vld [vmem:[#allocation5 + $0x40] sm:$0xff]
    %v98 = vld [vmem:[#allocation5 + $0x48] sm:$0xff]
    %v99 = vld [vmem:[#allocation5 + $0x50] sm:$0xff]
    %v100 = vld [vmem:[#allocation5 + $0x58] sm:$0xff]
    %v101 = vld [vmem:[#allocation5 + $0x60] sm:$0xff]
    %v102 = vld [vmem:[#allocation5 + $0x68] sm:$0xff]
    %v103 = vld [vmem:[#allocation5 + $0x70] sm:$0xff]
    %v104 = vld [vmem:[#allocation5 + $0x78] sm:$0xff]
    %v105 = vld [vmem:[#allocation5 + $0x80] sm:$0xff]
    %v106 = vld [vmem:[#allocation5 + $0x88] sm:$0xff]
    %v107 = vld [vmem:[#allocation5 + $0x90] sm:$0xff]
    %v108 = vld [vmem:[#allocation5 + $0x98] sm:$0xff]
    %v109 = vld [vmem:[#allocation5 + $0xa0] sm:$0xff]
    %v110 = vld [vmem:[#allocation5 + $0xa8] sm:$0xff]
    %v111 = vld [vmem:[#allocation5 + $0xb0] sm:$0xff]
    %v112 = vld [vmem:[#allocation5 + $0xb8] sm:$0xff]
    %v113 = vld [vmem:[#allocation5 + $0xc0] sm:$0xff]
    %v114 = vld [vmem:[#allocation5 + $0xc8] sm:$0xff]
    %v115 = vld [vmem:[#allocation5 + $0xd0] sm:$0xff]
    %v116 = vld [vmem:[#allocation5 + $0xd8] sm:$0xff]
    %v117 = vld [vmem:[#allocation5 + $0xe0] sm:$0xff]
    %v118 = vld [vmem:[#allocation5 + $0xe8] sm:$0xff]
    %v119 = vld [vmem:[#allocation5 + $0xf0] sm:$0xff]
    %v120 = vld [vmem:[#allocation5 + $0xf8] sm:$0xff]
    %v121 = vld [vmem:[#allocation5 + $0x100] sm:$0xff]
    %v122 = vld [vmem:[#allocation5 + $0x108] sm:$0xff]
    %v123 = vld [vmem:[#allocation5 + $0x110] sm:$0xff]
    %v124 = vld [vmem:[#allocation5 + $0x118] sm:$0xff]
    %v125 = vld [vmem:[#allocation5 + $0x120] sm:$0xff]
    %v126 = vld [vmem:[#allocation5 + $0x128] sm:$0xff]
    %v127 = vld [vmem:[#allocation5 + $0x130] sm:$0xff]
    %v128 = vld [vmem:[#allocation5 + $0x138] sm:$0xff]
    %v129 = vld [vmem:[#allocation5 + $0x140] sm:$0xff]
    %v130 = vld [vmem:[#allocation5 + $0x148] sm:$0xff]
    %v131 = vld [vmem:[#allocation5 + $0x150] sm:$0xff]
    %v132 = vld [vmem:[#allocation5 + $0x158] sm:$0xff]
    %v133 = vld [vmem:[#allocation5 + $0x160] sm:$0xff]
    %v134 = vld [vmem:[#allocation5 + $0x168] sm:$0xff]
    %v135 = vld [vmem:[#allocation5 + $0x170] sm:$0xff]
    %v136 = vld [vmem:[#allocation5 + $0x178] sm:$0xff]
    %v137 = vld [vmem:[#allocation5 + $0x180] sm:$0xff]
    %v138 = vld [vmem:[#allocation5 + $0x188] sm:$0xff]
    %v139 = vld [vmem:[#allocation5 + $0x190] sm:$0xff]
    %v140 = vld [vmem:[#allocation5 + $0x198] sm:$0xff]
    %v141 = vld [vmem:[#allocation5 + $0x1a0] sm:$0xff]
    %v142 = vld [vmem:[#allocation5 + $0x1a8] sm:$0xff]
    %v143 = vld [vmem:[#allocation5 + $0x1b0] sm:$0xff]
    %v144 = vld [vmem:[#allocation5 + $0x1b8] sm:$0xff]
    %v145 = vld [vmem:[#allocation5 + $0x1c0] sm:$0xff]
    %v146 = vld [vmem:[#allocation5 + $0x1c8] sm:$0xff]
    %v147 = vld [vmem:[#allocation5 + $0x1d0] sm:$0xff]
    %v148 = vld [vmem:[#allocation5 + $0x1d8] sm:$0xff]
    %v149 = vld [vmem:[#allocation5 + $0x1e0] sm:$0xff]
    %v150 = vld [vmem:[#allocation5 + $0x1e8] sm:$0xff]
    %v151 = vld [vmem:[#allocation5 + $0x1f0] sm:$0xff]
    %v152 = vld [vmem:[#allocation5 + $0x1f8] sm:$0xff]
    %v153 = vld [vmem:[#allocation5 + $0x200] sm:$0xff]
    %v154 = vld [vmem:[#allocation5 + $0x208] sm:$0xff]
    %v155 = vld [vmem:[#allocation5 + $0x210] sm:$0xff]
    %v156 = vld [vmem:[#allocation5 + $0x218] sm:$0xff]
    %v157 = vld [vmem:[#allocation5 + $0x220] sm:$0xff]
    %v158 = vld [vmem:[#allocation5 + $0x228] sm:$0xff]
    %v159 = vld [vmem:[#allocation5 + $0x230] sm:$0xff]
    %v160 = vld [vmem:[#allocation5 + $0x238] sm:$0xff]
    %v161 = vld [vmem:[#allocation5 + $0x240] sm:$0xff]
    %v162 = vld [vmem:[#allocation5 + $0x248] sm:$0xff]
    %v163 = vld [vmem:[#allocation5 + $0x250] sm:$0xff]
    %v164 = vld [vmem:[#allocation5 + $0x258] sm:$0xff]
    %v165 = vld [vmem:[#allocation5 + $0x260] sm:$0xff]
    %v166 = vld [vmem:[#allocation5 + $0x268] sm:$0xff]
    %v167 = vld [vmem:[#allocation5 + $0x270] sm:$0xff]
    %v168 = vld [vmem:[#allocation5 + $0x278] sm:$0xff]
    %v169 = vld [vmem:[#allocation5 + $0x280] sm:$0xff]
    %v170 = vld [vmem:[#allocation5 + $0x288] sm:$0xff]
    %v171 = vld [vmem:[#allocation5 + $0x290] sm:$0xff]
    %v172 = vld [vmem:[#allocation5 + $0x298] sm:$0xff]
    %v173 = vld [vmem:[#allocation5 + $0x2a0] sm:$0xff]
    %v174 = vld [vmem:[#allocation5 + $0x2a8] sm:$0xff]
    %v175 = vld [vmem:[#allocation5 + $0x2b0] sm:$0xff]
    %v176 = vld [vmem:[#allocation5 + $0x2b8] sm:$0xff]
    %v177 = vld [vmem:[#allocation5 + $0x2c0] sm:$0xff]
    %v178 = vld [vmem:[#allocation5 + $0x2c8] sm:$0xff]
    %v179 = vld [vmem:[#allocation5 + $0x2d0] sm:$0xff]
    %v180 = vld [vmem:[#allocation5 + $0x2d8] sm:$0xff]
    %v181 = vld [vmem:[#allocation5 + $0x2e0] sm:$0xff]
    %v182 = vld [vmem:[#allocation5 + $0x2e8] sm:$0xff]
    %v183 = vld [vmem:[#allocation5 + $0x2f0] sm:$0xff]
    %v184 = vld [vmem:[#allocation5 + $0x2f8] sm:$0xff]
    %v185 = vld [vmem:[#allocation5 + $0x300] sm:$0xff]
    %v186 = vld [vmem:[#allocation5 + $0x308] sm:$0xff]
    %v187 = vld [vmem:[#allocation5 + $0x310] sm:$0xff]
    %v188 = vld [vmem:[#allocation5 + $0x318] sm:$0xff]
    %v189 = vld [vmem:[#allocation5 + $0x320] sm:$0xff]
    %v190 = vld [vmem:[#allocation5 + $0x328] sm:$0xff]
    %v191 = vld [vmem:[#allocation5 + $0x330] sm:$0xff]
    %v192 = vld [vmem:[#allocation5 + $0x338] sm:$0xff]
    %v193 = vld [vmem:[#allocation5 + $0x340] sm:$0xff]
    %v194 = vld [vmem:[#allocation5 + $0x348] sm:$0xff]
    %v195 = vld [vmem:[#allocation5 + $0x350] sm:$0xff]
    %v196 = vld [vmem:[#allocation5 + $0x358] sm:$0xff]
    %v197 = vld [vmem:[#allocation5 + $0x360] sm:$0xff]
    %v198 = vld [vmem:[#allocation5 + $0x368] sm:$0xff]
    %v199 = vld [vmem:[#allocation5 + $0x370] sm:$0xff]
    %v200 = vld [vmem:[#allocation5 + $0x378] sm:$0xff]
    %v201 = vld [vmem:[#allocation5 + $0x380] sm:$0xff]
    %v202 = vld [vmem:[#allocation5 + $0x388] sm:$0xff]
    %v203 = vld [vmem:[#allocation5 + $0x390] sm:$0xff]
    %v204 = vld [vmem:[#allocation5 + $0x398] sm:$0xff]
    %v205 = vld [vmem:[#allocation5 + $0x3a0] sm:$0xff]
    %v206 = vld [vmem:[#allocation5 + $0x3a8] sm:$0xff]
    %v207 = vld [vmem:[#allocation5 + $0x3b0] sm:$0xff]
    %v208 = vld [vmem:[#allocation5 + $0x3b8] sm:$0xff]
    %v209 = vld [vmem:[#allocation5 + $0x3c0] sm:$0xff]
    %v210 = vld [vmem:[#allocation5 + $0x3c8] sm:$0xff]
    %v211 = vld [vmem:[#allocation5 + $0x3d0] sm:$0xff]
    %v212 = vld [vmem:[#allocation5 + $0x3d8] sm:$0xff]
    %v213 = vld [vmem:[#allocation5 + $0x3e0] sm:$0xff]
    %v214 = vld [vmem:[#allocation5 + $0x3e8] sm:$0xff]
    %v215 = vld [vmem:[#allocation5 + $0x3f0] sm:$0xff]
    %v216 = vld [vmem:[#allocation5 + $0x3f8] sm:$0xff]
    %v217 = vld [vmem:[#allocation5 + $0x400] sm:$0xff]
    %v218 = vld [vmem:[#allocation5 + $0x408] sm:$0xff]
    %v219 = vld [vmem:[#allocation5 + $0x410] sm:$0xff]
    %v220 = vld [vmem:[#allocation5 + $0x418] sm:$0xff]
    %v221 = vld [vmem:[#allocation5 + $0x420] sm:$0xff]
    %v222 = vld [vmem:[#allocation5 + $0x428] sm:$0xff]
    %v223 = vld [vmem:[#allocation5 + $0x430] sm:$0xff]
    %v224 = vld [vmem:[#allocation5 + $0x438] sm:$0xff]
    %v225 = vld [vmem:[#allocation5 + $0x440] sm:$0xff]
    %v226 = vld [vmem:[#allocation5 + $0x448] sm:$0xff]
    %v227 = vld [vmem:[#allocation5 + $0x450] sm:$0xff]
    %v228 = vld [vmem:[#allocation5 + $0x458] sm:$0xff]
    %v229 = vld [vmem:[#allocation5 + $0x460] sm:$0xff]
    %v230 = vld [vmem:[#allocation5 + $0x468] sm:$0xff]
    %v231 = vld [vmem:[#allocation5 + $0x470] sm:$0xff]
    %v232 = vld [vmem:[#allocation5 + $0x478] sm:$0xff]
    %v233 = vld [vmem:[#allocation5 + $0x480] sm:$0xff]
    %v234 = vld [vmem:[#allocation5 + $0x488] sm:$0xff]
    %v235 = vld [vmem:[#allocation5 + $0x490] sm:$0xff]
    %v236 = vld [vmem:[#allocation5 + $0x498] sm:$0xff]
    %v237 = vld [vmem:[#allocation5 + $0x4a0] sm:$0xff]
    %v238 = vld [vmem:[#allocation5 + $0x4a8] sm:$0xff]
    %v239 = vld [vmem:[#allocation5 + $0x4b0] sm:$0xff]
    %v240 = vld [vmem:[#allocation5 + $0x4b8] sm:$0xff]
    %v241 = vld [vmem:[#allocation5 + $0x4c0] sm:$0xff]
    %v242 = vld [vmem:[#allocation5 + $0x4c8] sm:$0xff]
    %v243 = vld [vmem:[#allocation5 + $0x4d0] sm:$0xff]
    %v244 = vld [vmem:[#allocation5 + $0x4d8] sm:$0xff]
    %v245 = vld [vmem:[#allocation5 + $0x4e0] sm:$0xff]
    %v246 = vld [vmem:[#allocation5 + $0x4e8] sm:$0xff]
    %v247 = vld [vmem:[#allocation5 + $0x4f0] sm:$0xff]
    %v248 = vld [vmem:[#allocation5 + $0x4f8] sm:$0xff]
    %v249 = vld [vmem:[#allocation5 + $0x500] sm:$0xff]
    %v250 = vld [vmem:[#allocation5 + $0x508] sm:$0xff]
    %v251 = vld [vmem:[#allocation5 + $0x510] sm:$0xff]
    %v252 = vld [vmem:[#allocation5 + $0x518] sm:$0xff]
    %v253 = vld [vmem:[#allocation5 + $0x520] sm:$0xff]
    %v254 = vld [vmem:[#allocation5 + $0x528] sm:$0xff]
    %v255 = vld [vmem:[#allocation5 + $0x530] sm:$0xff]
    %v256 = vld [vmem:[#allocation5 + $0x538] sm:$0xff]
    %v257 = vld [vmem:[#allocation5 + $0x540] sm:$0xff]
    %v258 = vld [vmem:[#allocation5 + $0x548] sm:$0xff]
    %v259 = vld [vmem:[#allocation5 + $0x550] sm:$0xff]
    %v260 = vld [vmem:[#allocation5 + $0x558] sm:$0xff]
    %v261 = vld [vmem:[#allocation5 + $0x560] sm:$0xff]
    %v262 = vld [vmem:[#allocation5 + $0x568] sm:$0xff]
    %v263 = vld [vmem:[#allocation5 + $0x570] sm:$0xff]
    %v264 = vld [vmem:[#allocation5 + $0x578] sm:$0xff]
    %v265 = vld [vmem:[#allocation5 + $0x580] sm:$0xff]
    %v266 = vld [vmem:[#allocation5 + $0x588] sm:$0xff]
    %v267 = vld [vmem:[#allocation5 + $0x590] sm:$0xff]
    %v268 = vld [vmem:[#allocation5 + $0x598] sm:$0xff]
    %v269 = vld [vmem:[#allocation5 + $0x5a0] sm:$0xff]
    %v270 = vld [vmem:[#allocation5 + $0x5a8] sm:$0xff]
    %v271 = vld [vmem:[#allocation5 + $0x5b0] sm:$0xff]
    %v272 = vld [vmem:[#allocation5 + $0x5b8] sm:$0xff]
    %v273 = vld [vmem:[#allocation5 + $0x5c0] sm:$0xff]
    %v274 = vld [vmem:[#allocation5 + $0x5c8] sm:$0xff]
    %v275 = vld [vmem:[#allocation5 + $0x5d0] sm:$0xff]
    %v276 = vld [vmem:[#allocation5 + $0x5d8] sm:$0xff]
    %v277 = vld [vmem:[#allocation5 + $0x5e0] sm:$0xff]
    %v278 = vld [vmem:[#allocation5 + $0x5e8] sm:$0xff]
    %v279 = vld [vmem:[#allocation5 + $0x5f0] sm:$0xff]
    %v280 = vld [vmem:[#allocation5 + $0x5f8] sm:$0xff]
    %v281 = vld [vmem:[#allocation5 + $0x600] sm:$0xff]
    %v282 = vld [vmem:[#allocation5 + $0x608] sm:$0xff]
    %v283 = vld [vmem:[#allocation5 + $0x610] sm:$0xff]
    %v284 = vld [vmem:[#allocation5 + $0x618] sm:$0xff]
    %v285 = vld [vmem:[#allocation5 + $0x620] sm:$0xff]
    %v286 = vld [vmem:[#allocation5 + $0x628] sm:$0xff]
    %v287 = vld [vmem:[#allocation5 + $0x630] sm:$0xff]
    %v288 = vld [vmem:[#allocation5 + $0x638] sm:$0xff]
    %v289 = vld [vmem:[#allocation5 + $0x640] sm:$0xff]
    %v290 = vld [vmem:[#allocation5 + $0x648] sm:$0xff]
    %v291 = vld [vmem:[#allocation5 + $0x650] sm:$0xff]
    %v292 = vld [vmem:[#allocation5 + $0x658] sm:$0xff]
    %v293 = vld [vmem:[#allocation5 + $0x660] sm:$0xff]
    %v294 = vld [vmem:[#allocation5 + $0x668] sm:$0xff]
    %v295 = vld [vmem:[#allocation5 + $0x670] sm:$0xff]
    %v296 = vld [vmem:[#allocation5 + $0x678] sm:$0xff]
    %v297 = vld [vmem:[#allocation5 + $0x680] sm:$0xff]
    %v298 = vld [vmem:[#allocation5 + $0x688] sm:$0xff]
    %v299 = vld [vmem:[#allocation5 + $0x690] sm:$0xff]
    %v300 = vld [vmem:[#allocation5 + $0x698] sm:$0xff]
    %v301 = vld [vmem:[#allocation5 + $0x6a0] sm:$0xff]
    %v302 = vld [vmem:[#allocation5 + $0x6a8] sm:$0xff]
    %v303 = vld [vmem:[#allocation5 + $0x6b0] sm:$0xff]
    %v304 = vld [vmem:[#allocation5 + $0x6b8] sm:$0xff]
    %v305 = vld [vmem:[#allocation5 + $0x6c0] sm:$0xff]
    %v306 = vld [vmem:[#allocation5 + $0x6c8] sm:$0xff]
    %v307 = vld [vmem:[#allocation5 + $0x6d0] sm:$0xff]
    %v308 = vld [vmem:[#allocation5 + $0x6d8] sm:$0xff]
    %v309 = vld [vmem:[#allocation5 + $0x6e0] sm:$0xff]
    %v310 = vld [vmem:[#allocation5 + $0x6e8] sm:$0xff]
    %v311 = vld [vmem:[#allocation5 + $0x6f0] sm:$0xff]
    %v312 = vld [vmem:[#allocation5 + $0x6f8] sm:$0xff]
    %v313 = vld [vmem:[#allocation5 + $0x700] sm:$0xff]
    %v314 = vld [vmem:[#allocation5 + $0x708] sm:$0xff]
    %v315 = vld [vmem:[#allocation5 + $0x710] sm:$0xff]
    %v316 = vld [vmem:[#allocation5 + $0x718] sm:$0xff]
    %v317 = vld [vmem:[#allocation5 + $0x720] sm:$0xff]
    %v318 = vld [vmem:[#allocation5 + $0x728] sm:$0xff]
    %v319 = vld [vmem:[#allocation5 + $0x730] sm:$0xff]
    %v320 = vld [vmem:[#allocation5 + $0x738] sm:$0xff]
    %v321 = vld [vmem:[#allocation5 + $0x740] sm:$0xff]
    %v322 = vld [vmem:[#allocation5 + $0x748] sm:$0xff]
    %v323 = vld [vmem:[#allocation5 + $0x750] sm:$0xff]
    %v324 = vld [vmem:[#allocation5 + $0x758] sm:$0xff]
    %v325 = vld [vmem:[#allocation5 + $0x760] sm:$0xff]
    %v326 = vld [vmem:[#allocation5 + $0x768] sm:$0xff]
    %v327 = vld [vmem:[#allocation5 + $0x770] sm:$0xff]
    %v328 = vld [vmem:[#allocation5 + $0x778] sm:$0xff]
    %v329 = vld [vmem:[#allocation5 + $0x780] sm:$0xff]
    %v330 = vld [vmem:[#allocation5 + $0x788] sm:$0xff]
    %v331 = vld [vmem:[#allocation5 + $0x790] sm:$0xff]
    %v332 = vld [vmem:[#allocation5 + $0x798] sm:$0xff]
    %v333 = vld [vmem:[#allocation5 + $0x7a0] sm:$0xff]
    %v334 = vld [vmem:[#allocation5 + $0x7a8] sm:$0xff]
    %v335 = vld [vmem:[#allocation5 + $0x7b0] sm:$0xff]
    %v336 = vld [vmem:[#allocation5 + $0x7b8] sm:$0xff]
    %v337 = vld [vmem:[#allocation5 + $0x7c0] sm:$0xff]
    %v338 = vld [vmem:[#allocation5 + $0x7c8] sm:$0xff]
    %v339 = vld [vmem:[#allocation5 + $0x7d0] sm:$0xff]
    %v340 = vld [vmem:[#allocation5 + $0x7d8] sm:$0xff]
    %v341 = vld [vmem:[#allocation5 + $0x7e0] sm:$0xff]
    %v342 = vld [vmem:[#allocation5 + $0x7e8] sm:$0xff]
    %v343 = vld [vmem:[#allocation5 + $0x7f0] sm:$0xff]
    %v344 = vld [vmem:[#allocation5 + $0x7f8] sm:$0xff]
    %v345 = vld [vmem:[#allocation5 + $0x800] sm:$0xff]
    %v346 = vld [vmem:[#allocation5 + $0x808] sm:$0xff]
    %v347 = vld [vmem:[#allocation5 + $0x810] sm:$0xff]
    %v348 = vld [vmem:[#allocation5 + $0x818] sm:$0xff]
    %v349 = vld [vmem:[#allocation5 + $0x820] sm:$0xff]
    %v350 = vld [vmem:[#allocation5 + $0x828] sm:$0xff]
    %v351 = vld [vmem:[#allocation5 + $0x830] sm:$0xff]
    %v352 = vld [vmem:[#allocation5 + $0x838] sm:$0xff]
    %v353 = vld [vmem:[#allocation5 + $0x840] sm:$0xff]
    %v354 = vld [vmem:[#allocation5 + $0x848] sm:$0xff]
    %v355 = vld [vmem:[#allocation5 + $0x850] sm:$0xff]
    %v356 = vld [vmem:[#allocation5 + $0x858] sm:$0xff]
    %v357 = vld [vmem:[#allocation5 + $0x860] sm:$0xff]
    %v358 = vld [vmem:[#allocation5 + $0x868] sm:$0xff]
    %v359 = vld [vmem:[#allocation5 + $0x870] sm:$0xff]
    %v360 = vld [vmem:[#allocation5 + $0x878] sm:$0xff]
    %v361 = vld [vmem:[#allocation5 + $0x880] sm:$0xff]
    %v362 = vld [vmem:[#allocation5 + $0x888] sm:$0xff]
    %v363 = vld [vmem:[#allocation5 + $0x890] sm:$0xff]
    %v364 = vld [vmem:[#allocation5 + $0x898] sm:$0xff]
    %v365 = vld [vmem:[#allocation5 + $0x8a0] sm:$0xff]
    %v366 = vld [vmem:[#allocation5 + $0x8a8] sm:$0xff]
    %v367 = vld [vmem:[#allocation5 + $0x8b0] sm:$0xff]
    %v368 = vld [vmem:[#allocation5 + $0x8b8] sm:$0xff]
    %v369 = vld [vmem:[#allocation5 + $0x8c0] sm:$0xff]
    %v370 = vld [vmem:[#allocation5 + $0x8c8] sm:$0xff]
    %v371 = vld [vmem:[#allocation5 + $0x8d0] sm:$0xff]
    %v372 = vld [vmem:[#allocation5 + $0x8d8] sm:$0xff]
    %v373 = vld [vmem:[#allocation5 + $0x8e0] sm:$0xff]
    %v374 = vld [vmem:[#allocation5 + $0x8e8] sm:$0xff]
    %v375 = vld [vmem:[#allocation5 + $0x8f0] sm:$0xff]
    %v376 = vld [vmem:[#allocation5 + $0x8f8] sm:$0xff]
    %v377 = vld [vmem:[#allocation7] sm:$0xf]
    %v379 = vlaneseq
    %v380 = vshrl.u32 %v379, 7
    %v381 = vsub.s32 0, %v380
    %v382 = vrot.slane %v377, %v381
    %v383 = vlaneseq
    %v384 = vshrl.u32 %v383, 7
    %v385 = vsub.s32 1, %v384
    %v386 = vrot.slane %v377, %v385
    %v387 = vlaneseq
    %v388 = vshrl.u32 %v387, 7
    %v389 = vsub.s32 2, %v388
    %v390 = vrot.slane %v377, %v389
    %v391 = vlaneseq
    %v392 = vshrl.u32 %v391, 7
    %v393 = vsub.s32 3, %v392
    %v394 = vrot.slane %v377, %v393
    %v404 = vunpack.c.l.b16 %v84
    %v405 = vunpack.c.h.b16 %v84
    %v406 = vunpack.c.l.b16 %v85
    %v407 = vunpack.c.h.b16 %v85
    %v408 = vunpack.c.l.b16 %v86
    %v409 = vunpack.c.h.b16 %v86
    %v410 = vunpack.c.l.b16 %v87
    %v411 = vunpack.c.h.b16 %v87
    %v412 = vunpack.c.l.b16 %v88
    %v413 = vpack.c.b16 %v404, %v404
    %v414 = vpack.c.b16 %v405, %v405
    %v415 = vpack.c.b16 %v406, %v406
    %v416 = vpack.c.b16 %v407, %v407
    %v417 = vpack.c.b16 %v408, %v408
    %v418 = vpack.c.b16 %v409, %v409
    %v419 = vpack.c.b16 %v410, %v410
    %v420 = vpack.c.b16 %v411, %v411
    %v421 = vpack.c.b16 %v412, %v412
    %v719 = vunpack.c.l.b16 %v89
    %v720 = vunpack.c.h.b16 %v89
    %v721 = vunpack.c.l.b16 %v90
    %v722 = vunpack.c.h.b16 %v90
    %v723 = vunpack.c.l.b16 %v91
    %v724 = vunpack.c.h.b16 %v91
    %v725 = vunpack.c.l.b16 %v92
    %v726 = vunpack.c.h.b16 %v92
    %v727 = vunpack.c.l.b16 %v93
    %v728 = vunpack.c.h.b16 %v93
    %v729 = vunpack.c.l.b16 %v94
    %v730 = vunpack.c.h.b16 %v94
    %v731 = vunpack.c.l.b16 %v95
    %v732 = vunpack.c.h.b16 %v95
    %v733 = vunpack.c.l.b16 %v96
    %v734 = vunpack.c.h.b16 %v96
    %v735 = vunpack.c.l.b16 %v97
    %v736 = vunpack.c.h.b16 %v97
    %v737 = vunpack.c.l.b16 %v98
    %v738 = vunpack.c.h.b16 %v98
    %v739 = vunpack.c.l.b16 %v99
    %v740 = vunpack.c.h.b16 %v99
    %v741 = vunpack.c.l.b16 %v100
    %v742 = vunpack.c.h.b16 %v100
    %v743 = vunpack.c.l.b16 %v101
    %v744 = vunpack.c.h.b16 %v101
    %v745 = vunpack.c.l.b16 %v102
    %v746 = vunpack.c.h.b16 %v102
    %v747 = vunpack.c.l.b16 %v103
    %v748 = vunpack.c.h.b16 %v103
    %v749 = vunpack.c.l.b16 %v104
    %v750 = vunpack.c.h.b16 %v104
    %v751 = vunpack.c.l.b16 %v105
    %v752 = vunpack.c.h.b16 %v105
    %v753 = vunpack.c.l.b16 %v106
    %v754 = vunpack.c.h.b16 %v106
    %v755 = vunpack.c.l.b16 %v107
    %v756 = vunpack.c.h.b16 %v107
    %v757 = vunpack.c.l.b16 %v108
    %v758 = vunpack.c.h.b16 %v108
    %v759 = vunpack.c.l.b16 %v109
    %v760 = vunpack.c.h.b16 %v109
    %v761 = vunpack.c.l.b16 %v110
    %v762 = vunpack.c.h.b16 %v110
    %v763 = vunpack.c.l.b16 %v111
    %v764 = vunpack.c.h.b16 %v111
    %v765 = vunpack.c.l.b16 %v112
    %v766 = vunpack.c.h.b16 %v112
    %v767 = vunpack.c.l.b16 %v113
    %v768 = vunpack.c.h.b16 %v113
    %v769 = vunpack.c.l.b16 %v114
    %v770 = vunpack.c.h.b16 %v114
    %v771 = vunpack.c.l.b16 %v115
    %v772 = vunpack.c.h.b16 %v115
    %v773 = vunpack.c.l.b16 %v116
    %v774 = vunpack.c.h.b16 %v116
    %v775 = vunpack.c.l.b16 %v117
    %v776 = vunpack.c.h.b16 %v117
    %v777 = vunpack.c.l.b16 %v118
    %v778 = vunpack.c.h.b16 %v118
    %v779 = vunpack.c.l.b16 %v119
    %v780 = vunpack.c.h.b16 %v119
    %v781 = vunpack.c.l.b16 %v120
    %v782 = vunpack.c.h.b16 %v120
    %v783 = vunpack.c.l.b16 %v121
    %v784 = vunpack.c.h.b16 %v121
    %v785 = vunpack.c.l.b16 %v122
    %v786 = vunpack.c.h.b16 %v122
    %v787 = vunpack.c.l.b16 %v123
    %v788 = vunpack.c.h.b16 %v123
    %v789 = vunpack.c.l.b16 %v124
    %v790 = vunpack.c.h.b16 %v124
    %v791 = vunpack.c.l.b16 %v125
    %v792 = vunpack.c.h.b16 %v125
    %v793 = vunpack.c.l.b16 %v126
    %v794 = vunpack.c.h.b16 %v126
    %v795 = vunpack.c.l.b16 %v127
    %v796 = vunpack.c.h.b16 %v127
    %v797 = vunpack.c.l.b16 %v128
    %v798 = vunpack.c.h.b16 %v128
    %v799 = vunpack.c.l.b16 %v129
    %v800 = vunpack.c.h.b16 %v129
    %v801 = vunpack.c.l.b16 %v130
    %v802 = vunpack.c.h.b16 %v130
    %v803 = vunpack.c.l.b16 %v131
    %v804 = vunpack.c.h.b16 %v131
    %v805 = vunpack.c.l.b16 %v132
    %v806 = vunpack.c.h.b16 %v132
    %v807 = vunpack.c.l.b16 %v133
    %v808 = vunpack.c.h.b16 %v133
    %v809 = vunpack.c.l.b16 %v134
    %v810 = vunpack.c.h.b16 %v134
    %v811 = vunpack.c.l.b16 %v135
    %v812 = vunpack.c.h.b16 %v135
    %v813 = vunpack.c.l.b16 %v136
    %v814 = vunpack.c.h.b16 %v136
    %v815 = vunpack.c.l.b16 %v137
    %v816 = vunpack.c.h.b16 %v137
    %v817 = vunpack.c.l.b16 %v138
    %v818 = vunpack.c.h.b16 %v138
    %v819 = vunpack.c.l.b16 %v139
    %v820 = vunpack.c.h.b16 %v139
    %v821 = vunpack.c.l.b16 %v140
    %v822 = vunpack.c.h.b16 %v140
    %v823 = vunpack.c.l.b16 %v141
    %v824 = vunpack.c.h.b16 %v141
    %v825 = vunpack.c.l.b16 %v142
    %v826 = vunpack.c.h.b16 %v142
    %v827 = vunpack.c.l.b16 %v143
    %v828 = vunpack.c.h.b16 %v143
    %v829 = vunpack.c.l.b16 %v144
    %v830 = vunpack.c.h.b16 %v144
    %v831 = vunpack.c.l.b16 %v145
    %v832 = vunpack.c.h.b16 %v145
    %v833 = vunpack.c.l.b16 %v146
    %v834 = vunpack.c.h.b16 %v146
    %v835 = vunpack.c.l.b16 %v147
    %v836 = vunpack.c.h.b16 %v147
    %v837 = vunpack.c.l.b16 %v148
    %v838 = vunpack.c.h.b16 %v148
    %v839 = vunpack.c.l.b16 %v149
    %v840 = vunpack.c.h.b16 %v149
    %v841 = vunpack.c.l.b16 %v150
    %v842 = vunpack.c.h.b16 %v150
    %v843 = vunpack.c.l.b16 %v151
    %v844 = vunpack.c.h.b16 %v151
    %v845 = vunpack.c.l.b16 %v152
    %v846 = vunpack.c.h.b16 %v152
    %v847 = vunpack.c.l.b16 %v153
    %v848 = vunpack.c.h.b16 %v153
    %v849 = vunpack.c.l.b16 %v154
    %v850 = vunpack.c.h.b16 %v154
    %v851 = vunpack.c.l.b16 %v155
    %v852 = vunpack.c.h.b16 %v155
    %v853 = vunpack.c.l.b16 %v156
    %v854 = vunpack.c.h.b16 %v156
    %v855 = vunpack.c.l.b16 %v157
    %v856 = vunpack.c.h.b16 %v157
    %v857 = vunpack.c.l.b16 %v158
    %v858 = vunpack.c.h.b16 %v158
    %v859 = vunpack.c.l.b16 %v159
    %v860 = vunpack.c.h.b16 %v159
    %v861 = vunpack.c.l.b16 %v160
    %v862 = vunpack.c.h.b16 %v160
    %v863 = vunpack.c.l.b16 %v161
    %v864 = vunpack.c.h.b16 %v161
    %v865 = vunpack.c.l.b16 %v162
    %v866 = vunpack.c.h.b16 %v162
    %v867 = vunpack.c.l.b16 %v163
    %v868 = vunpack.c.h.b16 %v163
    %v869 = vunpack.c.l.b16 %v164
    %v870 = vunpack.c.h.b16 %v164
    %v871 = vunpack.c.l.b16 %v165
    %v872 = vunpack.c.h.b16 %v165
    %v873 = vunpack.c.l.b16 %v166
    %v874 = vunpack.c.h.b16 %v166
    %v875 = vunpack.c.l.b16 %v167
    %v876 = vunpack.c.h.b16 %v167
    %v877 = vunpack.c.l.b16 %v168
    %v878 = vunpack.c.h.b16 %v168
    %v879 = vunpack.c.l.b16 %v169
    %v880 = vunpack.c.h.b16 %v169
    %v881 = vunpack.c.l.b16 %v170
    %v882 = vunpack.c.h.b16 %v170
    %v883 = vunpack.c.l.b16 %v171
    %v884 = vunpack.c.h.b16 %v171
    %v885 = vunpack.c.l.b16 %v172
    %v886 = vunpack.c.h.b16 %v172
    %v887 = vunpack.c.l.b16 %v173
    %v888 = vunpack.c.h.b16 %v173
    %v889 = vunpack.c.l.b16 %v174
    %v890 = vunpack.c.h.b16 %v174
    %v891 = vunpack.c.l.b16 %v175
    %v892 = vunpack.c.h.b16 %v175
    %v893 = vunpack.c.l.b16 %v176
    %v894 = vunpack.c.h.b16 %v176
    %v895 = vunpack.c.l.b16 %v177
    %v896 = vunpack.c.h.b16 %v177
    %v897 = vunpack.c.l.b16 %v178
    %v898 = vunpack.c.h.b16 %v178
    %v899 = vunpack.c.l.b16 %v179
    %v900 = vunpack.c.h.b16 %v179
    %v901 = vunpack.c.l.b16 %v180
    %v902 = vunpack.c.h.b16 %v180
    %v903 = vunpack.c.l.b16 %v181
    %v904 = vunpack.c.h.b16 %v181
    %v905 = vunpack.c.l.b16 %v182
    %v906 = vunpack.c.h.b16 %v182
    %v907 = vunpack.c.l.b16 %v183
    %v908 = vunpack.c.h.b16 %v183
    %v909 = vunpack.c.l.b16 %v184
    %v910 = vunpack.c.h.b16 %v184
    %v911 = vunpack.c.l.b16 %v185
    %v912 = vunpack.c.h.b16 %v185
    %v913 = vunpack.c.l.b16 %v186
    %v914 = vunpack.c.h.b16 %v186
    %v915 = vunpack.c.l.b16 %v187
    %v916 = vunpack.c.h.b16 %v187
    %v917 = vunpack.c.l.b16 %v188
    %v918 = vunpack.c.h.b16 %v188
    %v919 = vunpack.c.l.b16 %v189
    %v920 = vunpack.c.h.b16 %v189
    %v921 = vunpack.c.l.b16 %v190
    %v922 = vunpack.c.h.b16 %v190
    %v923 = vunpack.c.l.b16 %v191
    %v924 = vunpack.c.h.b16 %v191
    %v925 = vunpack.c.l.b16 %v192
    %v926 = vunpack.c.h.b16 %v192
    %v927 = vunpack.c.l.b16 %v193
    %v928 = vunpack.c.h.b16 %v193
    %v929 = vunpack.c.l.b16 %v194
    %v930 = vunpack.c.h.b16 %v194
    %v931 = vunpack.c.l.b16 %v195
    %v932 = vunpack.c.h.b16 %v195
    %v933 = vunpack.c.l.b16 %v196
    %v934 = vunpack.c.h.b16 %v196
    %v935 = vunpack.c.l.b16 %v197
    %v936 = vunpack.c.h.b16 %v197
    %v937 = vunpack.c.l.b16 %v198
    %v938 = vunpack.c.h.b16 %v198
    %v939 = vunpack.c.l.b16 %v199
    %v940 = vunpack.c.h.b16 %v199
    %v941 = vunpack.c.l.b16 %v200
    %v942 = vunpack.c.h.b16 %v200
    %v943 = vunpack.c.l.b16 %v201
    %v944 = vunpack.c.h.b16 %v201
    %v945 = vunpack.c.l.b16 %v202
    %v946 = vunpack.c.h.b16 %v202
    %v947 = vunpack.c.l.b16 %v203
    %v948 = vunpack.c.h.b16 %v203
    %v949 = vunpack.c.l.b16 %v204
    %v950 = vunpack.c.h.b16 %v204
    %v951 = vunpack.c.l.b16 %v205
    %v952 = vunpack.c.h.b16 %v205
    %v953 = vunpack.c.l.b16 %v206
    %v954 = vunpack.c.h.b16 %v206
    %v955 = vunpack.c.l.b16 %v207
    %v956 = vunpack.c.h.b16 %v207
    %v957 = vunpack.c.l.b16 %v208
    %v958 = vunpack.c.h.b16 %v208
    %v959 = vunpack.c.l.b16 %v209
    %v960 = vunpack.c.h.b16 %v209
    %v961 = vunpack.c.l.b16 %v210
    %v962 = vunpack.c.h.b16 %v210
    %v963 = vunpack.c.l.b16 %v211
    %v964 = vunpack.c.h.b16 %v211
    %v965 = vunpack.c.l.b16 %v212
    %v966 = vunpack.c.h.b16 %v212
    %v967 = vunpack.c.l.b16 %v213
    %v968 = vunpack.c.h.b16 %v213
    %v969 = vunpack.c.l.b16 %v214
    %v970 = vunpack.c.h.b16 %v214
    %v971 = vunpack.c.l.b16 %v215
    %v972 = vunpack.c.h.b16 %v215
    %v973 = vunpack.c.l.b16 %v216
    %v974 = vunpack.c.h.b16 %v216
    %v975 = vunpack.c.l.b16 %v217
    %v976 = vunpack.c.h.b16 %v217
    %v977 = vunpack.c.l.b16 %v218
    %v978 = vunpack.c.h.b16 %v218
    %v979 = vunpack.c.l.b16 %v219
    %v980 = vunpack.c.h.b16 %v219
    %v981 = vunpack.c.l.b16 %v220
    %v982 = vunpack.c.h.b16 %v220
    %v983 = vunpack.c.l.b16 %v221
    %v984 = vunpack.c.h.b16 %v221
    %v985 = vunpack.c.l.b16 %v222
    %v986 = vunpack.c.h.b16 %v222
    %v987 = vunpack.c.l.b16 %v223
    %v988 = vunpack.c.h.b16 %v223
    %v989 = vunpack.c.l.b16 %v224
    %v990 = vunpack.c.h.b16 %v224
    %v991 = vunpack.c.l.b16 %v225
    %v992 = vunpack.c.h.b16 %v225
    %v993 = vunpack.c.l.b16 %v226
    %v994 = vunpack.c.h.b16 %v226
    %v995 = vunpack.c.l.b16 %v227
    %v996 = vunpack.c.h.b16 %v227
    %v997 = vunpack.c.l.b16 %v228
    %v998 = vunpack.c.h.b16 %v228
    %v999 = vunpack.c.l.b16 %v229
    %v1000 = vunpack.c.h.b16 %v229
    %v1001 = vunpack.c.l.b16 %v230
    %v1002 = vunpack.c.h.b16 %v230
    %v1003 = vunpack.c.l.b16 %v231
    %v1004 = vunpack.c.h.b16 %v231
    %v1005 = vunpack.c.l.b16 %v232
    %v1006 = vunpack.c.h.b16 %v232
    %v1007 = vunpack.c.l.b16 %v233
    %v1008 = vunpack.c.h.b16 %v233
    %v1009 = vunpack.c.l.b16 %v234
    %v1010 = vunpack.c.h.b16 %v234
    %v1011 = vunpack.c.l.b16 %v235
    %v1012 = vunpack.c.h.b16 %v235
    %v1013 = vunpack.c.l.b16 %v236
    %v1014 = vunpack.c.h.b16 %v236
    %v1015 = vunpack.c.l.b16 %v237
    %v1016 = vunpack.c.h.b16 %v237
    %v1017 = vunpack.c.l.b16 %v238
    %v1018 = vunpack.c.h.b16 %v238
    %v1019 = vunpack.c.l.b16 %v239
    %v1020 = vunpack.c.h.b16 %v239
    %v1021 = vunpack.c.l.b16 %v240
    %v1022 = vunpack.c.h.b16 %v240
    %v1023 = vunpack.c.l.b16 %v241
    %v1024 = vunpack.c.h.b16 %v241
    %v1025 = vunpack.c.l.b16 %v242
    %v1026 = vunpack.c.h.b16 %v242
    %v1027 = vunpack.c.l.b16 %v243
    %v1028 = vunpack.c.h.b16 %v243
    %v1029 = vunpack.c.l.b16 %v244
    %v1030 = vunpack.c.h.b16 %v244
    %v1031 = vunpack.c.l.b16 %v245
    %v1032 = vunpack.c.h.b16 %v245
    %v1033 = vunpack.c.l.b16 %v246
    %v1034 = vunpack.c.h.b16 %v246
    %v1035 = vunpack.c.l.b16 %v247
    %v1036 = vunpack.c.h.b16 %v247
    %v1037 = vunpack.c.l.b16 %v248
    %v1038 = vunpack.c.h.b16 %v248
    %v1039 = vunpack.c.l.b16 %v249
    %v1040 = vunpack.c.h.b16 %v249
    %v1041 = vunpack.c.l.b16 %v250
    %v1042 = vunpack.c.h.b16 %v250
    %v1043 = vunpack.c.l.b16 %v251
    %v1044 = vunpack.c.h.b16 %v251
    %v1045 = vunpack.c.l.b16 %v252
    %v1046 = vunpack.c.h.b16 %v252
    %v1047 = vunpack.c.l.b16 %v253
    %v1048 = vunpack.c.h.b16 %v253
    %v1049 = vunpack.c.l.b16 %v254
    %v1050 = vunpack.c.h.b16 %v254
    %v1051 = vunpack.c.l.b16 %v255
    %v1052 = vunpack.c.h.b16 %v255
    %v1053 = vunpack.c.l.b16 %v256
    %v1054 = vunpack.c.h.b16 %v256
    %v1055 = vunpack.c.l.b16 %v257
    %v1056 = vunpack.c.h.b16 %v257
    %v1057 = vunpack.c.l.b16 %v258
    %v1058 = vunpack.c.h.b16 %v258
    %v1059 = vunpack.c.l.b16 %v259
    %v1060 = vunpack.c.h.b16 %v259
    %v1061 = vunpack.c.l.b16 %v260
    %v1062 = vunpack.c.h.b16 %v260
    %v1063 = vunpack.c.l.b16 %v261
    %v1064 = vunpack.c.h.b16 %v261
    %v1065 = vunpack.c.l.b16 %v262
    %v1066 = vunpack.c.h.b16 %v262
    %v1067 = vunpack.c.l.b16 %v263
    %v1068 = vunpack.c.h.b16 %v263
    %v1069 = vunpack.c.l.b16 %v264
    %v1070 = vunpack.c.h.b16 %v264
    %v1071 = vunpack.c.l.b16 %v265
    %v1072 = vunpack.c.h.b16 %v265
    %v1073 = vunpack.c.l.b16 %v266
    %v1074 = vunpack.c.h.b16 %v266
    %v1075 = vunpack.c.l.b16 %v267
    %v1076 = vunpack.c.h.b16 %v267
    %v1077 = vunpack.c.l.b16 %v268
    %v1078 = vunpack.c.h.b16 %v268
    %v1079 = vunpack.c.l.b16 %v269
    %v1080 = vunpack.c.h.b16 %v269
    %v1081 = vunpack.c.l.b16 %v270
    %v1082 = vunpack.c.h.b16 %v270
    %v1083 = vunpack.c.l.b16 %v271
    %v1084 = vunpack.c.h.b16 %v271
    %v1085 = vunpack.c.l.b16 %v272
    %v1086 = vunpack.c.h.b16 %v272
    %v1087 = vunpack.c.l.b16 %v273
    %v1088 = vunpack.c.h.b16 %v273
    %v1089 = vunpack.c.l.b16 %v274
    %v1090 = vunpack.c.h.b16 %v274
    %v1091 = vunpack.c.l.b16 %v275
    %v1092 = vunpack.c.h.b16 %v275
    %v1093 = vunpack.c.l.b16 %v276
    %v1094 = vunpack.c.h.b16 %v276
    %v1095 = vunpack.c.l.b16 %v277
    %v1096 = vunpack.c.h.b16 %v277
    %v1097 = vunpack.c.l.b16 %v278
    %v1098 = vunpack.c.h.b16 %v278
    %v1099 = vunpack.c.l.b16 %v279
    %v1100 = vunpack.c.h.b16 %v279
    %v1101 = vunpack.c.l.b16 %v280
    %v1102 = vunpack.c.h.b16 %v280
    %v1103 = vunpack.c.l.b16 %v281
    %v1104 = vunpack.c.h.b16 %v281
    %v1105 = vunpack.c.l.b16 %v282
    %v1106 = vunpack.c.h.b16 %v282
    %v1107 = vunpack.c.l.b16 %v283
    %v1108 = vunpack.c.h.b16 %v283
    %v1109 = vunpack.c.l.b16 %v284
    %v1110 = vunpack.c.h.b16 %v284
    %v1111 = vunpack.c.l.b16 %v285
    %v1112 = vunpack.c.h.b16 %v285
    %v1113 = vunpack.c.l.b16 %v286
    %v1114 = vunpack.c.h.b16 %v286
    %v1115 = vunpack.c.l.b16 %v287
    %v1116 = vunpack.c.h.b16 %v287
    %v1117 = vunpack.c.l.b16 %v288
    %v1118 = vunpack.c.h.b16 %v288
    %v1119 = vunpack.c.l.b16 %v289
    %v1120 = vunpack.c.h.b16 %v289
    %v1121 = vunpack.c.l.b16 %v290
    %v1122 = vunpack.c.h.b16 %v290
    %v1123 = vunpack.c.l.b16 %v291
    %v1124 = vunpack.c.h.b16 %v291
    %v1125 = vunpack.c.l.b16 %v292
    %v1126 = vunpack.c.h.b16 %v292
    %v1127 = vunpack.c.l.b16 %v293
    %v1128 = vunpack.c.h.b16 %v293
    %v1129 = vunpack.c.l.b16 %v294
    %v1130 = vunpack.c.h.b16 %v294
    %v1131 = vunpack.c.l.b16 %v295
    %v1132 = vunpack.c.h.b16 %v295
    %v1133 = vunpack.c.l.b16 %v296
    %v1134 = vunpack.c.h.b16 %v296
    %v1135 = vunpack.c.l.b16 %v297
    %v1136 = vunpack.c.h.b16 %v297
    %v1137 = vunpack.c.l.b16 %v298
    %v1138 = vunpack.c.h.b16 %v298
    %v1139 = vunpack.c.l.b16 %v299
    %v1140 = vunpack.c.h.b16 %v299
    %v1141 = vunpack.c.l.b16 %v300
    %v1142 = vunpack.c.h.b16 %v300
    %v1143 = vunpack.c.l.b16 %v301
    %v1144 = vunpack.c.h.b16 %v301
    %v1145 = vunpack.c.l.b16 %v302
    %v1146 = vunpack.c.h.b16 %v302
    %v1147 = vunpack.c.l.b16 %v303
    %v1148 = vunpack.c.h.b16 %v303
    %v1149 = vunpack.c.l.b16 %v304
    %v1150 = vunpack.c.h.b16 %v304
    %v1151 = vunpack.c.l.b16 %v305
    %v1152 = vunpack.c.h.b16 %v305
    %v1153 = vunpack.c.l.b16 %v306
    %v1154 = vunpack.c.h.b16 %v306
    %v1155 = vunpack.c.l.b16 %v307
    %v1156 = vunpack.c.h.b16 %v307
    %v1157 = vunpack.c.l.b16 %v308
    %v1158 = vunpack.c.h.b16 %v308
    %v1159 = vunpack.c.l.b16 %v309
    %v1160 = vunpack.c.h.b16 %v309
    %v1161 = vunpack.c.l.b16 %v310
    %v1162 = vunpack.c.h.b16 %v310
    %v1163 = vunpack.c.l.b16 %v311
    %v1164 = vunpack.c.h.b16 %v311
    %v1165 = vunpack.c.l.b16 %v312
    %v1166 = vunpack.c.h.b16 %v312
    %v1167 = vunpack.c.l.b16 %v313
    %v1168 = vunpack.c.h.b16 %v313
    %v1169 = vunpack.c.l.b16 %v314
    %v1170 = vunpack.c.h.b16 %v314
    %v1171 = vunpack.c.l.b16 %v315
    %v1172 = vunpack.c.h.b16 %v315
    %v1173 = vunpack.c.l.b16 %v316
    %v1174 = vunpack.c.h.b16 %v316
    %v1175 = vunpack.c.l.b16 %v317
    %v1176 = vunpack.c.h.b16 %v317
    %v1177 = vunpack.c.l.b16 %v318
    %v1178 = vunpack.c.h.b16 %v318
    %v1179 = vunpack.c.l.b16 %v319
    %v1180 = vunpack.c.h.b16 %v319
    %v1181 = vunpack.c.l.b16 %v320
    %v1182 = vunpack.c.h.b16 %v320
    %v1183 = vunpack.c.l.b16 %v321
    %v1184 = vunpack.c.h.b16 %v321
    %v1185 = vunpack.c.l.b16 %v322
    %v1186 = vunpack.c.h.b16 %v322
    %v1187 = vunpack.c.l.b16 %v323
    %v1188 = vunpack.c.h.b16 %v323
    %v1189 = vunpack.c.l.b16 %v324
    %v1190 = vunpack.c.h.b16 %v324
    %v1191 = vunpack.c.l.b16 %v325
    %v1192 = vunpack.c.h.b16 %v325
    %v1193 = vunpack.c.l.b16 %v326
    %v1194 = vunpack.c.h.b16 %v326
    %v1195 = vunpack.c.l.b16 %v327
    %v1196 = vunpack.c.h.b16 %v327
    %v1197 = vunpack.c.l.b16 %v328
    %v1198 = vunpack.c.h.b16 %v328
    %v1199 = vunpack.c.l.b16 %v329
    %v1200 = vunpack.c.h.b16 %v329
    %v1201 = vunpack.c.l.b16 %v330
    %v1202 = vunpack.c.h.b16 %v330
    %v1203 = vunpack.c.l.b16 %v331
    %v1204 = vunpack.c.h.b16 %v331
    %v1205 = vunpack.c.l.b16 %v332
    %v1206 = vunpack.c.h.b16 %v332
    %v1207 = vunpack.c.l.b16 %v333
    %v1208 = vunpack.c.h.b16 %v333
    %v1209 = vunpack.c.l.b16 %v334
    %v1210 = vunpack.c.h.b16 %v334
    %v1211 = vunpack.c.l.b16 %v335
    %v1212 = vunpack.c.h.b16 %v335
    %v1213 = vunpack.c.l.b16 %v336
    %v1214 = vunpack.c.h.b16 %v336
    %v1215 = vunpack.c.l.b16 %v337
    %v1216 = vunpack.c.h.b16 %v337
    %v1217 = vunpack.c.l.b16 %v338
    %v1218 = vunpack.c.h.b16 %v338
    %v1219 = vunpack.c.l.b16 %v339
    %v1220 = vunpack.c.h.b16 %v339
    %v1221 = vunpack.c.l.b16 %v340
    %v1222 = vunpack.c.h.b16 %v340
    %v1223 = vunpack.c.l.b16 %v341
    %v1224 = vunpack.c.h.b16 %v341
    %v1225 = vunpack.c.l.b16 %v342
    %v1226 = vunpack.c.h.b16 %v342
    %v1227 = vunpack.c.l.b16 %v343
    %v1228 = vunpack.c.h.b16 %v343
    %v1229 = vunpack.c.l.b16 %v344
    %v1230 = vunpack.c.h.b16 %v344
    %v1231 = vunpack.c.l.b16 %v345
    %v1232 = vunpack.c.h.b16 %v345
    %v1233 = vunpack.c.l.b16 %v346
    %v1234 = vunpack.c.h.b16 %v346
    %v1235 = vunpack.c.l.b16 %v347
    %v1236 = vunpack.c.h.b16 %v347
    %v1237 = vunpack.c.l.b16 %v348
    %v1238 = vunpack.c.h.b16 %v348
    %v1239 = vunpack.c.l.b16 %v349
    %v1240 = vunpack.c.h.b16 %v349
    %v1241 = vunpack.c.l.b16 %v350
    %v1242 = vunpack.c.h.b16 %v350
    %v1243 = vunpack.c.l.b16 %v351
    %v1244 = vunpack.c.h.b16 %v351
    %v1245 = vunpack.c.l.b16 %v352
    %v1246 = vunpack.c.h.b16 %v352
    %v1247 = vunpack.c.l.b16 %v353
    %v1248 = vunpack.c.h.b16 %v353
    %v1249 = vunpack.c.l.b16 %v354
    %v1250 = vunpack.c.h.b16 %v354
    %v1251 = vunpack.c.l.b16 %v355
    %v1252 = vunpack.c.h.b16 %v355
    %v1253 = vunpack.c.l.b16 %v356
    %v1254 = vunpack.c.h.b16 %v356
    %v1255 = vunpack.c.l.b16 %v357
    %v1256 = vunpack.c.h.b16 %v357
    %v1257 = vunpack.c.l.b16 %v358
    %v1258 = vunpack.c.h.b16 %v358
    %v1259 = vunpack.c.l.b16 %v359
    %v1260 = vunpack.c.h.b16 %v359
    %v1261 = vunpack.c.l.b16 %v360
    %v1262 = vunpack.c.h.b16 %v360
    %v1263 = vunpack.c.l.b16 %v361
    %v1264 = vunpack.c.h.b16 %v361
    %v1265 = vunpack.c.l.b16 %v362
    %v1266 = vunpack.c.h.b16 %v362
    %v1267 = vunpack.c.l.b16 %v363
    %v1268 = vunpack.c.h.b16 %v363
    %v1269 = vunpack.c.l.b16 %v364
    %v1270 = vunpack.c.h.b16 %v364
    %v1271 = vunpack.c.l.b16 %v365
    %v1272 = vunpack.c.h.b16 %v365
    %v1273 = vunpack.c.l.b16 %v366
    %v1274 = vunpack.c.h.b16 %v366
    %v1275 = vunpack.c.l.b16 %v367
    %v1276 = vunpack.c.h.b16 %v367
    %v1277 = vunpack.c.l.b16 %v368
    %v1278 = vunpack.c.h.b16 %v368
    %v1279 = vunpack.c.l.b16 %v369
    %v1280 = vunpack.c.h.b16 %v369
    %v1281 = vunpack.c.l.b16 %v370
    %v1282 = vunpack.c.h.b16 %v370
    %v1283 = vunpack.c.l.b16 %v371
    %v1284 = vunpack.c.h.b16 %v371
    %v1285 = vunpack.c.l.b16 %v372
    %v1286 = vunpack.c.h.b16 %v372
    %v1287 = vunpack.c.l.b16 %v373
    %v1288 = vunpack.c.h.b16 %v373
    %v1289 = vunpack.c.l.b16 %v374
    %v1290 = vunpack.c.h.b16 %v374
    %v1291 = vunpack.c.l.b16 %v375
    %v1292 = vunpack.c.h.b16 %v375
    %v1293 = vunpack.c.l.b16 %v376
    %v1294 = vunpack.c.h.b16 %v376
    %v1295 = vpack.c.b16 %v723, %v719
    %v1296 = vpack.c.b16 %v724, %v720
    %v1297 = vpack.c.b16 %v725, %v721
    %v1298 = vpack.c.b16 %v726, %v722
    %v1299 = vpack.c.b16 %v731, %v727
    %v1300 = vpack.c.b16 %v732, %v728
    %v1301 = vpack.c.b16 %v733, %v729
    %v1302 = vpack.c.b16 %v734, %v730
    %v1303 = vpack.c.b16 %v739, %v735
    %v1304 = vpack.c.b16 %v740, %v736
    %v1305 = vpack.c.b16 %v741, %v737
    %v1306 = vpack.c.b16 %v742, %v738
    %v1307 = vpack.c.b16 %v747, %v743
    %v1308 = vpack.c.b16 %v748, %v744
    %v1309 = vpack.c.b16 %v749, %v745
    %v1310 = vpack.c.b16 %v750, %v746
    %v1311 = vpack.c.b16 %v755, %v751
    %v1312 = vpack.c.b16 %v756, %v752
    %v1313 = vpack.c.b16 %v757, %v753
    %v1314 = vpack.c.b16 %v758, %v754
    %v1315 = vpack.c.b16 %v763, %v759
    %v1316 = vpack.c.b16 %v764, %v760
    %v1317 = vpack.c.b16 %v765, %v761
    %v1318 = vpack.c.b16 %v766, %v762
    %v1319 = vpack.c.b16 %v771, %v767
    %v1320 = vpack.c.b16 %v772, %v768
    %v1321 = vpack.c.b16 %v773, %v769
    %v1322 = vpack.c.b16 %v774, %v770
    %v1323 = vpack.c.b16 %v779, %v775
    %v1324 = vpack.c.b16 %v780, %v776
    %v1325 = vpack.c.b16 %v781, %v777
    %v1326 = vpack.c.b16 %v782, %v778
    %v1327 = vpack.c.b16 %v787, %v783
    %v1328 = vpack.c.b16 %v788, %v784
    %v1329 = vpack.c.b16 %v789, %v785
    %v1330 = vpack.c.b16 %v790, %v786
    %v1331 = vpack.c.b16 %v795, %v791
    %v1332 = vpack.c.b16 %v796, %v792
    %v1333 = vpack.c.b16 %v797, %v793
    %v1334 = vpack.c.b16 %v798, %v794
    %v1335 = vpack.c.b16 %v803, %v799
    %v1336 = vpack.c.b16 %v804, %v800
    %v1337 = vpack.c.b16 %v805, %v801
    %v1338 = vpack.c.b16 %v806, %v802
    %v1339 = vpack.c.b16 %v811, %v807
    %v1340 = vpack.c.b16 %v812, %v808
    %v1341 = vpack.c.b16 %v813, %v809
    %v1342 = vpack.c.b16 %v814, %v810
    %v1343 = vpack.c.b16 %v819, %v815
    %v1344 = vpack.c.b16 %v820, %v816
    %v1345 = vpack.c.b16 %v821, %v817
    %v1346 = vpack.c.b16 %v822, %v818
    %v1347 = vpack.c.b16 %v827, %v823
    %v1348 = vpack.c.b16 %v828, %v824
    %v1349 = vpack.c.b16 %v829, %v825
    %v1350 = vpack.c.b16 %v830, %v826
    %v1351 = vpack.c.b16 %v835, %v831
    %v1352 = vpack.c.b16 %v836, %v832
    %v1353 = vpack.c.b16 %v837, %v833
    %v1354 = vpack.c.b16 %v838, %v834
    %v1355 = vpack.c.b16 %v843, %v839
    %v1356 = vpack.c.b16 %v844, %v840
    %v1357 = vpack.c.b16 %v845, %v841
    %v1358 = vpack.c.b16 %v846, %v842
    %v1359 = vpack.c.b16 %v851, %v847
    %v1360 = vpack.c.b16 %v852, %v848
    %v1361 = vpack.c.b16 %v853, %v849
    %v1362 = vpack.c.b16 %v854, %v850
    %v1363 = vpack.c.b16 %v859, %v855
    %v1364 = vpack.c.b16 %v860, %v856
    %v1365 = vpack.c.b16 %v861, %v857
    %v1366 = vpack.c.b16 %v862, %v858
    %v1367 = vpack.c.b16 %v867, %v863
    %v1368 = vpack.c.b16 %v868, %v864
    %v1369 = vpack.c.b16 %v869, %v865
    %v1370 = vpack.c.b16 %v870, %v866
    %v1371 = vpack.c.b16 %v875, %v871
    %v1372 = vpack.c.b16 %v876, %v872
    %v1373 = vpack.c.b16 %v877, %v873
    %v1374 = vpack.c.b16 %v878, %v874
    %v1375 = vpack.c.b16 %v883, %v879
    %v1376 = vpack.c.b16 %v884, %v880
    %v1377 = vpack.c.b16 %v885, %v881
    %v1378 = vpack.c.b16 %v886, %v882
    %v1379 = vpack.c.b16 %v891, %v887
    %v1380 = vpack.c.b16 %v892, %v888
    %v1381 = vpack.c.b16 %v893, %v889
    %v1382 = vpack.c.b16 %v894, %v890
    %v1383 = vpack.c.b16 %v899, %v895
    %v1384 = vpack.c.b16 %v900, %v896
    %v1385 = vpack.c.b16 %v901, %v897
    %v1386 = vpack.c.b16 %v902, %v898
    %v1387 = vpack.c.b16 %v907, %v903
    %v1388 = vpack.c.b16 %v908, %v904
    %v1389 = vpack.c.b16 %v909, %v905
    %v1390 = vpack.c.b16 %v910, %v906
    %v1391 = vpack.c.b16 %v915, %v911
    %v1392 = vpack.c.b16 %v916, %v912
    %v1393 = vpack.c.b16 %v917, %v913
    %v1394 = vpack.c.b16 %v918, %v914
    %v1395 = vpack.c.b16 %v923, %v919
    %v1396 = vpack.c.b16 %v924, %v920
    %v1397 = vpack.c.b16 %v925, %v921
    %v1398 = vpack.c.b16 %v926, %v922
    %v1399 = vpack.c.b16 %v931, %v927
    %v1400 = vpack.c.b16 %v932, %v928
    %v1401 = vpack.c.b16 %v933, %v929
    %v1402 = vpack.c.b16 %v934, %v930
    %v1403 = vpack.c.b16 %v939, %v935
    %v1404 = vpack.c.b16 %v940, %v936
    %v1405 = vpack.c.b16 %v941, %v937
    %v1406 = vpack.c.b16 %v942, %v938
    %v1407 = vpack.c.b16 %v947, %v943
    %v1408 = vpack.c.b16 %v948, %v944
    %v1409 = vpack.c.b16 %v949, %v945
    %v1410 = vpack.c.b16 %v950, %v946
    %v1411 = vpack.c.b16 %v955, %v951
    %v1412 = vpack.c.b16 %v956, %v952
    %v1413 = vpack.c.b16 %v957, %v953
    %v1414 = vpack.c.b16 %v958, %v954
    %v1415 = vpack.c.b16 %v963, %v959
    %v1416 = vpack.c.b16 %v964, %v960
    %v1417 = vpack.c.b16 %v965, %v961
    %v1418 = vpack.c.b16 %v966, %v962
    %v1419 = vpack.c.b16 %v971, %v967
    %v1420 = vpack.c.b16 %v972, %v968
    %v1421 = vpack.c.b16 %v973, %v969
    %v1422 = vpack.c.b16 %v974, %v970
    %v1423 = vpack.c.b16 %v979, %v975
    %v1424 = vpack.c.b16 %v980, %v976
    %v1425 = vpack.c.b16 %v981, %v977
    %v1426 = vpack.c.b16 %v982, %v978
    %v1427 = vpack.c.b16 %v987, %v983
    %v1428 = vpack.c.b16 %v988, %v984
    %v1429 = vpack.c.b16 %v989, %v985
    %v1430 = vpack.c.b16 %v990, %v986
    %v1431 = vpack.c.b16 %v995, %v991
    %v1432 = vpack.c.b16 %v996, %v992
    %v1433 = vpack.c.b16 %v997, %v993
    %v1434 = vpack.c.b16 %v998, %v994
    %v1435 = vpack.c.b16 %v1003, %v999
    %v1436 = vpack.c.b16 %v1004, %v1000
    %v1437 = vpack.c.b16 %v1005, %v1001
    %v1438 = vpack.c.b16 %v1006, %v1002
    %v1439 = vpack.c.b16 %v1011, %v1007
    %v1440 = vpack.c.b16 %v1012, %v1008
    %v1441 = vpack.c.b16 %v1013, %v1009
    %v1442 = vpack.c.b16 %v1014, %v1010
    %v1443 = vpack.c.b16 %v1019, %v1015
    %v1444 = vpack.c.b16 %v1020, %v1016
    %v1445 = vpack.c.b16 %v1021, %v1017
    %v1446 = vpack.c.b16 %v1022, %v1018
    %v1447 = vpack.c.b16 %v1027, %v1023
    %v1448 = vpack.c.b16 %v1028, %v1024
    %v1449 = vpack.c.b16 %v1029, %v1025
    %v1450 = vpack.c.b16 %v1030, %v1026
    %v1451 = vpack.c.b16 %v1035, %v1031
    %v1452 = vpack.c.b16 %v1036, %v1032
    %v1453 = vpack.c.b16 %v1037, %v1033
    %v1454 = vpack.c.b16 %v1038, %v1034
    %v1455 = vpack.c.b16 %v1043, %v1039
    %v1456 = vpack.c.b16 %v1044, %v1040
    %v1457 = vpack.c.b16 %v1045, %v1041
    %v1458 = vpack.c.b16 %v1046, %v1042
    %v1459 = vpack.c.b16 %v1051, %v1047
    %v1460 = vpack.c.b16 %v1052, %v1048
    %v1461 = vpack.c.b16 %v1053, %v1049
    %v1462 = vpack.c.b16 %v1054, %v1050
    %v1463 = vpack.c.b16 %v1059, %v1055
    %v1464 = vpack.c.b16 %v1060, %v1056
    %v1465 = vpack.c.b16 %v1061, %v1057
    %v1466 = vpack.c.b16 %v1062, %v1058
    %v1467 = vpack.c.b16 %v1067, %v1063
    %v1468 = vpack.c.b16 %v1068, %v1064
    %v1469 = vpack.c.b16 %v1069, %v1065
    %v1470 = vpack.c.b16 %v1070, %v1066
    %v1471 = vpack.c.b16 %v1075, %v1071
    %v1472 = vpack.c.b16 %v1076, %v1072
    %v1473 = vpack.c.b16 %v1077, %v1073
    %v1474 = vpack.c.b16 %v1078, %v1074
    %v1475 = vpack.c.b16 %v1083, %v1079
    %v1476 = vpack.c.b16 %v1084, %v1080
    %v1477 = vpack.c.b16 %v1085, %v1081
    %v1478 = vpack.c.b16 %v1086, %v1082
    %v1479 = vpack.c.b16 %v1091, %v1087
    %v1480 = vpack.c.b16 %v1092, %v1088
    %v1481 = vpack.c.b16 %v1093, %v1089
    %v1482 = vpack.c.b16 %v1094, %v1090
    %v1483 = vpack.c.b16 %v1099, %v1095
    %v1484 = vpack.c.b16 %v1100, %v1096
    %v1485 = vpack.c.b16 %v1101, %v1097
    %v1486 = vpack.c.b16 %v1102, %v1098
    %v1487 = vpack.c.b16 %v1107, %v1103
    %v1488 = vpack.c.b16 %v1108, %v1104
    %v1489 = vpack.c.b16 %v1109, %v1105
    %v1490 = vpack.c.b16 %v1110, %v1106
    %v1491 = vpack.c.b16 %v1115, %v1111
    %v1492 = vpack.c.b16 %v1116, %v1112
    %v1493 = vpack.c.b16 %v1117, %v1113
    %v1494 = vpack.c.b16 %v1118, %v1114
    %v1495 = vpack.c.b16 %v1123, %v1119
    %v1496 = vpack.c.b16 %v1124, %v1120
    %v1497 = vpack.c.b16 %v1125, %v1121
    %v1498 = vpack.c.b16 %v1126, %v1122
    %v1499 = vpack.c.b16 %v1131, %v1127
    %v1500 = vpack.c.b16 %v1132, %v1128
    %v1501 = vpack.c.b16 %v1133, %v1129
    %v1502 = vpack.c.b16 %v1134, %v1130
    %v1503 = vpack.c.b16 %v1139, %v1135
    %v1504 = vpack.c.b16 %v1140, %v1136
    %v1505 = vpack.c.b16 %v1141, %v1137
    %v1506 = vpack.c.b16 %v1142, %v1138
    %v1507 = vpack.c.b16 %v1147, %v1143
    %v1508 = vpack.c.b16 %v1148, %v1144
    %v1509 = vpack.c.b16 %v1149, %v1145
    %v1510 = vpack.c.b16 %v1150, %v1146
    %v1511 = vpack.c.b16 %v1155, %v1151
    %v1512 = vpack.c.b16 %v1156, %v1152
    %v1513 = vpack.c.b16 %v1157, %v1153
    %v1514 = vpack.c.b16 %v1158, %v1154
    %v1515 = vpack.c.b16 %v1163, %v1159
    %v1516 = vpack.c.b16 %v1164, %v1160
    %v1517 = vpack.c.b16 %v1165, %v1161
    %v1518 = vpack.c.b16 %v1166, %v1162
    %v1519 = vpack.c.b16 %v1171, %v1167
    %v1520 = vpack.c.b16 %v1172, %v1168
    %v1521 = vpack.c.b16 %v1173, %v1169
    %v1522 = vpack.c.b16 %v1174, %v1170
    %v1523 = vpack.c.b16 %v1179, %v1175
    %v1524 = vpack.c.b16 %v1180, %v1176
    %v1525 = vpack.c.b16 %v1181, %v1177
    %v1526 = vpack.c.b16 %v1182, %v1178
    %v1527 = vpack.c.b16 %v1187, %v1183
    %v1528 = vpack.c.b16 %v1188, %v1184
    %v1529 = vpack.c.b16 %v1189, %v1185
    %v1530 = vpack.c.b16 %v1190, %v1186
    %v1531 = vpack.c.b16 %v1195, %v1191
    %v1532 = vpack.c.b16 %v1196, %v1192
    %v1533 = vpack.c.b16 %v1197, %v1193
    %v1534 = vpack.c.b16 %v1198, %v1194
    %v1535 = vpack.c.b16 %v1203, %v1199
    %v1536 = vpack.c.b16 %v1204, %v1200
    %v1537 = vpack.c.b16 %v1205, %v1201
    %v1538 = vpack.c.b16 %v1206, %v1202
    %v1539 = vpack.c.b16 %v1211, %v1207
    %v1540 = vpack.c.b16 %v1212, %v1208
    %v1541 = vpack.c.b16 %v1213, %v1209
    %v1542 = vpack.c.b16 %v1214, %v1210
    %v1543 = vpack.c.b16 %v1219, %v1215
    %v1544 = vpack.c.b16 %v1220, %v1216
    %v1545 = vpack.c.b16 %v1221, %v1217
    %v1546 = vpack.c.b16 %v1222, %v1218
    %v1547 = vpack.c.b16 %v1227, %v1223
    %v1548 = vpack.c.b16 %v1228, %v1224
    %v1549 = vpack.c.b16 %v1229, %v1225
    %v1550 = vpack.c.b16 %v1230, %v1226
    %v1551 = vpack.c.b16 %v1235, %v1231
    %v1552 = vpack.c.b16 %v1236, %v1232
    %v1553 = vpack.c.b16 %v1237, %v1233
    %v1554 = vpack.c.b16 %v1238, %v1234
    %v1555 = vpack.c.b16 %v1243, %v1239
    %v1556 = vpack.c.b16 %v1244, %v1240
    %v1557 = vpack.c.b16 %v1245, %v1241
    %v1558 = vpack.c.b16 %v1246, %v1242
    %v1559 = vpack.c.b16 %v1251, %v1247
    %v1560 = vpack.c.b16 %v1252, %v1248
    %v1561 = vpack.c.b16 %v1253, %v1249
    %v1562 = vpack.c.b16 %v1254, %v1250
    %v1563 = vpack.c.b16 %v1259, %v1255
    %v1564 = vpack.c.b16 %v1260, %v1256
    %v1565 = vpack.c.b16 %v1261, %v1257
    %v1566 = vpack.c.b16 %v1262, %v1258
    %v1567 = vpack.c.b16 %v1267, %v1263
    %v1568 = vpack.c.b16 %v1268, %v1264
    %v1569 = vpack.c.b16 %v1269, %v1265
    %v1570 = vpack.c.b16 %v1270, %v1266
    %v1571 = vpack.c.b16 %v1275, %v1271
    %v1572 = vpack.c.b16 %v1276, %v1272
    %v1573 = vpack.c.b16 %v1277, %v1273
    %v1574 = vpack.c.b16 %v1278, %v1274
    %v1575 = vpack.c.b16 %v1283, %v1279
    %v1576 = vpack.c.b16 %v1284, %v1280
    %v1577 = vpack.c.b16 %v1285, %v1281
    %v1578 = vpack.c.b16 %v1286, %v1282
    %v1579 = vpack.c.b16 %v1291, %v1287
    %v1580 = vpack.c.b16 %v1292, %v1288
    %v1581 = vpack.c.b16 %v1293, %v1289
    %v1582 = vpack.c.b16 %v1294, %v1290
    %1871 = vmatprep.subr.bf16.mxu0 %v1324
    %1872 = vmatpush1.bf16.msra.mxu0 %v1323
    %1873 = vmatprep.subr.bf16.mxu0 %v1320
    %1874 = vmatpush1.bf16.msra.mxu0 %v1319
    %1875 = vmatprep.subr.bf16.mxu0 %v1316
    %1876 = vmatpush1.bf16.msra.mxu0 %v1315
    %1877 = vmatprep.subr.bf16.mxu0 %v1312
    %1878 = vmatpush1.bf16.msra.mxu0 %v1311
    %1879 = vmatprep.subr.bf16.mxu0 %v1308
    %1880 = vmatpush1.bf16.msra.mxu0 %v1307
    %1881 = vmatprep.subr.bf16.mxu0 %v1304
    %1882 = vmatpush1.bf16.msra.mxu0 %v1303
    %1883 = vmatprep.subr.bf16.mxu0 %v1300
    %1884 = vmatpush1.bf16.msra.mxu0 %v1299
    %1885 = vmatprep.subr.bf16.mxu0 %v1296
    %1886 = vmatpush1.bf16.msra.mxu0 %v1295
    %1887 = vmatprep.subr.bf16.mxu0 %v1356
    %1888 = vmatpush2.bf16.msra.mxu0 %v1355
    %1889 = vmatprep.subr.bf16.mxu0 %v1352
    %1890 = vmatpush2.bf16.msra.mxu0 %v1351
    %1891 = vmatprep.subr.bf16.mxu0 %v1348
    %1892 = vmatpush2.bf16.msra.mxu0 %v1347
    %1893 = vmatprep.subr.bf16.mxu0 %v1344
    %1894 = vmatpush2.bf16.msra.mxu0 %v1343
    %1895 = vmatprep.subr.bf16.mxu0 %v1340
    %1896 = vmatpush2.bf16.msra.mxu0 %v1339
    %1897 = vmatprep.subr.bf16.mxu0 %v1336
    %1898 = vmatpush2.bf16.msra.mxu0 %v1335
    %1899 = vmatprep.subr.bf16.mxu0 %v1332
    %1900 = vmatpush2.bf16.msra.mxu0 %v1331
    %1901 = vmatprep.subr.bf16.mxu0 %v1328
    %1902 = vmatpush2.bf16.msra.mxu0 %v1327
    %1903 = vmatprep.mubr.bf16.mxu0 %v414
    %1904 = vmatmul.mubr.bf16.gmra.mxu0 %v413
    %v1905 = vpop.f32.mrf.mxu0
    %v1906 = vadd.f32 %v382, %v1905
    %v1907 = vpop.f32.mrf.mxu0
    %v1908 = vadd.f32 %v386, %v1907
    %v1909 = vpop.f32.mrf.mxu0
    %v1910 = vpop.f32.mrf.mxu0
    %1911 = vdwg.mxu0
    %1912 = vmatprep.subr.bf16.mxu0 %v1388
    %1913 = vmatpush1.bf16.msra.mxu0 %v1387
    %1914 = vmatprep.subr.bf16.mxu0 %v1384
    %1915 = vmatpush1.bf16.msra.mxu0 %v1383
    %1916 = vmatprep.subr.bf16.mxu0 %v1380
    %1917 = vmatpush1.bf16.msra.mxu0 %v1379
    %1918 = vmatprep.subr.bf16.mxu0 %v1376
    %1919 = vmatpush1.bf16.msra.mxu0 %v1375
    %1920 = vmatprep.subr.bf16.mxu0 %v1372
    %1921 = vmatpush1.bf16.msra.mxu0 %v1371
    %1922 = vmatprep.subr.bf16.mxu0 %v1368
    %1923 = vmatpush1.bf16.msra.mxu0 %v1367
    %1924 = vmatprep.subr.bf16.mxu0 %v1364
    %1925 = vmatpush1.bf16.msra.mxu0 %v1363
    %1926 = vmatprep.subr.bf16.mxu0 %v1360
    %1927 = vmatpush1.bf16.msra.mxu0 %v1359
    %1928 = vmatprep.subr.bf16.mxu0 %v1420
    %1929 = vmatpush2.bf16.msra.mxu0 %v1419
    %1930 = vmatprep.subr.bf16.mxu0 %v1416
    %1931 = vmatpush2.bf16.msra.mxu0 %v1415
    %1932 = vmatprep.subr.bf16.mxu0 %v1412
    %1933 = vmatpush2.bf16.msra.mxu0 %v1411
    %1934 = vmatprep.subr.bf16.mxu0 %v1408
    %1935 = vmatpush2.bf16.msra.mxu0 %v1407
    %1936 = vmatprep.subr.bf16.mxu0 %v1404
    %1937 = vmatpush2.bf16.msra.mxu0 %v1403
    %1938 = vmatprep.subr.bf16.mxu0 %v1400
    %1939 = vmatpush2.bf16.msra.mxu0 %v1399
    %1940 = vmatprep.subr.bf16.mxu0 %v1396
    %1941 = vmatpush2.bf16.msra.mxu0 %v1395
    %1942 = vmatprep.subr.bf16.mxu0 %v1392
    %1943 = vmatpush2.bf16.msra.mxu0 %v1391
    %1944 = vmatprep.mubr.bf16.mxu0 %v416
    %1945 = vmatmul.mubr.bf16.gmra.mxu0 %v415
    %v1946 = vpop.f32.mrf.mxu0
    %v1947 = vadd.f32 %v1906, %v1946
    %v1948 = vpop.f32.mrf.mxu0
    %v1949 = vadd.f32 %v1908, %v1948
    %v1950 = vpop.f32.mrf.mxu0
    %v1951 = vpop.f32.mrf.mxu0
    %1952 = vdwg.mxu0
    %1953 = vmatprep.subr.bf16.mxu0 %v1452
    %1954 = vmatpush1.bf16.msra.mxu0 %v1451
    %1955 = vmatprep.subr.bf16.mxu0 %v1448
    %1956 = vmatpush1.bf16.msra.mxu0 %v1447
    %1957 = vmatprep.subr.bf16.mxu0 %v1444
    %1958 = vmatpush1.bf16.msra.mxu0 %v1443
    %1959 = vmatprep.subr.bf16.mxu0 %v1440
    %1960 = vmatpush1.bf16.msra.mxu0 %v1439
    %1961 = vmatprep.subr.bf16.mxu0 %v1436
    %1962 = vmatpush1.bf16.msra.mxu0 %v1435
    %1963 = vmatprep.subr.bf16.mxu0 %v1432
    %1964 = vmatpush1.bf16.msra.mxu0 %v1431
    %1965 = vmatprep.subr.bf16.mxu0 %v1428
    %1966 = vmatpush1.bf16.msra.mxu0 %v1427
    %1967 = vmatprep.subr.bf16.mxu0 %v1424
    %1968 = vmatpush1.bf16.msra.mxu0 %v1423
    %1969 = vmatprep.subr.bf16.mxu0 %v1484
    %1970 = vmatpush2.bf16.msra.mxu0 %v1483
    %1971 = vmatprep.subr.bf16.mxu0 %v1480
    %1972 = vmatpush2.bf16.msra.mxu0 %v1479
    %1973 = vmatprep.subr.bf16.mxu0 %v1476
    %1974 = vmatpush2.bf16.msra.mxu0 %v1475
    %1975 = vmatprep.subr.bf16.mxu0 %v1472
    %1976 = vmatpush2.bf16.msra.mxu0 %v1471
    %1977 = vmatprep.subr.bf16.mxu0 %v1468
    %1978 = vmatpush2.bf16.msra.mxu0 %v1467
    %1979 = vmatprep.subr.bf16.mxu0 %v1464
    %1980 = vmatpush2.bf16.msra.mxu0 %v1463
    %1981 = vmatprep.subr.bf16.mxu0 %v1460
    %1982 = vmatpush2.bf16.msra.mxu0 %v1459
    %1983 = vmatprep.subr.bf16.mxu0 %v1456
    %1984 = vmatpush2.bf16.msra.mxu0 %v1455
    %1985 = vmatprep.mubr.bf16.mxu0 %v418
    %1986 = vmatmul.mubr.bf16.gmra.mxu0 %v417
    %v1987 = vpop.f32.mrf.mxu0
    %v1988 = vadd.f32 %v1947, %v1987
    %v1989 = vpop.f32.mrf.mxu0
    %v1990 = vadd.f32 %v1949, %v1989
    %v1991 = vpop.f32.mrf.mxu0
    %v1992 = vpop.f32.mrf.mxu0
    %1993 = vdwg.mxu0
    %1994 = vmatprep.subr.bf16.mxu0 %v1516
    %1995 = vmatpush1.bf16.msra.mxu0 %v1515
    %1996 = vmatprep.subr.bf16.mxu0 %v1512
    %1997 = vmatpush1.bf16.msra.mxu0 %v1511
    %1998 = vmatprep.subr.bf16.mxu0 %v1508
    %1999 = vmatpush1.bf16.msra.mxu0 %v1507
    %2000 = vmatprep.subr.bf16.mxu0 %v1504
    %2001 = vmatpush1.bf16.msra.mxu0 %v1503
    %2002 = vmatprep.subr.bf16.mxu0 %v1500
    %2003 = vmatpush1.bf16.msra.mxu0 %v1499
    %2004 = vmatprep.subr.bf16.mxu0 %v1496
    %2005 = vmatpush1.bf16.msra.mxu0 %v1495
    %2006 = vmatprep.subr.bf16.mxu0 %v1492
    %2007 = vmatpush1.bf16.msra.mxu0 %v1491
    %2008 = vmatprep.subr.bf16.mxu0 %v1488
    %2009 = vmatpush1.bf16.msra.mxu0 %v1487
    %2010 = vmatprep.subr.bf16.mxu0 %v1548
    %2011 = vmatpush2.bf16.msra.mxu0 %v1547
    %2012 = vmatprep.subr.bf16.mxu0 %v1544
    %2013 = vmatpush2.bf16.msra.mxu0 %v1543
    %2014 = vmatprep.subr.bf16.mxu0 %v1540
    %2015 = vmatpush2.bf16.msra.mxu0 %v1539
    %2016 = vmatprep.subr.bf16.mxu0 %v1536
    %2017 = vmatpush2.bf16.msra.mxu0 %v1535
    %2018 = vmatprep.subr.bf16.mxu0 %v1532
    %2019 = vmatpush2.bf16.msra.mxu0 %v1531
    %2020 = vmatprep.subr.bf16.mxu0 %v1528
    %2021 = vmatpush2.bf16.msra.mxu0 %v1527
    %2022 = vmatprep.subr.bf16.mxu0 %v1524
    %2023 = vmatpush2.bf16.msra.mxu0 %v1523
    %2024 = vmatprep.subr.bf16.mxu0 %v1520
    %2025 = vmatpush2.bf16.msra.mxu0 %v1519
    %2026 = vmatprep.mubr.bf16.mxu0 %v420
    %2027 = vmatmul.mubr.bf16.gmra.mxu0 %v419
    %v2028 = vpop.f32.mrf.mxu0
    %v2029 = vadd.f32 %v1988, %v2028
    %v2030 = vpop.f32.mrf.mxu0
    %v2031 = vadd.f32 %v1990, %v2030
    %v2032 = vpop.f32.mrf.mxu0
    %v2033 = vpop.f32.mrf.mxu0
    %2034 = vdwg.mxu0
    %2035 = vmatprep.subr.bf16.mxu0 %v1580
    %2036 = vmatpush1.bf16.msra.mxu0 %v1579
    %2037 = vmatprep.subr.bf16.mxu0 %v1576
    %2038 = vmatpush1.bf16.msra.mxu0 %v1575
    %2039 = vmatprep.subr.bf16.mxu0 %v1572
    %2040 = vmatpush1.bf16.msra.mxu0 %v1571
    %2041 = vmatprep.subr.bf16.mxu0 %v1568
    %2042 = vmatpush1.bf16.msra.mxu0 %v1567
    %2043 = vmatprep.subr.bf16.mxu0 %v1564
    %2044 = vmatpush1.bf16.msra.mxu0 %v1563
    %2045 = vmatprep.subr.bf16.mxu0 %v1560
    %2046 = vmatpush1.bf16.msra.mxu0 %v1559
    %2047 = vmatprep.subr.bf16.mxu0 %v1556
    %2048 = vmatpush1.bf16.msra.mxu0 %v1555
    %2049 = vmatprep.subr.bf16.mxu0 %v1552
    %2050 = vmatpush1.bf16.msra.mxu0 %v1551
    %2051 = vmatprep.subr.bf16.mxu0 0
    %2052 = vmatpush2.bf16.msra.mxu0 0
    %2053 = vmatprep.subr.bf16.mxu0 0
    %2054 = vmatpush2.bf16.msra.mxu0 0
    %2055 = vmatprep.subr.bf16.mxu0 0
    %2056 = vmatpush2.bf16.msra.mxu0 0
    %2057 = vmatprep.subr.bf16.mxu0 0
    %2058 = vmatpush2.bf16.msra.mxu0 0
    %2059 = vmatprep.subr.bf16.mxu0 0
    %2060 = vmatpush2.bf16.msra.mxu0 0
    %2061 = vmatprep.subr.bf16.mxu0 0
    %2062 = vmatpush2.bf16.msra.mxu0 0
    %2063 = vmatprep.subr.bf16.mxu0 0
    %2064 = vmatpush2.bf16.msra.mxu0 0
    %2065 = vmatprep.subr.bf16.mxu0 0
    %2066 = vmatpush2.bf16.msra.mxu0 0
    %2067 = vmatprep.mubr.bf16.mxu0 0
    %2068 = vmatmul.mubr.bf16.gmra.mxu0 %v421
    %v2069 = vpop.f32.mrf.mxu0
    %v2070 = vadd.f32 %v2029, %v2069
    %v2071 = vpop.f32.mrf.mxu0
    %v2072 = vadd.f32 %v2031, %v2071
    %v2073 = vpop.f32.mrf.mxu0
    %v2074 = vpop.f32.mrf.mxu0
    %2075 = vdwg.mxu0
    %2076 = vmatprep.subr.bf16.mxu0 %v1326
    %2077 = vmatpush1.bf16.msra.mxu0 %v1325
    %2078 = vmatprep.subr.bf16.mxu0 %v1322
    %2079 = vmatpush1.bf16.msra.mxu0 %v1321
    %2080 = vmatprep.subr.bf16.mxu0 %v1318
    %2081 = vmatpush1.bf16.msra.mxu0 %v1317
    %2082 = vmatprep.subr.bf16.mxu0 %v1314
    %2083 = vmatpush1.bf16.msra.mxu0 %v1313
    %2084 = vmatprep.subr.bf16.mxu0 %v1310
    %2085 = vmatpush1.bf16.msra.mxu0 %v1309
    %2086 = vmatprep.subr.bf16.mxu0 %v1306
    %2087 = vmatpush1.bf16.msra.mxu0 %v1305
    %2088 = vmatprep.subr.bf16.mxu0 %v1302
    %2089 = vmatpush1.bf16.msra.mxu0 %v1301
    %2090 = vmatprep.subr.bf16.mxu0 %v1298
    %2091 = vmatpush1.bf16.msra.mxu0 %v1297
    %2092 = vmatprep.subr.bf16.mxu0 %v1358
    %2093 = vmatpush2.bf16.msra.mxu0 %v1357
    %2094 = vmatprep.subr.bf16.mxu0 %v1354
    %2095 = vmatpush2.bf16.msra.mxu0 %v1353
    %2096 = vmatprep.subr.bf16.mxu0 %v1350
    %2097 = vmatpush2.bf16.msra.mxu0 %v1349
    %2098 = vmatprep.subr.bf16.mxu0 %v1346
    %2099 = vmatpush2.bf16.msra.mxu0 %v1345
    %2100 = vmatprep.subr.bf16.mxu0 %v1342
    %2101 = vmatpush2.bf16.msra.mxu0 %v1341
    %2102 = vmatprep.subr.bf16.mxu0 %v1338
    %2103 = vmatpush2.bf16.msra.mxu0 %v1337
    %2104 = vmatprep.subr.bf16.mxu0 %v1334
    %2105 = vmatpush2.bf16.msra.mxu0 %v1333
    %2106 = vmatprep.subr.bf16.mxu0 %v1330
    %2107 = vmatpush2.bf16.msra.mxu0 %v1329
    %2108 = vmatprep.mubr.bf16.mxu0 %v414
    %2109 = vmatmul.mubr.bf16.gmra.mxu0 %v413
    %v2110 = vpop.f32.mrf.mxu0
    %v2111 = vadd.f32 %v390, %v2110
    %v2112 = vpop.f32.mrf.mxu0
    %v2113 = vadd.f32 %v394, %v2112
    %v2114 = vpop.f32.mrf.mxu0
    %v2115 = vpop.f32.mrf.mxu0
    %2116 = vdwg.mxu0
    %2117 = vmatprep.subr.bf16.mxu0 %v1390
    %2118 = vmatpush1.bf16.msra.mxu0 %v1389
    %2119 = vmatprep.subr.bf16.mxu0 %v1386
    %2120 = vmatpush1.bf16.msra.mxu0 %v1385
    %2121 = vmatprep.subr.bf16.mxu0 %v1382
    %2122 = vmatpush1.bf16.msra.mxu0 %v1381
    %2123 = vmatprep.subr.bf16.mxu0 %v1378
    %2124 = vmatpush1.bf16.msra.mxu0 %v1377
    %2125 = vmatprep.subr.bf16.mxu0 %v1374
    %2126 = vmatpush1.bf16.msra.mxu0 %v1373
    %2127 = vmatprep.subr.bf16.mxu0 %v1370
    %2128 = vmatpush1.bf16.msra.mxu0 %v1369
    %2129 = vmatprep.subr.bf16.mxu0 %v1366
    %2130 = vmatpush1.bf16.msra.mxu0 %v1365
    %2131 = vmatprep.subr.bf16.mxu0 %v1362
    %2132 = vmatpush1.bf16.msra.mxu0 %v1361
    %2133 = vmatprep.subr.bf16.mxu0 %v1422
    %2134 = vmatpush2.bf16.msra.mxu0 %v1421
    %2135 = vmatprep.subr.bf16.mxu0 %v1418
    %2136 = vmatpush2.bf16.msra.mxu0 %v1417
    %2137 = vmatprep.subr.bf16.mxu0 %v1414
    %2138 = vmatpush2.bf16.msra.mxu0 %v1413
    %2139 = vmatprep.subr.bf16.mxu0 %v1410
    %2140 = vmatpush2.bf16.msra.mxu0 %v1409
    %2141 = vmatprep.subr.bf16.mxu0 %v1406
    %2142 = vmatpush2.bf16.msra.mxu0 %v1405
    %2143 = vmatprep.subr.bf16.mxu0 %v1402
    %2144 = vmatpush2.bf16.msra.mxu0 %v1401
    %2145 = vmatprep.subr.bf16.mxu0 %v1398
    %2146 = vmatpush2.bf16.msra.mxu0 %v1397
    %2147 = vmatprep.subr.bf16.mxu0 %v1394
    %2148 = vmatpush2.bf16.msra.mxu0 %v1393
    %2149 = vmatprep.mubr.bf16.mxu0 %v416
    %2150 = vmatmul.mubr.bf16.gmra.mxu0 %v415
    %v2151 = vpop.f32.mrf.mxu0
    %v2152 = vadd.f32 %v2111, %v2151
    %v2153 = vpop.f32.mrf.mxu0
    %v2154 = vadd.f32 %v2113, %v2153
    %v2155 = vpop.f32.mrf.mxu0
    %v2156 = vpop.f32.mrf.mxu0
    %2157 = vdwg.mxu0
    %2158 = vmatprep.subr.bf16.mxu0 %v1454
    %2159 = vmatpush1.bf16.msra.mxu0 %v1453
    %2160 = vmatprep.subr.bf16.mxu0 %v1450
    %2161 = vmatpush1.bf16.msra.mxu0 %v1449
    %2162 = vmatprep.subr.bf16.mxu0 %v1446
    %2163 = vmatpush1.bf16.msra.mxu0 %v1445
    %2164 = vmatprep.subr.bf16.mxu0 %v1442
    %2165 = vmatpush1.bf16.msra.mxu0 %v1441
    %2166 = vmatprep.subr.bf16.mxu0 %v1438
    %2167 = vmatpush1.bf16.msra.mxu0 %v1437
    %2168 = vmatprep.subr.bf16.mxu0 %v1434
    %2169 = vmatpush1.bf16.msra.mxu0 %v1433
    %2170 = vmatprep.subr.bf16.mxu0 %v1430
    %2171 = vmatpush1.bf16.msra.mxu0 %v1429
    %2172 = vmatprep.subr.bf16.mxu0 %v1426
    %2173 = vmatpush1.bf16.msra.mxu0 %v1425
    %2174 = vmatprep.subr.bf16.mxu0 %v1486
    %2175 = vmatpush2.bf16.msra.mxu0 %v1485
    %2176 = vmatprep.subr.bf16.mxu0 %v1482
    %2177 = vmatpush2.bf16.msra.mxu0 %v1481
    %2178 = vmatprep.subr.bf16.mxu0 %v1478
    %2179 = vmatpush2.bf16.msra.mxu0 %v1477
    %2180 = vmatprep.subr.bf16.mxu0 %v1474
    %2181 = vmatpush2.bf16.msra.mxu0 %v1473
    %2182 = vmatprep.subr.bf16.mxu0 %v1470
    %2183 = vmatpush2.bf16.msra.mxu0 %v1469
    %2184 = vmatprep.subr.bf16.mxu0 %v1466
    %2185 = vmatpush2.bf16.msra.mxu0 %v1465
    %2186 = vmatprep.subr.bf16.mxu0 %v1462
    %2187 = vmatpush2.bf16.msra.mxu0 %v1461
    %2188 = vmatprep.subr.bf16.mxu0 %v1458
    %2189 = vmatpush2.bf16.msra.mxu0 %v1457
    %2190 = vmatprep.mubr.bf16.mxu0 %v418
    %2191 = vmatmul.mubr.bf16.gmra.mxu0 %v417
    %v2192 = vpop.f32.mrf.mxu0
    %v2193 = vadd.f32 %v2152, %v2192
    %v2194 = vpop.f32.mrf.mxu0
    %v2195 = vadd.f32 %v2154, %v2194
    %v2196 = vpop.f32.mrf.mxu0
    %v2197 = vpop.f32.mrf.mxu0
    %2198 = vdwg.mxu0
    %2199 = vmatprep.subr.bf16.mxu0 %v1518
    %2200 = vmatpush1.bf16.msra.mxu0 %v1517
    %2201 = vmatprep.subr.bf16.mxu0 %v1514
    %2202 = vmatpush1.bf16.msra.mxu0 %v1513
    %2203 = vmatprep.subr.bf16.mxu0 %v1510
    %2204 = vmatpush1.bf16.msra.mxu0 %v1509
    %2205 = vmatprep.subr.bf16.mxu0 %v1506
    %2206 = vmatpush1.bf16.msra.mxu0 %v1505
    %2207 = vmatprep.subr.bf16.mxu0 %v1502
    %2208 = vmatpush1.bf16.msra.mxu0 %v1501
    %2209 = vmatprep.subr.bf16.mxu0 %v1498
    %2210 = vmatpush1.bf16.msra.mxu0 %v1497
    %2211 = vmatprep.subr.bf16.mxu0 %v1494
    %2212 = vmatpush1.bf16.msra.mxu0 %v1493
    %2213 = vmatprep.subr.bf16.mxu0 %v1490
    %2214 = vmatpush1.bf16.msra.mxu0 %v1489
    %2215 = vmatprep.subr.bf16.mxu0 %v1550
    %2216 = vmatpush2.bf16.msra.mxu0 %v1549
    %2217 = vmatprep.subr.bf16.mxu0 %v1546
    %2218 = vmatpush2.bf16.msra.mxu0 %v1545
    %2219 = vmatprep.subr.bf16.mxu0 %v1542
    %2220 = vmatpush2.bf16.msra.mxu0 %v1541
    %2221 = vmatprep.subr.bf16.mxu0 %v1538
    %2222 = vmatpush2.bf16.msra.mxu0 %v1537
    %2223 = vmatprep.subr.bf16.mxu0 %v1534
    %2224 = vmatpush2.bf16.msra.mxu0 %v1533
    %2225 = vmatprep.subr.bf16.mxu0 %v1530
    %2226 = vmatpush2.bf16.msra.mxu0 %v1529
    %2227 = vmatprep.subr.bf16.mxu0 %v1526
    %2228 = vmatpush2.bf16.msra.mxu0 %v1525
    %2229 = vmatprep.subr.bf16.mxu0 %v1522
    %2230 = vmatpush2.bf16.msra.mxu0 %v1521
    %2231 = vmatprep.mubr.bf16.mxu0 %v420
    %2232 = vmatmul.mubr.bf16.gmra.mxu0 %v419
    %v2233 = vpop.f32.mrf.mxu0
    %v2234 = vadd.f32 %v2193, %v2233
    %v2235 = vpop.f32.mrf.mxu0
    %v2236 = vadd.f32 %v2195, %v2235
    %v2237 = vpop.f32.mrf.mxu0
    %v2238 = vpop.f32.mrf.mxu0
    %2239 = vdwg.mxu0
    %2240 = vmatprep.subr.bf16.mxu0 %v1582
    %2241 = vmatpush1.bf16.msra.mxu0 %v1581
    %2242 = vmatprep.subr.bf16.mxu0 %v1578
    %2243 = vmatpush1.bf16.msra.mxu0 %v1577
    %2244 = vmatprep.subr.bf16.mxu0 %v1574
    %2245 = vmatpush1.bf16.msra.mxu0 %v1573
    %2246 = vmatprep.subr.bf16.mxu0 %v1570
    %2247 = vmatpush1.bf16.msra.mxu0 %v1569
    %2248 = vmatprep.subr.bf16.mxu0 %v1566
    %2249 = vmatpush1.bf16.msra.mxu0 %v1565
    %2250 = vmatprep.subr.bf16.mxu0 %v1562
    %2251 = vmatpush1.bf16.msra.mxu0 %v1561
    %2252 = vmatprep.subr.bf16.mxu0 %v1558
    %2253 = vmatpush1.bf16.msra.mxu0 %v1557
    %2254 = vmatprep.subr.bf16.mxu0 %v1554
    %2255 = vmatpush1.bf16.msra.mxu0 %v1553
    %2256 = vmatprep.subr.bf16.mxu0 0
    %2257 = vmatpush2.bf16.msra.mxu0 0
    %2258 = vmatprep.subr.bf16.mxu0 0
    %2259 = vmatpush2.bf16.msra.mxu0 0
    %2260 = vmatprep.subr.bf16.mxu0 0
    %2261 = vmatpush2.bf16.msra.mxu0 0
    %2262 = vmatprep.subr.bf16.mxu0 0
    %2263 = vmatpush2.bf16.msra.mxu0 0
    %2264 = vmatprep.subr.bf16.mxu0 0
    %2265 = vmatpush2.bf16.msra.mxu0 0
    %2266 = vmatprep.subr.bf16.mxu0 0
    %2267 = vmatpush2.bf16.msra.mxu0 0
    %2268 = vmatprep.subr.bf16.mxu0 0
    %2269 = vmatpush2.bf16.msra.mxu0 0
    %2270 = vmatprep.subr.bf16.mxu0 0
    %2271 = vmatpush2.bf16.msra.mxu0 0
    %2272 = vmatprep.mubr.bf16.mxu0 0
    %2273 = vmatmul.mubr.bf16.gmra.mxu0 %v421
    %v2274 = vpop.f32.mrf.mxu0
    %v2275 = vadd.f32 %v2234, %v2274
    %v2276 = vpop.f32.mrf.mxu0
    %v2277 = vadd.f32 %v2236, %v2276
    %v2278 = vpop.f32.mrf.mxu0
    %v2279 = vpop.f32.mrf.mxu0
    %2280 = vdwg.mxu0
    %v2281 = vmax.f32 %v2070, 0.0
    %v2282 = vmax.f32 %v2072, 0.0
    %v2283 = vmax.f32 %v2275, 0.0
    %v2284 = vmax.f32 %v2277, 0.0
    %v2285 = vpack.c.bf16 %v2281, %v2281
    %v2286 = vpack.c.bf16 %v2282, %v2282
    %v2287 = vpack.c.bf16 %v2283, %v2283
    %v2288 = vpack.c.bf16 %v2284, %v2284
    %v2289 = vld [vmem:[#allocation8] sm:$0xf]
    %v2290 = vld [vmem:[#allocation8 + $0x4] sm:$0xf]
    %v2291 = vld [vmem:[#allocation8 + $0x8] sm:$0xf]
    %v2292 = vld [vmem:[#allocation8 + $0xc] sm:$0xf]
    %v2293 = vld [vmem:[#allocation8 + $0x10] sm:$0xf]
    %v2294 = vld [vmem:[#allocation8 + $0x14] sm:$0xf]
    %v2295 = vld [vmem:[#allocation8 + $0x18] sm:$0xf]
    %v2296 = vld [vmem:[#allocation8 + $0x1c] sm:$0xf]
    %v2297 = vld [vmem:[#allocation8 + $0x20] sm:$0xf]
    %v2298 = vld [vmem:[#allocation8 + $0x24] sm:$0xf]
    %v2299 = vld [vmem:[#allocation8 + $0x28] sm:$0xf]
    %v2300 = vld [vmem:[#allocation8 + $0x2c] sm:$0xf]
    %v2301 = vld [vmem:[#allocation8 + $0x30] sm:$0xf]
    %v2302 = vld [vmem:[#allocation8 + $0x34] sm:$0xf]
    %v2303 = vld [vmem:[#allocation8 + $0x38] sm:$0xf]
    %v2304 = vld [vmem:[#allocation8 + $0x3c] sm:$0xf]
    %v2305 = vld [vmem:[#allocation8 + $0x40] sm:$0xf]
    %v2306 = vld [vmem:[#allocation8 + $0x44] sm:$0xf]
    %v2307 = vld [vmem:[#allocation8 + $0x48] sm:$0xf]
    %v2308 = vld [vmem:[#allocation8 + $0x4c] sm:$0xf]
    %v2309 = vld [vmem:[#allocation8 + $0x50] sm:$0xf]
    %v2310 = vld [vmem:[#allocation8 + $0x54] sm:$0xf]
    %v2311 = vld [vmem:[#allocation8 + $0x58] sm:$0xf]
    %v2312 = vld [vmem:[#allocation8 + $0x5c] sm:$0xf]
    %v2313 = vld [vmem:[#allocation8 + $0x60] sm:$0xf]
    %v2314 = vld [vmem:[#allocation8 + $0x64] sm:$0xf]
    %v2315 = vld [vmem:[#allocation8 + $0x68] sm:$0xf]
    %v2316 = vld [vmem:[#allocation8 + $0x6c] sm:$0xf]
    %v2317 = vld [vmem:[#allocation8 + $0x70] sm:$0xf]
    %v2318 = vld [vmem:[#allocation8 + $0x74] sm:$0xf]
    %v2319 = vld [vmem:[#allocation8 + $0x78] sm:$0xf]
    %v2320 = vld [vmem:[#allocation8 + $0x7c] sm:$0xf]
    %v2321 = vld [vmem:[#allocation8 + $0x80] sm:$0xf]
    %v2322 = vld [vmem:[#allocation8 + $0x84] sm:$0xf]
    %v2323 = vld [vmem:[#allocation8 + $0x88] sm:$0xf]
    %v2324 = vld [vmem:[#allocation8 + $0x8c] sm:$0xf]
    %v2325 = vld [vmem:[#allocation8 + $0x90] sm:$0xf]
    %v2326 = vld [vmem:[#allocation8 + $0x94] sm:$0xf]
    %v2327 = vld [vmem:[#allocation8 + $0x98] sm:$0xf]
    %v2328 = vld [vmem:[#allocation8 + $0x9c] sm:$0xf]
    %v2329 = vld [vmem:[#allocation8 + $0xa0] sm:$0xf]
    %v2330 = vld [vmem:[#allocation8 + $0xa4] sm:$0xf]
    %v2331 = vld [vmem:[#allocation8 + $0xa8] sm:$0xf]
    %v2332 = vld [vmem:[#allocation8 + $0xac] sm:$0xf]
    %v2333 = vld [vmem:[#allocation8 + $0xb0] sm:$0xf]
    %v2334 = vld [vmem:[#allocation8 + $0xb4] sm:$0xf]
    %v2335 = vld [vmem:[#allocation8 + $0xb8] sm:$0xf]
    %v2336 = vld [vmem:[#allocation8 + $0xbc] sm:$0xf]
    %v2337 = vld [vmem:[#allocation8 + $0xc0] sm:$0xf]
    %v2338 = vld [vmem:[#allocation8 + $0xc4] sm:$0xf]
    %v2339 = vld [vmem:[#allocation8 + $0xc8] sm:$0xf]
    %v2340 = vld [vmem:[#allocation8 + $0xcc] sm:$0xf]
    %v2341 = vld [vmem:[#allocation8 + $0xd0] sm:$0xf]
    %v2342 = vld [vmem:[#allocation8 + $0xd4] sm:$0xf]
    %v2343 = vld [vmem:[#allocation8 + $0xd8] sm:$0xf]
    %v2344 = vld [vmem:[#allocation8 + $0xdc] sm:$0xf]
    %v2345 = vld [vmem:[#allocation8 + $0xe0] sm:$0xf]
    %v2346 = vld [vmem:[#allocation8 + $0xe4] sm:$0xf]
    %v2347 = vld [vmem:[#allocation8 + $0xe8] sm:$0xf]
    %v2348 = vld [vmem:[#allocation8 + $0xec] sm:$0xf]
    %v2349 = vld [vmem:[#allocation8 + $0xf0] sm:$0xf]
    %v2350 = vld [vmem:[#allocation8 + $0xf4] sm:$0xf]
    %v2351 = vld [vmem:[#allocation8 + $0xf8] sm:$0xf]
    %v2352 = vld [vmem:[#allocation8 + $0xfc] sm:$0xf]
    %v2353 = vld [vmem:[#allocation10] sm:$0x1]
    %v2355 = vlaneseq
    %v2356 = vshrl.u32 %v2355, 7
    %v2357 = vsub.s32 0, %v2356
    %v2358 = vrot.slane %v2353, %v2357
    %v2424 = vunpack.c.l.b16 %v2289
    %v2425 = vunpack.c.l.b16 %v2290
    %v2426 = vunpack.c.l.b16 %v2291
    %v2427 = vunpack.c.l.b16 %v2292
    %v2428 = vunpack.c.l.b16 %v2293
    %v2429 = vunpack.c.l.b16 %v2294
    %v2430 = vunpack.c.l.b16 %v2295
    %v2431 = vunpack.c.l.b16 %v2296
    %v2432 = vunpack.c.l.b16 %v2297
    %v2433 = vunpack.c.l.b16 %v2298
    %v2434 = vunpack.c.l.b16 %v2299
    %v2435 = vunpack.c.l.b16 %v2300
    %v2436 = vunpack.c.l.b16 %v2301
    %v2437 = vunpack.c.l.b16 %v2302
    %v2438 = vunpack.c.l.b16 %v2303
    %v2439 = vunpack.c.l.b16 %v2304
    %v2440 = vunpack.c.l.b16 %v2305
    %v2441 = vunpack.c.l.b16 %v2306
    %v2442 = vunpack.c.l.b16 %v2307
    %v2443 = vunpack.c.l.b16 %v2308
    %v2444 = vunpack.c.l.b16 %v2309
    %v2445 = vunpack.c.l.b16 %v2310
    %v2446 = vunpack.c.l.b16 %v2311
    %v2447 = vunpack.c.l.b16 %v2312
    %v2448 = vunpack.c.l.b16 %v2313
    %v2449 = vunpack.c.l.b16 %v2314
    %v2450 = vunpack.c.l.b16 %v2315
    %v2451 = vunpack.c.l.b16 %v2316
    %v2452 = vunpack.c.l.b16 %v2317
    %v2453 = vunpack.c.l.b16 %v2318
    %v2454 = vunpack.c.l.b16 %v2319
    %v2455 = vunpack.c.l.b16 %v2320
    %v2456 = vunpack.c.l.b16 %v2321
    %v2457 = vunpack.c.l.b16 %v2322
    %v2458 = vunpack.c.l.b16 %v2323
    %v2459 = vunpack.c.l.b16 %v2324
    %v2460 = vunpack.c.l.b16 %v2325
    %v2461 = vunpack.c.l.b16 %v2326
    %v2462 = vunpack.c.l.b16 %v2327
    %v2463 = vunpack.c.l.b16 %v2328
    %v2464 = vunpack.c.l.b16 %v2329
    %v2465 = vunpack.c.l.b16 %v2330
    %v2466 = vunpack.c.l.b16 %v2331
    %v2467 = vunpack.c.l.b16 %v2332
    %v2468 = vunpack.c.l.b16 %v2333
    %v2469 = vunpack.c.l.b16 %v2334
    %v2470 = vunpack.c.l.b16 %v2335
    %v2471 = vunpack.c.l.b16 %v2336
    %v2472 = vunpack.c.l.b16 %v2337
    %v2473 = vunpack.c.l.b16 %v2338
    %v2474 = vunpack.c.l.b16 %v2339
    %v2475 = vunpack.c.l.b16 %v2340
    %v2476 = vunpack.c.l.b16 %v2341
    %v2477 = vunpack.c.l.b16 %v2342
    %v2478 = vunpack.c.l.b16 %v2343
    %v2479 = vunpack.c.l.b16 %v2344
    %v2480 = vunpack.c.l.b16 %v2345
    %v2481 = vunpack.c.l.b16 %v2346
    %v2482 = vunpack.c.l.b16 %v2347
    %v2483 = vunpack.c.l.b16 %v2348
    %v2484 = vunpack.c.l.b16 %v2349
    %v2485 = vunpack.c.l.b16 %v2350
    %v2486 = vunpack.c.l.b16 %v2351
    %v2487 = vunpack.c.l.b16 %v2352
    %v2488 = vpack.c.b16 %v2425, %v2424
    %v2489 = vpack.c.b16 %v2427, %v2426
    %v2490 = vpack.c.b16 %v2429, %v2428
    %v2491 = vpack.c.b16 %v2431, %v2430
    %v2492 = vpack.c.b16 %v2433, %v2432
    %v2493 = vpack.c.b16 %v2435, %v2434
    %v2494 = vpack.c.b16 %v2437, %v2436
    %v2495 = vpack.c.b16 %v2439, %v2438
    %v2496 = vpack.c.b16 %v2441, %v2440
    %v2497 = vpack.c.b16 %v2443, %v2442
    %v2498 = vpack.c.b16 %v2445, %v2444
    %v2499 = vpack.c.b16 %v2447, %v2446
    %v2500 = vpack.c.b16 %v2449, %v2448
    %v2501 = vpack.c.b16 %v2451, %v2450
    %v2502 = vpack.c.b16 %v2453, %v2452
    %v2503 = vpack.c.b16 %v2455, %v2454
    %v2504 = vpack.c.b16 %v2457, %v2456
    %v2505 = vpack.c.b16 %v2459, %v2458
    %v2506 = vpack.c.b16 %v2461, %v2460
    %v2507 = vpack.c.b16 %v2463, %v2462
    %v2508 = vpack.c.b16 %v2465, %v2464
    %v2509 = vpack.c.b16 %v2467, %v2466
    %v2510 = vpack.c.b16 %v2469, %v2468
    %v2511 = vpack.c.b16 %v2471, %v2470
    %v2512 = vpack.c.b16 %v2473, %v2472
    %v2513 = vpack.c.b16 %v2475, %v2474
    %v2514 = vpack.c.b16 %v2477, %v2476
    %v2515 = vpack.c.b16 %v2479, %v2478
    %v2516 = vpack.c.b16 %v2481, %v2480
    %v2517 = vpack.c.b16 %v2483, %v2482
    %v2518 = vpack.c.b16 %v2485, %v2484
    %v2519 = vpack.c.b16 %v2487, %v2486
    %2552 = vmatprep.subr.bf16.mxu0 0
    %2553 = vmatpush1.bf16.msra.mxu0 %v2495
    %2554 = vmatprep.subr.bf16.mxu0 0
    %2555 = vmatpush1.bf16.msra.mxu0 %v2494
    %2556 = vmatprep.subr.bf16.mxu0 0
    %2557 = vmatpush1.bf16.msra.mxu0 %v2493
    %2558 = vmatprep.subr.bf16.mxu0 0
    %2559 = vmatpush1.bf16.msra.mxu0 %v2492
    %2560 = vmatprep.subr.bf16.mxu0 0
    %2561 = vmatpush1.bf16.msra.mxu0 %v2491
    %2562 = vmatprep.subr.bf16.mxu0 0
    %2563 = vmatpush1.bf16.msra.mxu0 %v2490
    %2564 = vmatprep.subr.bf16.mxu0 0
    %2565 = vmatpush1.bf16.msra.mxu0 %v2489
    %2566 = vmatprep.subr.bf16.mxu0 0
    %2567 = vmatpush1.bf16.msra.mxu0 %v2488
    %2568 = vmatprep.subr.bf16.mxu0 0
    %2569 = vmatpush2.bf16.msra.mxu0 %v2503
    %2570 = vmatprep.subr.bf16.mxu0 0
    %2571 = vmatpush2.bf16.msra.mxu0 %v2502
    %2572 = vmatprep.subr.bf16.mxu0 0
    %2573 = vmatpush2.bf16.msra.mxu0 %v2501
    %2574 = vmatprep.subr.bf16.mxu0 0
    %2575 = vmatpush2.bf16.msra.mxu0 %v2500
    %2576 = vmatprep.subr.bf16.mxu0 0
    %2577 = vmatpush2.bf16.msra.mxu0 %v2499
    %2578 = vmatprep.subr.bf16.mxu0 0
    %2579 = vmatpush2.bf16.msra.mxu0 %v2498
    %2580 = vmatprep.subr.bf16.mxu0 0
    %2581 = vmatpush2.bf16.msra.mxu0 %v2497
    %2582 = vmatprep.subr.bf16.mxu0 0
    %2583 = vmatpush2.bf16.msra.mxu0 %v2496
    %2584 = vmatprep.mubr.bf16.mxu0 %v2286
    %2585 = vmatmul.mubr.bf16.gmra.mxu0 %v2285
    %v2586 = vpop.f32.mrf.mxu0
    %v2587 = vadd.f32 %v2358, %v2586
    %v2588 = vpop.f32.mrf.mxu0
    %v2589 = vpop.f32.mrf.mxu0
    %v2590 = vpop.f32.mrf.mxu0
    %2591 = vdwg.mxu0
    %2592 = vmatprep.subr.bf16.mxu0 0
    %2593 = vmatpush1.bf16.msra.mxu0 %v2511
    %2594 = vmatprep.subr.bf16.mxu0 0
    %2595 = vmatpush1.bf16.msra.mxu0 %v2510
    %2596 = vmatprep.subr.bf16.mxu0 0
    %2597 = vmatpush1.bf16.msra.mxu0 %v2509
    %2598 = vmatprep.subr.bf16.mxu0 0
    %2599 = vmatpush1.bf16.msra.mxu0 %v2508
    %2600 = vmatprep.subr.bf16.mxu0 0
    %2601 = vmatpush1.bf16.msra.mxu0 %v2507
    %2602 = vmatprep.subr.bf16.mxu0 0
    %2603 = vmatpush1.bf16.msra.mxu0 %v2506
    %2604 = vmatprep.subr.bf16.mxu0 0
    %2605 = vmatpush1.bf16.msra.mxu0 %v2505
    %2606 = vmatprep.subr.bf16.mxu0 0
    %2607 = vmatpush1.bf16.msra.mxu0 %v2504
    %2608 = vmatprep.subr.bf16.mxu0 0
    %2609 = vmatpush2.bf16.msra.mxu0 %v2519
    %2610 = vmatprep.subr.bf16.mxu0 0
    %2611 = vmatpush2.bf16.msra.mxu0 %v2518
    %2612 = vmatprep.subr.bf16.mxu0 0
    %2613 = vmatpush2.bf16.msra.mxu0 %v2517
    %2614 = vmatprep.subr.bf16.mxu0 0
    %2615 = vmatpush2.bf16.msra.mxu0 %v2516
    %2616 = vmatprep.subr.bf16.mxu0 0
    %2617 = vmatpush2.bf16.msra.mxu0 %v2515
    %2618 = vmatprep.subr.bf16.mxu0 0
    %2619 = vmatpush2.bf16.msra.mxu0 %v2514
    %2620 = vmatprep.subr.bf16.mxu0 0
    %2621 = vmatpush2.bf16.msra.mxu0 %v2513
    %2622 = vmatprep.subr.bf16.mxu0 0
    %2623 = vmatpush2.bf16.msra.mxu0 %v2512
    %2624 = vmatprep.mubr.bf16.mxu0 %v2288
    %2625 = vmatmul.mubr.bf16.gmra.mxu0 %v2287
    %v2626 = vpop.f32.mrf.mxu0
    %v2627 = vadd.f32 %v2587, %v2626
    %v2628 = vpop.f32.mrf.mxu0
    %v2629 = vpop.f32.mrf.mxu0
    %v2630 = vpop.f32.mrf.mxu0
    %2631 = vdwg.mxu0
    %2632 = vst [vmem:[#allocation11] sm:$0xff] %v2627
    // Predicated region
    $region42: #{tpu_custom_call.1} parent=1 // pred_check
      _
    $region43: #{tpu_custom_call.1} parent=1 // pred_check_branch
      %2634 = sbr.rel (0) target = $region45
    $region44: #{tpu_custom_call.1} parent=1 // pred_region
      %s2636 = ssub.s32 128, 128
      %2637 = vsyncadd [#allocation4], %s2636
      %s2639 = sshll.u32 [#allocation11], 4
      %s2640 = int_to_ptr.vmem [resolvable:$true] %s2639
      %2642 = dma.vmem_to_hbm [thread:$0]  %s2640, 128, %s5, [#allocation4]
    $region45: #{tpu_custom_call.1} parent=1 // pred_fallthru
      _
    // Predicated region
    $region46: #{tpu_custom_call.1} parent=1 // pred_check
      _
    $region47: #{tpu_custom_call.1} parent=1 // pred_check_branch
      %2644 = sbr.rel (0) target = $region49
    $region48: #{tpu_custom_call.1} parent=1 // pred_region
      %2645 = dma.done [#allocation4], 128
    $region49: #{tpu_custom_call.1} parent=1 // pred_fallthru
      _
    %2646 = vsyncpa [#allocation3], 1
    %2647 = vsyncpa [#allocation6], 1
    %2648 = vsyncpa [#allocation9], 1
    %2649 = vsyncpa [#allocation4], 1

</llo_original>
